<compile_context>
chip_gen: v5e
topology: v5e:2x2
jax: 0.10.0
libtpu: 0.0.40
codegen_flags: <defaults>
</compile_context>

<pallas_src>
import math

import jax
import jax.numpy as jnp
from jax.experimental import pallas as pl
from jax.experimental.pallas import tpu as pltpu


# ----------------------------------------------------------------------------
# Fused forward kernel (built per model shape by a small factory).
# Single grid step; both branches + final fc run in one body.
# ----------------------------------------------------------------------------
def _make_fused_kernel(T, B_pad, n_acc_layers, n_mel_layers, apply_sigmoid):
    def run_stack(x_ref, wrefs):
        """Run a stack of LSTM layers; return the last layer's final h (B_pad, H)."""
        n_layers = len(wrefs) // 3
        layer_in = x_ref[...]                  # (T*B_pad, Din)
        h = None
        for li in range(n_layers):
            wih = wrefs[3 * li][...]           # (Din, 4H), cols [i, f, o, 2*g]
            whh = wrefs[3 * li + 1][...]       # (H,   4H)
            b = wrefs[3 * li + 2][...]         # (1,   4H)  (b_ih + b_hh, reordered/scaled)
            H = whh.shape[0]

            # Hoisted input projection: one big matmul per layer (bias fused here).
            gx = jnp.dot(layer_in, wih, preferred_element_type=jnp.float32) + b

            h = jnp.zeros((B_pad, H), jnp.float32)
            c = jnp.zeros((B_pad, H), jnp.float32)
            hs = []
            for t in range(T):                 # short, fully unrolled recurrence
                # (8, 4H) tile-aligned slice + recurrent matmul.
                gates = gx[t * B_pad:(t + 1) * B_pad, :] + jnp.dot(
                    h, whh, preferred_element_type=jnp.float32)
                # One full-vreg sigmoid; tanh(pre_g) == 2*sigmoid(2*pre_g) - 1
                # because the g-columns were pre-scaled by 2.
                acts = jax.nn.sigmoid(gates)
                i_g = acts[:, 0:H]
                f_g = acts[:, H:2 * H]
                o_g = acts[:, 2 * H:3 * H]
                sg = acts[:, 3 * H:4 * H]
                c = f_g * c + i_g * (2.0 * sg - 1.0)
                h = o_g * jnp.tanh(c)
                hs.append(h)
            if li + 1 < n_layers:
                # Register/VMEM-resident inter-layer sequence (no scratch round-trip).
                layer_in = jnp.concatenate(hs, axis=0)   # (T*B_pad, H)
        return h

    def kernel(*args):
        x_acc_ref = args[0]
        x_mel_ref = args[1]
        idx = 2
        acc_w = args[idx:idx + 3 * n_acc_layers]; idx += 3 * n_acc_layers
        mel_w = args[idx:idx + 3 * n_mel_layers]; idx += 3 * n_mel_layers
        wfc_acc_ref = args[idx]
        wfc_mel_ref = args[idx + 1]
        fcb_ref = args[idx + 2]
        out_ref = args[idx + 3]                 # (B_pad, acc_size)

        # Two independent chains in one body -> scheduler interleaves them.
        h_acc = run_stack(x_acc_ref, acc_w)
        h_mel = run_stack(x_mel_ref, mel_w)

        y = (jnp.dot(h_acc, wfc_acc_ref[...], preferred_element_type=jnp.float32)
             + jnp.dot(h_mel, wfc_mel_ref[...], preferred_element_type=jnp.float32)
             + fcb_ref[...])
        if apply_sigmoid:                       # training_mode=False path
            y = jax.nn.sigmoid(y)
        out_ref[...] = y

    return kernel


# ----------------------------------------------------------------------------
# Parameter preparation (done ONCE): transpose, fuse biases, reorder gate
# columns from PyTorch's [i, f, g, o] to [i, f, o, g], scale g-columns by 2
# (for the single-sigmoid trick), split the fc weight per branch.
# ----------------------------------------------------------------------------
def _reorder_scale_gate_cols(w):
    i, f, g, o = jnp.split(w, 4, axis=-1)
    return jnp.concatenate([i, f, o, 2.0 * g], axis=-1)


def prepare_kernel_params(params):
    def prep_lstm(p):
        wih_t = _reorder_scale_gate_cols(p["w_ih"].T)                       # (Din, 4H)
        whh_t = _reorder_scale_gate_cols(p["w_hh"].T)                       # (H, 4H)
        b = _reorder_scale_gate_cols((p["b_ih"] + p["b_hh"]).reshape(1, -1))  # (1, 4H)
        return (wih_t, whh_t, b)

    acc_w = [prep_lstm(p) for p in params["acc"]]
    mel_w = [prep_lstm(p) for p in params["mel"]]
    h_acc_last = params["acc"][-1]["w_hh"].shape[1]
    fc_w = params["fc_w"]                                                   # (acc, Hacc+Hmel)
    return {
        "acc": acc_w,
        "mel": mel_w,
        "fc_w_acc": fc_w[:, :h_acc_last].T,                                 # (Hacc, acc)
        "fc_w_mel": fc_w[:, h_acc_last:].T,                                 # (Hmel, acc)
        "fc_b": params["fc_b"].reshape(1, -1),                              # (1, acc)
    }


# ----------------------------------------------------------------------------
# Forward pass (matches RNN.forward; apply_sigmoid=False == training_mode=True).
# ----------------------------------------------------------------------------
def rnn_forward(kparams, x, acc_size, apply_sigmoid=True):
    # x: (B, T, acc_size + 88), batch_first like PyTorch.
    B, T, _ = x.shape
    B_pad = max(8, ((B + 7) // 8) * 8)          # sublane-pad the batch

    x_t = jnp.transpose(x, (1, 0, 2)).astype(jnp.float32)   # (T, B, D)
    if B_pad != B:
        x_t = jnp.pad(x_t, ((0, 0), (0, B_pad - B), (0, 0)))
    # Flatten to (T*B_pad, D): each timestep slice inside the kernel is a whole
    # 8-sublane tile and each layer's input projection is a single matmul.
    x_acc = x_t[:, :, :acc_size].reshape(T * B_pad, acc_size)
    x_mel = x_t[:, :, acc_size:].reshape(T * B_pad, -1)

    acc_w = kparams["acc"]
    mel_w = kparams["mel"]
    flat_w = []
    for tpl in acc_w + mel_w:
        flat_w.extend(tpl)

    kernel = _make_fused_kernel(T, B_pad, len(acc_w), len(mel_w), apply_sigmoid)

    inputs = [x_acc, x_mel, *flat_w,
              kparams["fc_w_acc"], kparams["fc_w_mel"], kparams["fc_b"]]
    in_specs = [pl.BlockSpec(a.shape, lambda i: (0, 0)) for a in inputs]

    out = pl.pallas_call(
        kernel,
        out_shape=jax.ShapeDtypeStruct((B_pad, acc_size), jnp.float32),
        grid_spec=pltpu.PrefetchScalarGridSpec(
            num_scalar_prefetch=0,
            grid=(1,),
            in_specs=in_specs,
            out_specs=pl.BlockSpec((B_pad, acc_size), lambda i: (0, 0)),
        ),
        compiler_params=pltpu.CompilerParams(
            dimension_semantics=("arbitrary",)),
    )(*inputs)
    return out[:B]


# ----------------------------------------------------------------------------
# Parameter construction (deterministic, PyTorch-style uniform init / layout).
# ----------------------------------------------------------------------------
def init_params(key, layers):
    mel_sizes, acc_sizes, acc_size = layers

    def lstm_params(key, d_in, h):
        k = 1.0 / math.sqrt(h)
        ks = jax.random.split(key, 4)
        return dict(
            w_ih=jax.random.uniform(ks[0], (4 * h, d_in), jnp.float32, -k, k),
            w_hh=jax.random.uniform(ks[1], (4 * h, h), jnp.float32, -k, k),
            b_ih=jax.random.uniform(ks[2], (4 * h,), jnp.float32, -k, k),
            b_hh=jax.random.uniform(ks[3], (4 * h,), jnp.float32, -k, k),
        )

    params = {"mel": [], "acc": []}
    key, sub = jax.random.split(key)
    params["mel"].append(lstm_params(sub, 88, mel_sizes[0]))
    for i in range(len(mel_sizes) - 1):
        key, sub = jax.random.split(key)
        params["mel"].append(lstm_params(sub, mel_sizes[i], mel_sizes[i + 1]))
    key, sub = jax.random.split(key)
    params["acc"].append(lstm_params(sub, acc_size, acc_sizes[0]))
    for i in range(len(acc_sizes) - 1):
        key, sub = jax.random.split(key)
        params["acc"].append(lstm_params(sub, acc_sizes[i], acc_sizes[i + 1]))

    fc_in = mel_sizes[-1] + acc_sizes[-1]
    kfc = 1.0 / math.sqrt(fc_in)
    key, k1, k2 = jax.random.split(key, 3)
    params["fc_w"] = jax.random.uniform(k1, (acc_size, fc_in), jnp.float32, -kfc, kfc)
    params["fc_b"] = jax.random.uniform(k2, (acc_size,), jnp.float32, -kfc, kfc)
    return params


# ----------------------------------------------------------------------------
# Pure-JAX reference for correctness checking (PyTorch semantics).
# ----------------------------------------------------------------------------
def _lstm_ref(x_tbd, w_ih, w_hh, b_ih, b_hh):
    B = x_tbd.shape[1]
    H = w_hh.shape[1]

    def step(carry, x_t):
        h, c = carry
        gates = x_t @ w_ih.T + h @ w_hh.T + b_ih + b_hh
        i, f, g, o = jnp.split(gates, 4, axis=-1)
        c = jax.nn.sigmoid(f) * c + jax.nn.sigmoid(i) * jnp.tanh(g)
        h = jax.nn.sigmoid(o) * jnp.tanh(c)
        return (h, c), h

    init = (jnp.zeros((B, H), jnp.float32), jnp.zeros((B, H), jnp.float32))
    _, ys = jax.lax.scan(step, init, x_tbd)
    return ys


def rnn_forward_ref(params, x, acc_size):
    y_acc = jnp.transpose(x[:, :, :acc_size], (1, 0, 2))
    y_mel = jnp.transpose(x[:, :, acc_size:], (1, 0, 2))
    for p in params["mel"]:
        y_mel = _lstm_ref(y_mel, p["w_ih"], p["w_hh"], p["b_ih"], p["b_hh"])
    for p in params["acc"]:
        y_acc = _lstm_ref(y_acc, p["w_ih"], p["w_hh"], p["b_ih"], p["b_hh"])
    feat = jnp.concatenate([y_acc[-1], y_mel[-1]], axis=1)
    return jax.nn.sigmoid(feat @ params["fc_w"].T + params["fc_b"].reshape(-1))


if __name__ == "__main__":
    # layers = ([mel hidden sizes], [acc hidden sizes], acc_size)
    layers = ([32, 32], [32, 32], 16)
    acc_size = layers[2]
    B, T = 2, 8
    D_in = acc_size + 88  # 104

    key = jax.random.PRNGKey(0)
    kp, kx = jax.random.split(key)
    params = init_params(kp, layers)
    kparams = prepare_kernel_params(params)          # one-time weight prep
    x = jax.random.normal(kx, (B, T, D_in), jnp.float32)

    fwd = jax.jit(rnn_forward, static_argnames=("acc_size", "apply_sigmoid"))
    out = jax.block_until_ready(fwd(kparams, x, acc_size=acc_size))

    ref = jax.block_until_ready(rnn_forward_ref(params, x, acc_size))
    assert out.shape == (B, acc_size), out.shape
    assert jnp.allclose(out, ref, rtol=1e-4, atol=1e-4), "mismatch vs JAX reference"

    print("KERNEL_OK")
</pallas_src>

<mosaic_0001>
module attributes {stable_mosaic.version = 11 : i64} {
  func.func @kernel(%arg0: i32, %arg1: memref<64x16xf32, #tpu.memory_space<vmem>>, %arg2: memref<64x88xf32, #tpu.memory_space<vmem>>, %arg3: memref<16x128xf32, #tpu.memory_space<vmem>>, %arg4: memref<32x128xf32, #tpu.memory_space<vmem>>, %arg5: memref<1x128xf32, #tpu.memory_space<vmem>>, %arg6: memref<32x128xf32, #tpu.memory_space<vmem>>, %arg7: memref<32x128xf32, #tpu.memory_space<vmem>>, %arg8: memref<1x128xf32, #tpu.memory_space<vmem>>, %arg9: memref<88x128xf32, #tpu.memory_space<vmem>>, %arg10: memref<32x128xf32, #tpu.memory_space<vmem>>, %arg11: memref<1x128xf32, #tpu.memory_space<vmem>>, %arg12: memref<32x128xf32, #tpu.memory_space<vmem>>, %arg13: memref<32x128xf32, #tpu.memory_space<vmem>>, %arg14: memref<1x128xf32, #tpu.memory_space<vmem>>, %arg15: memref<32x16xf32, #tpu.memory_space<vmem>>, %arg16: memref<32x16xf32, #tpu.memory_space<vmem>>, %arg17: memref<1x16xf32, #tpu.memory_space<vmem>>, %arg18: memref<8x16xf32, #tpu.memory_space<vmem>>) attributes {dimension_semantics = [#tpu.dimension_semantics<arbitrary>], iteration_bounds = array<i64: 1>, scalar_prefetch = 0 : i64, scratch_operands = 0 : i64, tpu.core_type = #tpu.core_type<tc>, window_params = [{pipeline_mode = #tpu.pipeline_mode<synchronous>, transform_indices = @transform_0, window_bounds = array<i64: 64, 16>}, {pipeline_mode = #tpu.pipeline_mode<synchronous>, transform_indices = @transform_1, window_bounds = array<i64: 64, 88>}, {pipeline_mode = #tpu.pipeline_mode<synchronous>, transform_indices = @transform_2, window_bounds = array<i64: 16, 128>}, {pipeline_mode = #tpu.pipeline_mode<synchronous>, transform_indices = @transform_3, window_bounds = array<i64: 32, 128>}, {pipeline_mode = #tpu.pipeline_mode<synchronous>, transform_indices = @transform_4, window_bounds = array<i64: 1, 128>}, {pipeline_mode = #tpu.pipeline_mode<synchronous>, transform_indices = @transform_5, window_bounds = array<i64: 32, 128>}, {pipeline_mode = #tpu.pipeline_mode<synchronous>, transform_indices = @transform_6, window_bounds = array<i64: 32, 128>}, {pipeline_mode = #tpu.pipeline_mode<synchronous>, transform_indices = @transform_7, window_bounds = array<i64: 1, 128>}, {pipeline_mode = #tpu.pipeline_mode<synchronous>, transform_indices = @transform_8, window_bounds = array<i64: 88, 128>}, {pipeline_mode = #tpu.pipeline_mode<synchronous>, transform_indices = @transform_9, window_bounds = array<i64: 32, 128>}, {pipeline_mode = #tpu.pipeline_mode<synchronous>, transform_indices = @transform_10, window_bounds = array<i64: 1, 128>}, {pipeline_mode = #tpu.pipeline_mode<synchronous>, transform_indices = @transform_11, window_bounds = array<i64: 32, 128>}, {pipeline_mode = #tpu.pipeline_mode<synchronous>, transform_indices = @transform_12, window_bounds = array<i64: 32, 128>}, {pipeline_mode = #tpu.pipeline_mode<synchronous>, transform_indices = @transform_13, window_bounds = array<i64: 1, 128>}, {pipeline_mode = #tpu.pipeline_mode<synchronous>, transform_indices = @transform_14, window_bounds = array<i64: 32, 16>}, {pipeline_mode = #tpu.pipeline_mode<synchronous>, transform_indices = @transform_15, window_bounds = array<i64: 32, 16>}, {pipeline_mode = #tpu.pipeline_mode<synchronous>, transform_indices = @transform_16, window_bounds = array<i64: 1, 16>}, {pipeline_mode = #tpu.pipeline_mode<synchronous>, transform_indices = @transform_17, window_bounds = array<i64: 8, 16>}]} {
    %c0 = arith.constant 0 : index
    %c0_0 = arith.constant 0 : index
    %0 = vector.load %arg1[%c0, %c0_0] : memref<64x16xf32, #tpu.memory_space<vmem>>, vector<64x16xf32>
    %c0_1 = arith.constant 0 : index
    %c0_2 = arith.constant 0 : index
    %1 = vector.load %arg3[%c0_1, %c0_2] : memref<16x128xf32, #tpu.memory_space<vmem>>, vector<16x128xf32>
    %c0_3 = arith.constant 0 : index
    %c0_4 = arith.constant 0 : index
    %2 = vector.load %arg4[%c0_3, %c0_4] : memref<32x128xf32, #tpu.memory_space<vmem>>, vector<32x128xf32>
    %c0_5 = arith.constant 0 : index
    %c0_6 = arith.constant 0 : index
    %3 = vector.load %arg5[%c0_5, %c0_6] : memref<1x128xf32, #tpu.memory_space<vmem>>, vector<1x128xf32>
    %cst = arith.constant dense<0.000000e+00> : vector<64x128xf32>
    %4 = tpu.matmul %0, %1, %cst {dimension_numbers = #tpu.dot_dimension_numbers<[1], [0], [0], [1], [0, 0, 1, 1], [], []>} : vector<64x16xf32>, vector<16x128xf32>, vector<64x128xf32> -> vector<64x128xf32>
    %5 = vector.broadcast %3 : vector<1x128xf32> to vector<64x128xf32>
    %6 = arith.addf %4, %5 : vector<64x128xf32>
    %cst_7 = arith.constant 0.000000e+00 : f32
    %7 = vector.broadcast %cst_7 : f32 to vector<8x32xf32>
    %cst_8 = arith.constant 0.000000e+00 : f32
    %8 = vector.broadcast %cst_8 : f32 to vector<8x32xf32>
    %9 = vector.extract_strided_slice %6 {offsets = [0, 0], sizes = [8, 128], strides = [1, 1]} : vector<64x128xf32> to vector<8x128xf32>
    %cst_9 = arith.constant dense<0.000000e+00> : vector<8x128xf32>
    %10 = tpu.matmul %7, %2, %cst_9 {dimension_numbers = #tpu.dot_dimension_numbers<[1], [0], [0], [1], [0, 0, 1, 1], [], []>} : vector<8x32xf32>, vector<32x128xf32>, vector<8x128xf32> -> vector<8x128xf32>
    %11 = arith.addf %9, %10 : vector<8x128xf32>
    %12 = arith.negf %11 : vector<8x128xf32>
    %13 = math.exp %12 : vector<8x128xf32>
    %cst_10 = arith.constant 1.000000e+00 : f32
    %14 = vector.broadcast %cst_10 : f32 to vector<8x128xf32>
    %15 = arith.addf %14, %13 : vector<8x128xf32>
    %16 = arith.divf %14, %15 : vector<8x128xf32>
    %17 = vector.extract_strided_slice %16 {offsets = [0, 0], sizes = [8, 32], strides = [1, 1]} : vector<8x128xf32> to vector<8x32xf32>
    %18 = vector.extract_strided_slice %16 {offsets = [0, 32], sizes = [8, 32], strides = [1, 1]} : vector<8x128xf32> to vector<8x32xf32>
    %19 = vector.extract_strided_slice %16 {offsets = [0, 64], sizes = [8, 32], strides = [1, 1]} : vector<8x128xf32> to vector<8x32xf32>
    %20 = vector.extract_strided_slice %16 {offsets = [0, 96], sizes = [8, 32], strides = [1, 1]} : vector<8x128xf32> to vector<8x32xf32>
    %21 = arith.mulf %18, %8 : vector<8x32xf32>
    %cst_11 = arith.constant 2.000000e+00 : f32
    %22 = vector.broadcast %cst_11 : f32 to vector<8x32xf32>
    %23 = arith.mulf %22, %20 : vector<8x32xf32>
    %cst_12 = arith.constant 1.000000e+00 : f32
    %24 = vector.broadcast %cst_12 : f32 to vector<8x32xf32>
    %25 = arith.subf %23, %24 : vector<8x32xf32>
    %26 = arith.mulf %17, %25 : vector<8x32xf32>
    %27 = arith.addf %21, %26 : vector<8x32xf32>
    %28 = math.tanh %27 : vector<8x32xf32>
    %29 = arith.mulf %19, %28 : vector<8x32xf32>
    %30 = vector.extract_strided_slice %6 {offsets = [8, 0], sizes = [8, 128], strides = [1, 1]} : vector<64x128xf32> to vector<8x128xf32>
    %cst_13 = arith.constant dense<0.000000e+00> : vector<8x128xf32>
    %31 = tpu.matmul %29, %2, %cst_13 {dimension_numbers = #tpu.dot_dimension_numbers<[1], [0], [0], [1], [0, 0, 1, 1], [], []>} : vector<8x32xf32>, vector<32x128xf32>, vector<8x128xf32> -> vector<8x128xf32>
    %32 = arith.addf %30, %31 : vector<8x128xf32>
    %33 = arith.negf %32 : vector<8x128xf32>
    %34 = math.exp %33 : vector<8x128xf32>
    %cst_14 = arith.constant 1.000000e+00 : f32
    %35 = vector.broadcast %cst_14 : f32 to vector<8x128xf32>
    %36 = arith.addf %35, %34 : vector<8x128xf32>
    %37 = arith.divf %35, %36 : vector<8x128xf32>
    %38 = vector.extract_strided_slice %37 {offsets = [0, 0], sizes = [8, 32], strides = [1, 1]} : vector<8x128xf32> to vector<8x32xf32>
    %39 = vector.extract_strided_slice %37 {offsets = [0, 32], sizes = [8, 32], strides = [1, 1]} : vector<8x128xf32> to vector<8x32xf32>
    %40 = vector.extract_strided_slice %37 {offsets = [0, 64], sizes = [8, 32], strides = [1, 1]} : vector<8x128xf32> to vector<8x32xf32>
    %41 = vector.extract_strided_slice %37 {offsets = [0, 96], sizes = [8, 32], strides = [1, 1]} : vector<8x128xf32> to vector<8x32xf32>
    %42 = arith.mulf %39, %27 : vector<8x32xf32>
    %cst_15 = arith.constant 2.000000e+00 : f32
    %43 = vector.broadcast %cst_15 : f32 to vector<8x32xf32>
    %44 = arith.mulf %43, %41 : vector<8x32xf32>
    %cst_16 = arith.constant 1.000000e+00 : f32
    %45 = vector.broadcast %cst_16 : f32 to vector<8x32xf32>
    %46 = arith.subf %44, %45 : vector<8x32xf32>
    %47 = arith.mulf %38, %46 : vector<8x32xf32>
    %48 = arith.addf %42, %47 : vector<8x32xf32>
    %49 = math.tanh %48 : vector<8x32xf32>
    %50 = arith.mulf %40, %49 : vector<8x32xf32>
    %51 = vector.extract_strided_slice %6 {offsets = [16, 0], sizes = [8, 128], strides = [1, 1]} : vector<64x128xf32> to vector<8x128xf32>
    %cst_17 = arith.constant dense<0.000000e+00> : vector<8x128xf32>
    %52 = tpu.matmul %50, %2, %cst_17 {dimension_numbers = #tpu.dot_dimension_numbers<[1], [0], [0], [1], [0, 0, 1, 1], [], []>} : vector<8x32xf32>, vector<32x128xf32>, vector<8x128xf32> -> vector<8x128xf32>
    %53 = arith.addf %51, %52 : vector<8x128xf32>
    %54 = arith.negf %53 : vector<8x128xf32>
    %55 = math.exp %54 : vector<8x128xf32>
    %cst_18 = arith.constant 1.000000e+00 : f32
    %56 = vector.broadcast %cst_18 : f32 to vector<8x128xf32>
    %57 = arith.addf %56, %55 : vector<8x128xf32>
    %58 = arith.divf %56, %57 : vector<8x128xf32>
    %59 = vector.extract_strided_slice %58 {offsets = [0, 0], sizes = [8, 32], strides = [1, 1]} : vector<8x128xf32> to vector<8x32xf32>
    %60 = vector.extract_strided_slice %58 {offsets = [0, 32], sizes = [8, 32], strides = [1, 1]} : vector<8x128xf32> to vector<8x32xf32>
    %61 = vector.extract_strided_slice %58 {offsets = [0, 64], sizes = [8, 32], strides = [1, 1]} : vector<8x128xf32> to vector<8x32xf32>
    %62 = vector.extract_strided_slice %58 {offsets = [0, 96], sizes = [8, 32], strides = [1, 1]} : vector<8x128xf32> to vector<8x32xf32>
    %63 = arith.mulf %60, %48 : vector<8x32xf32>
    %cst_19 = arith.constant 2.000000e+00 : f32
    %64 = vector.broadcast %cst_19 : f32 to vector<8x32xf32>
    %65 = arith.mulf %64, %62 : vector<8x32xf32>
    %cst_20 = arith.constant 1.000000e+00 : f32
    %66 = vector.broadcast %cst_20 : f32 to vector<8x32xf32>
    %67 = arith.subf %65, %66 : vector<8x32xf32>
    %68 = arith.mulf %59, %67 : vector<8x32xf32>
    %69 = arith.addf %63, %68 : vector<8x32xf32>
    %70 = math.tanh %69 : vector<8x32xf32>
    %71 = arith.mulf %61, %70 : vector<8x32xf32>
    %72 = vector.extract_strided_slice %6 {offsets = [24, 0], sizes = [8, 128], strides = [1, 1]} : vector<64x128xf32> to vector<8x128xf32>
    %cst_21 = arith.constant dense<0.000000e+00> : vector<8x128xf32>
    %73 = tpu.matmul %71, %2, %cst_21 {dimension_numbers = #tpu.dot_dimension_numbers<[1], [0], [0], [1], [0, 0, 1, 1], [], []>} : vector<8x32xf32>, vector<32x128xf32>, vector<8x128xf32> -> vector<8x128xf32>
    %74 = arith.addf %72, %73 : vector<8x128xf32>
    %75 = arith.negf %74 : vector<8x128xf32>
    %76 = math.exp %75 : vector<8x128xf32>
    %cst_22 = arith.constant 1.000000e+00 : f32
    %77 = vector.broadcast %cst_22 : f32 to vector<8x128xf32>
    %78 = arith.addf %77, %76 : vector<8x128xf32>
    %79 = arith.divf %77, %78 : vector<8x128xf32>
    %80 = vector.extract_strided_slice %79 {offsets = [0, 0], sizes = [8, 32], strides = [1, 1]} : vector<8x128xf32> to vector<8x32xf32>
    %81 = vector.extract_strided_slice %79 {offsets = [0, 32], sizes = [8, 32], strides = [1, 1]} : vector<8x128xf32> to vector<8x32xf32>
    %82 = vector.extract_strided_slice %79 {offsets = [0, 64], sizes = [8, 32], strides = [1, 1]} : vector<8x128xf32> to vector<8x32xf32>
    %83 = vector.extract_strided_slice %79 {offsets = [0, 96], sizes = [8, 32], strides = [1, 1]} : vector<8x128xf32> to vector<8x32xf32>
    %84 = arith.mulf %81, %69 : vector<8x32xf32>
    %cst_23 = arith.constant 2.000000e+00 : f32
    %85 = vector.broadcast %cst_23 : f32 to vector<8x32xf32>
    %86 = arith.mulf %85, %83 : vector<8x32xf32>
    %cst_24 = arith.constant 1.000000e+00 : f32
    %87 = vector.broadcast %cst_24 : f32 to vector<8x32xf32>
    %88 = arith.subf %86, %87 : vector<8x32xf32>
    %89 = arith.mulf %80, %88 : vector<8x32xf32>
    %90 = arith.addf %84, %89 : vector<8x32xf32>
    %91 = math.tanh %90 : vector<8x32xf32>
    %92 = arith.mulf %82, %91 : vector<8x32xf32>
    %93 = vector.extract_strided_slice %6 {offsets = [32, 0], sizes = [8, 128], strides = [1, 1]} : vector<64x128xf32> to vector<8x128xf32>
    %cst_25 = arith.constant dense<0.000000e+00> : vector<8x128xf32>
    %94 = tpu.matmul %92, %2, %cst_25 {dimension_numbers = #tpu.dot_dimension_numbers<[1], [0], [0], [1], [0, 0, 1, 1], [], []>} : vector<8x32xf32>, vector<32x128xf32>, vector<8x128xf32> -> vector<8x128xf32>
    %95 = arith.addf %93, %94 : vector<8x128xf32>
    %96 = arith.negf %95 : vector<8x128xf32>
    %97 = math.exp %96 : vector<8x128xf32>
    %cst_26 = arith.constant 1.000000e+00 : f32
    %98 = vector.broadcast %cst_26 : f32 to vector<8x128xf32>
    %99 = arith.addf %98, %97 : vector<8x128xf32>
    %100 = arith.divf %98, %99 : vector<8x128xf32>
    %101 = vector.extract_strided_slice %100 {offsets = [0, 0], sizes = [8, 32], strides = [1, 1]} : vector<8x128xf32> to vector<8x32xf32>
    %102 = vector.extract_strided_slice %100 {offsets = [0, 32], sizes = [8, 32], strides = [1, 1]} : vector<8x128xf32> to vector<8x32xf32>
    %103 = vector.extract_strided_slice %100 {offsets = [0, 64], sizes = [8, 32], strides = [1, 1]} : vector<8x128xf32> to vector<8x32xf32>
    %104 = vector.extract_strided_slice %100 {offsets = [0, 96], sizes = [8, 32], strides = [1, 1]} : vector<8x128xf32> to vector<8x32xf32>
    %105 = arith.mulf %102, %90 : vector<8x32xf32>
    %cst_27 = arith.constant 2.000000e+00 : f32
    %106 = vector.broadcast %cst_27 : f32 to vector<8x32xf32>
    %107 = arith.mulf %106, %104 : vector<8x32xf32>
    %cst_28 = arith.constant 1.000000e+00 : f32
    %108 = vector.broadcast %cst_28 : f32 to vector<8x32xf32>
    %109 = arith.subf %107, %108 : vector<8x32xf32>
    %110 = arith.mulf %101, %109 : vector<8x32xf32>
    %111 = arith.addf %105, %110 : vector<8x32xf32>
    %112 = math.tanh %111 : vector<8x32xf32>
    %113 = arith.mulf %103, %112 : vector<8x32xf32>
    %114 = vector.extract_strided_slice %6 {offsets = [40, 0], sizes = [8, 128], strides = [1, 1]} : vector<64x128xf32> to vector<8x128xf32>
    %cst_29 = arith.constant dense<0.000000e+00> : vector<8x128xf32>
    %115 = tpu.matmul %113, %2, %cst_29 {dimension_numbers = #tpu.dot_dimension_numbers<[1], [0], [0], [1], [0, 0, 1, 1], [], []>} : vector<8x32xf32>, vector<32x128xf32>, vector<8x128xf32> -> vector<8x128xf32>
    %116 = arith.addf %114, %115 : vector<8x128xf32>
    %117 = arith.negf %116 : vector<8x128xf32>
    %118 = math.exp %117 : vector<8x128xf32>
    %cst_30 = arith.constant 1.000000e+00 : f32
    %119 = vector.broadcast %cst_30 : f32 to vector<8x128xf32>
    %120 = arith.addf %119, %118 : vector<8x128xf32>
    %121 = arith.divf %119, %120 : vector<8x128xf32>
    %122 = vector.extract_strided_slice %121 {offsets = [0, 0], sizes = [8, 32], strides = [1, 1]} : vector<8x128xf32> to vector<8x32xf32>
    %123 = vector.extract_strided_slice %121 {offsets = [0, 32], sizes = [8, 32], strides = [1, 1]} : vector<8x128xf32> to vector<8x32xf32>
    %124 = vector.extract_strided_slice %121 {offsets = [0, 64], sizes = [8, 32], strides = [1, 1]} : vector<8x128xf32> to vector<8x32xf32>
    %125 = vector.extract_strided_slice %121 {offsets = [0, 96], sizes = [8, 32], strides = [1, 1]} : vector<8x128xf32> to vector<8x32xf32>
    %126 = arith.mulf %123, %111 : vector<8x32xf32>
    %cst_31 = arith.constant 2.000000e+00 : f32
    %127 = vector.broadcast %cst_31 : f32 to vector<8x32xf32>
    %128 = arith.mulf %127, %125 : vector<8x32xf32>
    %cst_32 = arith.constant 1.000000e+00 : f32
    %129 = vector.broadcast %cst_32 : f32 to vector<8x32xf32>
    %130 = arith.subf %128, %129 : vector<8x32xf32>
    %131 = arith.mulf %122, %130 : vector<8x32xf32>
    %132 = arith.addf %126, %131 : vector<8x32xf32>
    %133 = math.tanh %132 : vector<8x32xf32>
    %134 = arith.mulf %124, %133 : vector<8x32xf32>
    %135 = vector.extract_strided_slice %6 {offsets = [48, 0], sizes = [8, 128], strides = [1, 1]} : vector<64x128xf32> to vector<8x128xf32>
    %cst_33 = arith.constant dense<0.000000e+00> : vector<8x128xf32>
    %136 = tpu.matmul %134, %2, %cst_33 {dimension_numbers = #tpu.dot_dimension_numbers<[1], [0], [0], [1], [0, 0, 1, 1], [], []>} : vector<8x32xf32>, vector<32x128xf32>, vector<8x128xf32> -> vector<8x128xf32>
    %137 = arith.addf %135, %136 : vector<8x128xf32>
    %138 = arith.negf %137 : vector<8x128xf32>
    %139 = math.exp %138 : vector<8x128xf32>
    %cst_34 = arith.constant 1.000000e+00 : f32
    %140 = vector.broadcast %cst_34 : f32 to vector<8x128xf32>
    %141 = arith.addf %140, %139 : vector<8x128xf32>
    %142 = arith.divf %140, %141 : vector<8x128xf32>
    %143 = vector.extract_strided_slice %142 {offsets = [0, 0], sizes = [8, 32], strides = [1, 1]} : vector<8x128xf32> to vector<8x32xf32>
    %144 = vector.extract_strided_slice %142 {offsets = [0, 32], sizes = [8, 32], strides = [1, 1]} : vector<8x128xf32> to vector<8x32xf32>
    %145 = vector.extract_strided_slice %142 {offsets = [0, 64], sizes = [8, 32], strides = [1, 1]} : vector<8x128xf32> to vector<8x32xf32>
    %146 = vector.extract_strided_slice %142 {offsets = [0, 96], sizes = [8, 32], strides = [1, 1]} : vector<8x128xf32> to vector<8x32xf32>
    %147 = arith.mulf %144, %132 : vector<8x32xf32>
    %cst_35 = arith.constant 2.000000e+00 : f32
    %148 = vector.broadcast %cst_35 : f32 to vector<8x32xf32>
    %149 = arith.mulf %148, %146 : vector<8x32xf32>
    %cst_36 = arith.constant 1.000000e+00 : f32
    %150 = vector.broadcast %cst_36 : f32 to vector<8x32xf32>
    %151 = arith.subf %149, %150 : vector<8x32xf32>
    %152 = arith.mulf %143, %151 : vector<8x32xf32>
    %153 = arith.addf %147, %152 : vector<8x32xf32>
    %154 = math.tanh %153 : vector<8x32xf32>
    %155 = arith.mulf %145, %154 : vector<8x32xf32>
    %156 = vector.extract_strided_slice %6 {offsets = [56, 0], sizes = [8, 128], strides = [1, 1]} : vector<64x128xf32> to vector<8x128xf32>
    %cst_37 = arith.constant dense<0.000000e+00> : vector<8x128xf32>
    %157 = tpu.matmul %155, %2, %cst_37 {dimension_numbers = #tpu.dot_dimension_numbers<[1], [0], [0], [1], [0, 0, 1, 1], [], []>} : vector<8x32xf32>, vector<32x128xf32>, vector<8x128xf32> -> vector<8x128xf32>
    %158 = arith.addf %156, %157 : vector<8x128xf32>
    %159 = arith.negf %158 : vector<8x128xf32>
    %160 = math.exp %159 : vector<8x128xf32>
    %cst_38 = arith.constant 1.000000e+00 : f32
    %161 = vector.broadcast %cst_38 : f32 to vector<8x128xf32>
    %162 = arith.addf %161, %160 : vector<8x128xf32>
    %163 = arith.divf %161, %162 : vector<8x128xf32>
    %164 = vector.extract_strided_slice %163 {offsets = [0, 0], sizes = [8, 32], strides = [1, 1]} : vector<8x128xf32> to vector<8x32xf32>
    %165 = vector.extract_strided_slice %163 {offsets = [0, 32], sizes = [8, 32], strides = [1, 1]} : vector<8x128xf32> to vector<8x32xf32>
    %166 = vector.extract_strided_slice %163 {offsets = [0, 64], sizes = [8, 32], strides = [1, 1]} : vector<8x128xf32> to vector<8x32xf32>
    %167 = vector.extract_strided_slice %163 {offsets = [0, 96], sizes = [8, 32], strides = [1, 1]} : vector<8x128xf32> to vector<8x32xf32>
    %168 = arith.mulf %165, %153 : vector<8x32xf32>
    %cst_39 = arith.constant 2.000000e+00 : f32
    %169 = vector.broadcast %cst_39 : f32 to vector<8x32xf32>
    %170 = arith.mulf %169, %167 : vector<8x32xf32>
    %cst_40 = arith.constant 1.000000e+00 : f32
    %171 = vector.broadcast %cst_40 : f32 to vector<8x32xf32>
    %172 = arith.subf %170, %171 : vector<8x32xf32>
    %173 = arith.mulf %164, %172 : vector<8x32xf32>
    %174 = arith.addf %168, %173 : vector<8x32xf32>
    %175 = math.tanh %174 : vector<8x32xf32>
    %176 = arith.mulf %166, %175 : vector<8x32xf32>
    %177 = tpu.concatenate %29, %50, %71, %92, %113, %134, %155, %176 in 0 : vector<8x32xf32>, vector<8x32xf32>, vector<8x32xf32>, vector<8x32xf32>, vector<8x32xf32>, vector<8x32xf32>, vector<8x32xf32>, vector<8x32xf32> -> vector<64x32xf32>
    %c0_41 = arith.constant 0 : index
    %c0_42 = arith.constant 0 : index
    %178 = vector.load %arg6[%c0_41, %c0_42] : memref<32x128xf32, #tpu.memory_space<vmem>>, vector<32x128xf32>
    %c0_43 = arith.constant 0 : index
    %c0_44 = arith.constant 0 : index
    %179 = vector.load %arg7[%c0_43, %c0_44] : memref<32x128xf32, #tpu.memory_space<vmem>>, vector<32x128xf32>
    %c0_45 = arith.constant 0 : index
    %c0_46 = arith.constant 0 : index
    %180 = vector.load %arg8[%c0_45, %c0_46] : memref<1x128xf32, #tpu.memory_space<vmem>>, vector<1x128xf32>
    %cst_47 = arith.constant dense<0.000000e+00> : vector<64x128xf32>
    %181 = tpu.matmul %177, %178, %cst_47 {dimension_numbers = #tpu.dot_dimension_numbers<[1], [0], [0], [1], [0, 0, 1, 1], [], []>} : vector<64x32xf32>, vector<32x128xf32>, vector<64x128xf32> -> vector<64x128xf32>
    %182 = vector.broadcast %180 : vector<1x128xf32> to vector<64x128xf32>
    %183 = arith.addf %181, %182 : vector<64x128xf32>
    %cst_48 = arith.constant 0.000000e+00 : f32
    %184 = vector.broadcast %cst_48 : f32 to vector<8x32xf32>
    %cst_49 = arith.constant 0.000000e+00 : f32
    %185 = vector.broadcast %cst_49 : f32 to vector<8x32xf32>
    %186 = vector.extract_strided_slice %183 {offsets = [0, 0], sizes = [8, 128], strides = [1, 1]} : vector<64x128xf32> to vector<8x128xf32>
    %cst_50 = arith.constant dense<0.000000e+00> : vector<8x128xf32>
    %187 = tpu.matmul %184, %179, %cst_50 {dimension_numbers = #tpu.dot_dimension_numbers<[1], [0], [0], [1], [0, 0, 1, 1], [], []>} : vector<8x32xf32>, vector<32x128xf32>, vector<8x128xf32> -> vector<8x128xf32>
    %188 = arith.addf %186, %187 : vector<8x128xf32>
    %189 = arith.negf %188 : vector<8x128xf32>
    %190 = math.exp %189 : vector<8x128xf32>
    %cst_51 = arith.constant 1.000000e+00 : f32
    %191 = vector.broadcast %cst_51 : f32 to vector<8x128xf32>
    %192 = arith.addf %191, %190 : vector<8x128xf32>
    %193 = arith.divf %191, %192 : vector<8x128xf32>
    %194 = vector.extract_strided_slice %193 {offsets = [0, 0], sizes = [8, 32], strides = [1, 1]} : vector<8x128xf32> to vector<8x32xf32>
    %195 = vector.extract_strided_slice %193 {offsets = [0, 32], sizes = [8, 32], strides = [1, 1]} : vector<8x128xf32> to vector<8x32xf32>
    %196 = vector.extract_strided_slice %193 {offsets = [0, 64], sizes = [8, 32], strides = [1, 1]} : vector<8x128xf32> to vector<8x32xf32>
    %197 = vector.extract_strided_slice %193 {offsets = [0, 96], sizes = [8, 32], strides = [1, 1]} : vector<8x128xf32> to vector<8x32xf32>
    %198 = arith.mulf %195, %185 : vector<8x32xf32>
    %cst_52 = arith.constant 2.000000e+00 : f32
    %199 = vector.broadcast %cst_52 : f32 to vector<8x32xf32>
    %200 = arith.mulf %199, %197 : vector<8x32xf32>
    %cst_53 = arith.constant 1.000000e+00 : f32
    %201 = vector.broadcast %cst_53 : f32 to vector<8x32xf32>
    %202 = arith.subf %200, %201 : vector<8x32xf32>
    %203 = arith.mulf %194, %202 : vector<8x32xf32>
    %204 = arith.addf %198, %203 : vector<8x32xf32>
    %205 = math.tanh %204 : vector<8x32xf32>
    %206 = arith.mulf %196, %205 : vector<8x32xf32>
    %207 = vector.extract_strided_slice %183 {offsets = [8, 0], sizes = [8, 128], strides = [1, 1]} : vector<64x128xf32> to vector<8x128xf32>
    %cst_54 = arith.constant dense<0.000000e+00> : vector<8x128xf32>
    %208 = tpu.matmul %206, %179, %cst_54 {dimension_numbers = #tpu.dot_dimension_numbers<[1], [0], [0], [1], [0, 0, 1, 1], [], []>} : vector<8x32xf32>, vector<32x128xf32>, vector<8x128xf32> -> vector<8x128xf32>
    %209 = arith.addf %207, %208 : vector<8x128xf32>
    %210 = arith.negf %209 : vector<8x128xf32>
    %211 = math.exp %210 : vector<8x128xf32>
    %cst_55 = arith.constant 1.000000e+00 : f32
    %212 = vector.broadcast %cst_55 : f32 to vector<8x128xf32>
    %213 = arith.addf %212, %211 : vector<8x128xf32>
    %214 = arith.divf %212, %213 : vector<8x128xf32>
    %215 = vector.extract_strided_slice %214 {offsets = [0, 0], sizes = [8, 32], strides = [1, 1]} : vector<8x128xf32> to vector<8x32xf32>
    %216 = vector.extract_strided_slice %214 {offsets = [0, 32], sizes = [8, 32], strides = [1, 1]} : vector<8x128xf32> to vector<8x32xf32>
    %217 = vector.extract_strided_slice %214 {offsets = [0, 64], sizes = [8, 32], strides = [1, 1]} : vector<8x128xf32> to vector<8x32xf32>
    %218 = vector.extract_strided_slice %214 {offsets = [0, 96], sizes = [8, 32], strides = [1, 1]} : vector<8x128xf32> to vector<8x32xf32>
    %219 = arith.mulf %216, %204 : vector<8x32xf32>
    %cst_56 = arith.constant 2.000000e+00 : f32
    %220 = vector.broadcast %cst_56 : f32 to vector<8x32xf32>
    %221 = arith.mulf %220, %218 : vector<8x32xf32>
    %cst_57 = arith.constant 1.000000e+00 : f32
    %222 = vector.broadcast %cst_57 : f32 to vector<8x32xf32>
    %223 = arith.subf %221, %222 : vector<8x32xf32>
    %224 = arith.mulf %215, %223 : vector<8x32xf32>
    %225 = arith.addf %219, %224 : vector<8x32xf32>
    %226 = math.tanh %225 : vector<8x32xf32>
    %227 = arith.mulf %217, %226 : vector<8x32xf32>
    %228 = vector.extract_strided_slice %183 {offsets = [16, 0], sizes = [8, 128], strides = [1, 1]} : vector<64x128xf32> to vector<8x128xf32>
    %cst_58 = arith.constant dense<0.000000e+00> : vector<8x128xf32>
    %229 = tpu.matmul %227, %179, %cst_58 {dimension_numbers = #tpu.dot_dimension_numbers<[1], [0], [0], [1], [0, 0, 1, 1], [], []>} : vector<8x32xf32>, vector<32x128xf32>, vector<8x128xf32> -> vector<8x128xf32>
    %230 = arith.addf %228, %229 : vector<8x128xf32>
    %231 = arith.negf %230 : vector<8x128xf32>
    %232 = math.exp %231 : vector<8x128xf32>
    %cst_59 = arith.constant 1.000000e+00 : f32
    %233 = vector.broadcast %cst_59 : f32 to vector<8x128xf32>
    %234 = arith.addf %233, %232 : vector<8x128xf32>
    %235 = arith.divf %233, %234 : vector<8x128xf32>
    %236 = vector.extract_strided_slice %235 {offsets = [0, 0], sizes = [8, 32], strides = [1, 1]} : vector<8x128xf32> to vector<8x32xf32>
    %237 = vector.extract_strided_slice %235 {offsets = [0, 32], sizes = [8, 32], strides = [1, 1]} : vector<8x128xf32> to vector<8x32xf32>
    %238 = vector.extract_strided_slice %235 {offsets = [0, 64], sizes = [8, 32], strides = [1, 1]} : vector<8x128xf32> to vector<8x32xf32>
    %239 = vector.extract_strided_slice %235 {offsets = [0, 96], sizes = [8, 32], strides = [1, 1]} : vector<8x128xf32> to vector<8x32xf32>
    %240 = arith.mulf %237, %225 : vector<8x32xf32>
    %cst_60 = arith.constant 2.000000e+00 : f32
    %241 = vector.broadcast %cst_60 : f32 to vector<8x32xf32>
    %242 = arith.mulf %241, %239 : vector<8x32xf32>
    %cst_61 = arith.constant 1.000000e+00 : f32
    %243 = vector.broadcast %cst_61 : f32 to vector<8x32xf32>
    %244 = arith.subf %242, %243 : vector<8x32xf32>
    %245 = arith.mulf %236, %244 : vector<8x32xf32>
    %246 = arith.addf %240, %245 : vector<8x32xf32>
    %247 = math.tanh %246 : vector<8x32xf32>
    %248 = arith.mulf %238, %247 : vector<8x32xf32>
    %249 = vector.extract_strided_slice %183 {offsets = [24, 0], sizes = [8, 128], strides = [1, 1]} : vector<64x128xf32> to vector<8x128xf32>
    %cst_62 = arith.constant dense<0.000000e+00> : vector<8x128xf32>
    %250 = tpu.matmul %248, %179, %cst_62 {dimension_numbers = #tpu.dot_dimension_numbers<[1], [0], [0], [1], [0, 0, 1, 1], [], []>} : vector<8x32xf32>, vector<32x128xf32>, vector<8x128xf32> -> vector<8x128xf32>
    %251 = arith.addf %249, %250 : vector<8x128xf32>
    %252 = arith.negf %251 : vector<8x128xf32>
    %253 = math.exp %252 : vector<8x128xf32>
    %cst_63 = arith.constant 1.000000e+00 : f32
    %254 = vector.broadcast %cst_63 : f32 to vector<8x128xf32>
    %255 = arith.addf %254, %253 : vector<8x128xf32>
    %256 = arith.divf %254, %255 : vector<8x128xf32>
    %257 = vector.extract_strided_slice %256 {offsets = [0, 0], sizes = [8, 32], strides = [1, 1]} : vector<8x128xf32> to vector<8x32xf32>
    %258 = vector.extract_strided_slice %256 {offsets = [0, 32], sizes = [8, 32], strides = [1, 1]} : vector<8x128xf32> to vector<8x32xf32>
    %259 = vector.extract_strided_slice %256 {offsets = [0, 64], sizes = [8, 32], strides = [1, 1]} : vector<8x128xf32> to vector<8x32xf32>
    %260 = vector.extract_strided_slice %256 {offsets = [0, 96], sizes = [8, 32], strides = [1, 1]} : vector<8x128xf32> to vector<8x32xf32>
    %261 = arith.mulf %258, %246 : vector<8x32xf32>
    %cst_64 = arith.constant 2.000000e+00 : f32
    %262 = vector.broadcast %cst_64 : f32 to vector<8x32xf32>
    %263 = arith.mulf %262, %260 : vector<8x32xf32>
    %cst_65 = arith.constant 1.000000e+00 : f32
    %264 = vector.broadcast %cst_65 : f32 to vector<8x32xf32>
    %265 = arith.subf %263, %264 : vector<8x32xf32>
    %266 = arith.mulf %257, %265 : vector<8x32xf32>
    %267 = arith.addf %261, %266 : vector<8x32xf32>
    %268 = math.tanh %267 : vector<8x32xf32>
    %269 = arith.mulf %259, %268 : vector<8x32xf32>
    %270 = vector.extract_strided_slice %183 {offsets = [32, 0], sizes = [8, 128], strides = [1, 1]} : vector<64x128xf32> to vector<8x128xf32>
    %cst_66 = arith.constant dense<0.000000e+00> : vector<8x128xf32>
    %271 = tpu.matmul %269, %179, %cst_66 {dimension_numbers = #tpu.dot_dimension_numbers<[1], [0], [0], [1], [0, 0, 1, 1], [], []>} : vector<8x32xf32>, vector<32x128xf32>, vector<8x128xf32> -> vector<8x128xf32>
    %272 = arith.addf %270, %271 : vector<8x128xf32>
    %273 = arith.negf %272 : vector<8x128xf32>
    %274 = math.exp %273 : vector<8x128xf32>
    %cst_67 = arith.constant 1.000000e+00 : f32
    %275 = vector.broadcast %cst_67 : f32 to vector<8x128xf32>
    %276 = arith.addf %275, %274 : vector<8x128xf32>
    %277 = arith.divf %275, %276 : vector<8x128xf32>
    %278 = vector.extract_strided_slice %277 {offsets = [0, 0], sizes = [8, 32], strides = [1, 1]} : vector<8x128xf32> to vector<8x32xf32>
    %279 = vector.extract_strided_slice %277 {offsets = [0, 32], sizes = [8, 32], strides = [1, 1]} : vector<8x128xf32> to vector<8x32xf32>
    %280 = vector.extract_strided_slice %277 {offsets = [0, 64], sizes = [8, 32], strides = [1, 1]} : vector<8x128xf32> to vector<8x32xf32>
    %281 = vector.extract_strided_slice %277 {offsets = [0, 96], sizes = [8, 32], strides = [1, 1]} : vector<8x128xf32> to vector<8x32xf32>
    %282 = arith.mulf %279, %267 : vector<8x32xf32>
    %cst_68 = arith.constant 2.000000e+00 : f32
    %283 = vector.broadcast %cst_68 : f32 to vector<8x32xf32>
    %284 = arith.mulf %283, %281 : vector<8x32xf32>
    %cst_69 = arith.constant 1.000000e+00 : f32
    %285 = vector.broadcast %cst_69 : f32 to vector<8x32xf32>
    %286 = arith.subf %284, %285 : vector<8x32xf32>
    %287 = arith.mulf %278, %286 : vector<8x32xf32>
    %288 = arith.addf %282, %287 : vector<8x32xf32>
    %289 = math.tanh %288 : vector<8x32xf32>
    %290 = arith.mulf %280, %289 : vector<8x32xf32>
    %291 = vector.extract_strided_slice %183 {offsets = [40, 0], sizes = [8, 128], strides = [1, 1]} : vector<64x128xf32> to vector<8x128xf32>
    %cst_70 = arith.constant dense<0.000000e+00> : vector<8x128xf32>
    %292 = tpu.matmul %290, %179, %cst_70 {dimension_numbers = #tpu.dot_dimension_numbers<[1], [0], [0], [1], [0, 0, 1, 1], [], []>} : vector<8x32xf32>, vector<32x128xf32>, vector<8x128xf32> -> vector<8x128xf32>
    %293 = arith.addf %291, %292 : vector<8x128xf32>
    %294 = arith.negf %293 : vector<8x128xf32>
    %295 = math.exp %294 : vector<8x128xf32>
    %cst_71 = arith.constant 1.000000e+00 : f32
    %296 = vector.broadcast %cst_71 : f32 to vector<8x128xf32>
    %297 = arith.addf %296, %295 : vector<8x128xf32>
    %298 = arith.divf %296, %297 : vector<8x128xf32>
    %299 = vector.extract_strided_slice %298 {offsets = [0, 0], sizes = [8, 32], strides = [1, 1]} : vector<8x128xf32> to vector<8x32xf32>
    %300 = vector.extract_strided_slice %298 {offsets = [0, 32], sizes = [8, 32], strides = [1, 1]} : vector<8x128xf32> to vector<8x32xf32>
    %301 = vector.extract_strided_slice %298 {offsets = [0, 64], sizes = [8, 32], strides = [1, 1]} : vector<8x128xf32> to vector<8x32xf32>
    %302 = vector.extract_strided_slice %298 {offsets = [0, 96], sizes = [8, 32], strides = [1, 1]} : vector<8x128xf32> to vector<8x32xf32>
    %303 = arith.mulf %300, %288 : vector<8x32xf32>
    %cst_72 = arith.constant 2.000000e+00 : f32
    %304 = vector.broadcast %cst_72 : f32 to vector<8x32xf32>
    %305 = arith.mulf %304, %302 : vector<8x32xf32>
    %cst_73 = arith.constant 1.000000e+00 : f32
    %306 = vector.broadcast %cst_73 : f32 to vector<8x32xf32>
    %307 = arith.subf %305, %306 : vector<8x32xf32>
    %308 = arith.mulf %299, %307 : vector<8x32xf32>
    %309 = arith.addf %303, %308 : vector<8x32xf32>
    %310 = math.tanh %309 : vector<8x32xf32>
    %311 = arith.mulf %301, %310 : vector<8x32xf32>
    %312 = vector.extract_strided_slice %183 {offsets = [48, 0], sizes = [8, 128], strides = [1, 1]} : vector<64x128xf32> to vector<8x128xf32>
    %cst_74 = arith.constant dense<0.000000e+00> : vector<8x128xf32>
    %313 = tpu.matmul %311, %179, %cst_74 {dimension_numbers = #tpu.dot_dimension_numbers<[1], [0], [0], [1], [0, 0, 1, 1], [], []>} : vector<8x32xf32>, vector<32x128xf32>, vector<8x128xf32> -> vector<8x128xf32>
    %314 = arith.addf %312, %313 : vector<8x128xf32>
    %315 = arith.negf %314 : vector<8x128xf32>
    %316 = math.exp %315 : vector<8x128xf32>
    %cst_75 = arith.constant 1.000000e+00 : f32
    %317 = vector.broadcast %cst_75 : f32 to vector<8x128xf32>
    %318 = arith.addf %317, %316 : vector<8x128xf32>
    %319 = arith.divf %317, %318 : vector<8x128xf32>
    %320 = vector.extract_strided_slice %319 {offsets = [0, 0], sizes = [8, 32], strides = [1, 1]} : vector<8x128xf32> to vector<8x32xf32>
    %321 = vector.extract_strided_slice %319 {offsets = [0, 32], sizes = [8, 32], strides = [1, 1]} : vector<8x128xf32> to vector<8x32xf32>
    %322 = vector.extract_strided_slice %319 {offsets = [0, 64], sizes = [8, 32], strides = [1, 1]} : vector<8x128xf32> to vector<8x32xf32>
    %323 = vector.extract_strided_slice %319 {offsets = [0, 96], sizes = [8, 32], strides = [1, 1]} : vector<8x128xf32> to vector<8x32xf32>
    %324 = arith.mulf %321, %309 : vector<8x32xf32>
    %cst_76 = arith.constant 2.000000e+00 : f32
    %325 = vector.broadcast %cst_76 : f32 to vector<8x32xf32>
    %326 = arith.mulf %325, %323 : vector<8x32xf32>
    %cst_77 = arith.constant 1.000000e+00 : f32
    %327 = vector.broadcast %cst_77 : f32 to vector<8x32xf32>
    %328 = arith.subf %326, %327 : vector<8x32xf32>
    %329 = arith.mulf %320, %328 : vector<8x32xf32>
    %330 = arith.addf %324, %329 : vector<8x32xf32>
    %331 = math.tanh %330 : vector<8x32xf32>
    %332 = arith.mulf %322, %331 : vector<8x32xf32>
    %333 = vector.extract_strided_slice %183 {offsets = [56, 0], sizes = [8, 128], strides = [1, 1]} : vector<64x128xf32> to vector<8x128xf32>
    %cst_78 = arith.constant dense<0.000000e+00> : vector<8x128xf32>
    %334 = tpu.matmul %332, %179, %cst_78 {dimension_numbers = #tpu.dot_dimension_numbers<[1], [0], [0], [1], [0, 0, 1, 1], [], []>} : vector<8x32xf32>, vector<32x128xf32>, vector<8x128xf32> -> vector<8x128xf32>
    %335 = arith.addf %333, %334 : vector<8x128xf32>
    %336 = arith.negf %335 : vector<8x128xf32>
    %337 = math.exp %336 : vector<8x128xf32>
    %cst_79 = arith.constant 1.000000e+00 : f32
    %338 = vector.broadcast %cst_79 : f32 to vector<8x128xf32>
    %339 = arith.addf %338, %337 : vector<8x128xf32>
    %340 = arith.divf %338, %339 : vector<8x128xf32>
    %341 = vector.extract_strided_slice %340 {offsets = [0, 0], sizes = [8, 32], strides = [1, 1]} : vector<8x128xf32> to vector<8x32xf32>
    %342 = vector.extract_strided_slice %340 {offsets = [0, 32], sizes = [8, 32], strides = [1, 1]} : vector<8x128xf32> to vector<8x32xf32>
    %343 = vector.extract_strided_slice %340 {offsets = [0, 64], sizes = [8, 32], strides = [1, 1]} : vector<8x128xf32> to vector<8x32xf32>
    %344 = vector.extract_strided_slice %340 {offsets = [0, 96], sizes = [8, 32], strides = [1, 1]} : vector<8x128xf32> to vector<8x32xf32>
    %345 = arith.mulf %342, %330 : vector<8x32xf32>
    %cst_80 = arith.constant 2.000000e+00 : f32
    %346 = vector.broadcast %cst_80 : f32 to vector<8x32xf32>
    %347 = arith.mulf %346, %344 : vector<8x32xf32>
    %cst_81 = arith.constant 1.000000e+00 : f32
    %348 = vector.broadcast %cst_81 : f32 to vector<8x32xf32>
    %349 = arith.subf %347, %348 : vector<8x32xf32>
    %350 = arith.mulf %341, %349 : vector<8x32xf32>
    %351 = arith.addf %345, %350 : vector<8x32xf32>
    %352 = math.tanh %351 : vector<8x32xf32>
    %353 = arith.mulf %343, %352 : vector<8x32xf32>
    %c0_82 = arith.constant 0 : index
    %c0_83 = arith.constant 0 : index
    %354 = vector.load %arg2[%c0_82, %c0_83] : memref<64x88xf32, #tpu.memory_space<vmem>>, vector<64x88xf32>
    %c0_84 = arith.constant 0 : index
    %c0_85 = arith.constant 0 : index
    %355 = vector.load %arg9[%c0_84, %c0_85] : memref<88x128xf32, #tpu.memory_space<vmem>>, vector<88x128xf32>
    %c0_86 = arith.constant 0 : index
    %c0_87 = arith.constant 0 : index
    %356 = vector.load %arg10[%c0_86, %c0_87] : memref<32x128xf32, #tpu.memory_space<vmem>>, vector<32x128xf32>
    %c0_88 = arith.constant 0 : index
    %c0_89 = arith.constant 0 : index
    %357 = vector.load %arg11[%c0_88, %c0_89] : memref<1x128xf32, #tpu.memory_space<vmem>>, vector<1x128xf32>
    %cst_90 = arith.constant dense<0.000000e+00> : vector<64x128xf32>
    %358 = tpu.matmul %354, %355, %cst_90 {dimension_numbers = #tpu.dot_dimension_numbers<[1], [0], [0], [1], [0, 0, 1, 1], [], []>} : vector<64x88xf32>, vector<88x128xf32>, vector<64x128xf32> -> vector<64x128xf32>
    %359 = vector.broadcast %357 : vector<1x128xf32> to vector<64x128xf32>
    %360 = arith.addf %358, %359 : vector<64x128xf32>
    %cst_91 = arith.constant 0.000000e+00 : f32
    %361 = vector.broadcast %cst_91 : f32 to vector<8x32xf32>
    %cst_92 = arith.constant 0.000000e+00 : f32
    %362 = vector.broadcast %cst_92 : f32 to vector<8x32xf32>
    %363 = vector.extract_strided_slice %360 {offsets = [0, 0], sizes = [8, 128], strides = [1, 1]} : vector<64x128xf32> to vector<8x128xf32>
    %cst_93 = arith.constant dense<0.000000e+00> : vector<8x128xf32>
    %364 = tpu.matmul %361, %356, %cst_93 {dimension_numbers = #tpu.dot_dimension_numbers<[1], [0], [0], [1], [0, 0, 1, 1], [], []>} : vector<8x32xf32>, vector<32x128xf32>, vector<8x128xf32> -> vector<8x128xf32>
    %365 = arith.addf %363, %364 : vector<8x128xf32>
    %366 = arith.negf %365 : vector<8x128xf32>
    %367 = math.exp %366 : vector<8x128xf32>
    %cst_94 = arith.constant 1.000000e+00 : f32
    %368 = vector.broadcast %cst_94 : f32 to vector<8x128xf32>
    %369 = arith.addf %368, %367 : vector<8x128xf32>
    %370 = arith.divf %368, %369 : vector<8x128xf32>
    %371 = vector.extract_strided_slice %370 {offsets = [0, 0], sizes = [8, 32], strides = [1, 1]} : vector<8x128xf32> to vector<8x32xf32>
    %372 = vector.extract_strided_slice %370 {offsets = [0, 32], sizes = [8, 32], strides = [1, 1]} : vector<8x128xf32> to vector<8x32xf32>
    %373 = vector.extract_strided_slice %370 {offsets = [0, 64], sizes = [8, 32], strides = [1, 1]} : vector<8x128xf32> to vector<8x32xf32>
    %374 = vector.extract_strided_slice %370 {offsets = [0, 96], sizes = [8, 32], strides = [1, 1]} : vector<8x128xf32> to vector<8x32xf32>
    %375 = arith.mulf %372, %362 : vector<8x32xf32>
    %cst_95 = arith.constant 2.000000e+00 : f32
    %376 = vector.broadcast %cst_95 : f32 to vector<8x32xf32>
    %377 = arith.mulf %376, %374 : vector<8x32xf32>
    %cst_96 = arith.constant 1.000000e+00 : f32
    %378 = vector.broadcast %cst_96 : f32 to vector<8x32xf32>
    %379 = arith.subf %377, %378 : vector<8x32xf32>
    %380 = arith.mulf %371, %379 : vector<8x32xf32>
    %381 = arith.addf %375, %380 : vector<8x32xf32>
    %382 = math.tanh %381 : vector<8x32xf32>
    %383 = arith.mulf %373, %382 : vector<8x32xf32>
    %384 = vector.extract_strided_slice %360 {offsets = [8, 0], sizes = [8, 128], strides = [1, 1]} : vector<64x128xf32> to vector<8x128xf32>
    %cst_97 = arith.constant dense<0.000000e+00> : vector<8x128xf32>
    %385 = tpu.matmul %383, %356, %cst_97 {dimension_numbers = #tpu.dot_dimension_numbers<[1], [0], [0], [1], [0, 0, 1, 1], [], []>} : vector<8x32xf32>, vector<32x128xf32>, vector<8x128xf32> -> vector<8x128xf32>
    %386 = arith.addf %384, %385 : vector<8x128xf32>
    %387 = arith.negf %386 : vector<8x128xf32>
    %388 = math.exp %387 : vector<8x128xf32>
    %cst_98 = arith.constant 1.000000e+00 : f32
    %389 = vector.broadcast %cst_98 : f32 to vector<8x128xf32>
    %390 = arith.addf %389, %388 : vector<8x128xf32>
    %391 = arith.divf %389, %390 : vector<8x128xf32>
    %392 = vector.extract_strided_slice %391 {offsets = [0, 0], sizes = [8, 32], strides = [1, 1]} : vector<8x128xf32> to vector<8x32xf32>
    %393 = vector.extract_strided_slice %391 {offsets = [0, 32], sizes = [8, 32], strides = [1, 1]} : vector<8x128xf32> to vector<8x32xf32>
    %394 = vector.extract_strided_slice %391 {offsets = [0, 64], sizes = [8, 32], strides = [1, 1]} : vector<8x128xf32> to vector<8x32xf32>
    %395 = vector.extract_strided_slice %391 {offsets = [0, 96], sizes = [8, 32], strides = [1, 1]} : vector<8x128xf32> to vector<8x32xf32>
    %396 = arith.mulf %393, %381 : vector<8x32xf32>
    %cst_99 = arith.constant 2.000000e+00 : f32
    %397 = vector.broadcast %cst_99 : f32 to vector<8x32xf32>
    %398 = arith.mulf %397, %395 : vector<8x32xf32>
    %cst_100 = arith.constant 1.000000e+00 : f32
    %399 = vector.broadcast %cst_100 : f32 to vector<8x32xf32>
    %400 = arith.subf %398, %399 : vector<8x32xf32>
    %401 = arith.mulf %392, %400 : vector<8x32xf32>
    %402 = arith.addf %396, %401 : vector<8x32xf32>
    %403 = math.tanh %402 : vector<8x32xf32>
    %404 = arith.mulf %394, %403 : vector<8x32xf32>
    %405 = vector.extract_strided_slice %360 {offsets = [16, 0], sizes = [8, 128], strides = [1, 1]} : vector<64x128xf32> to vector<8x128xf32>
    %cst_101 = arith.constant dense<0.000000e+00> : vector<8x128xf32>
    %406 = tpu.matmul %404, %356, %cst_101 {dimension_numbers = #tpu.dot_dimension_numbers<[1], [0], [0], [1], [0, 0, 1, 1], [], []>} : vector<8x32xf32>, vector<32x128xf32>, vector<8x128xf32> -> vector<8x128xf32>
    %407 = arith.addf %405, %406 : vector<8x128xf32>
    %408 = arith.negf %407 : vector<8x128xf32>
    %409 = math.exp %408 : vector<8x128xf32>
    %cst_102 = arith.constant 1.000000e+00 : f32
    %410 = vector.broadcast %cst_102 : f32 to vector<8x128xf32>
    %411 = arith.addf %410, %409 : vector<8x128xf32>
    %412 = arith.divf %410, %411 : vector<8x128xf32>
    %413 = vector.extract_strided_slice %412 {offsets = [0, 0], sizes = [8, 32], strides = [1, 1]} : vector<8x128xf32> to vector<8x32xf32>
    %414 = vector.extract_strided_slice %412 {offsets = [0, 32], sizes = [8, 32], strides = [1, 1]} : vector<8x128xf32> to vector<8x32xf32>
    %415 = vector.extract_strided_slice %412 {offsets = [0, 64], sizes = [8, 32], strides = [1, 1]} : vector<8x128xf32> to vector<8x32xf32>
    %416 = vector.extract_strided_slice %412 {offsets = [0, 96], sizes = [8, 32], strides = [1, 1]} : vector<8x128xf32> to vector<8x32xf32>
    %417 = arith.mulf %414, %402 : vector<8x32xf32>
    %cst_103 = arith.constant 2.000000e+00 : f32
    %418 = vector.broadcast %cst_103 : f32 to vector<8x32xf32>
    %419 = arith.mulf %418, %416 : vector<8x32xf32>
    %cst_104 = arith.constant 1.000000e+00 : f32
    %420 = vector.broadcast %cst_104 : f32 to vector<8x32xf32>
    %421 = arith.subf %419, %420 : vector<8x32xf32>
    %422 = arith.mulf %413, %421 : vector<8x32xf32>
    %423 = arith.addf %417, %422 : vector<8x32xf32>
    %424 = math.tanh %423 : vector<8x32xf32>
    %425 = arith.mulf %415, %424 : vector<8x32xf32>
    %426 = vector.extract_strided_slice %360 {offsets = [24, 0], sizes = [8, 128], strides = [1, 1]} : vector<64x128xf32> to vector<8x128xf32>
    %cst_105 = arith.constant dense<0.000000e+00> : vector<8x128xf32>
    %427 = tpu.matmul %425, %356, %cst_105 {dimension_numbers = #tpu.dot_dimension_numbers<[1], [0], [0], [1], [0, 0, 1, 1], [], []>} : vector<8x32xf32>, vector<32x128xf32>, vector<8x128xf32> -> vector<8x128xf32>
    %428 = arith.addf %426, %427 : vector<8x128xf32>
    %429 = arith.negf %428 : vector<8x128xf32>
    %430 = math.exp %429 : vector<8x128xf32>
    %cst_106 = arith.constant 1.000000e+00 : f32
    %431 = vector.broadcast %cst_106 : f32 to vector<8x128xf32>
    %432 = arith.addf %431, %430 : vector<8x128xf32>
    %433 = arith.divf %431, %432 : vector<8x128xf32>
    %434 = vector.extract_strided_slice %433 {offsets = [0, 0], sizes = [8, 32], strides = [1, 1]} : vector<8x128xf32> to vector<8x32xf32>
    %435 = vector.extract_strided_slice %433 {offsets = [0, 32], sizes = [8, 32], strides = [1, 1]} : vector<8x128xf32> to vector<8x32xf32>
    %436 = vector.extract_strided_slice %433 {offsets = [0, 64], sizes = [8, 32], strides = [1, 1]} : vector<8x128xf32> to vector<8x32xf32>
    %437 = vector.extract_strided_slice %433 {offsets = [0, 96], sizes = [8, 32], strides = [1, 1]} : vector<8x128xf32> to vector<8x32xf32>
    %438 = arith.mulf %435, %423 : vector<8x32xf32>
    %cst_107 = arith.constant 2.000000e+00 : f32
    %439 = vector.broadcast %cst_107 : f32 to vector<8x32xf32>
    %440 = arith.mulf %439, %437 : vector<8x32xf32>
    %cst_108 = arith.constant 1.000000e+00 : f32
    %441 = vector.broadcast %cst_108 : f32 to vector<8x32xf32>
    %442 = arith.subf %440, %441 : vector<8x32xf32>
    %443 = arith.mulf %434, %442 : vector<8x32xf32>
    %444 = arith.addf %438, %443 : vector<8x32xf32>
    %445 = math.tanh %444 : vector<8x32xf32>
    %446 = arith.mulf %436, %445 : vector<8x32xf32>
    %447 = vector.extract_strided_slice %360 {offsets = [32, 0], sizes = [8, 128], strides = [1, 1]} : vector<64x128xf32> to vector<8x128xf32>
    %cst_109 = arith.constant dense<0.000000e+00> : vector<8x128xf32>
    %448 = tpu.matmul %446, %356, %cst_109 {dimension_numbers = #tpu.dot_dimension_numbers<[1], [0], [0], [1], [0, 0, 1, 1], [], []>} : vector<8x32xf32>, vector<32x128xf32>, vector<8x128xf32> -> vector<8x128xf32>
    %449 = arith.addf %447, %448 : vector<8x128xf32>
    %450 = arith.negf %449 : vector<8x128xf32>
    %451 = math.exp %450 : vector<8x128xf32>
    %cst_110 = arith.constant 1.000000e+00 : f32
    %452 = vector.broadcast %cst_110 : f32 to vector<8x128xf32>
    %453 = arith.addf %452, %451 : vector<8x128xf32>
    %454 = arith.divf %452, %453 : vector<8x128xf32>
    %455 = vector.extract_strided_slice %454 {offsets = [0, 0], sizes = [8, 32], strides = [1, 1]} : vector<8x128xf32> to vector<8x32xf32>
    %456 = vector.extract_strided_slice %454 {offsets = [0, 32], sizes = [8, 32], strides = [1, 1]} : vector<8x128xf32> to vector<8x32xf32>
    %457 = vector.extract_strided_slice %454 {offsets = [0, 64], sizes = [8, 32], strides = [1, 1]} : vector<8x128xf32> to vector<8x32xf32>
    %458 = vector.extract_strided_slice %454 {offsets = [0, 96], sizes = [8, 32], strides = [1, 1]} : vector<8x128xf32> to vector<8x32xf32>
    %459 = arith.mulf %456, %444 : vector<8x32xf32>
    %cst_111 = arith.constant 2.000000e+00 : f32
    %460 = vector.broadcast %cst_111 : f32 to vector<8x32xf32>
    %461 = arith.mulf %460, %458 : vector<8x32xf32>
    %cst_112 = arith.constant 1.000000e+00 : f32
    %462 = vector.broadcast %cst_112 : f32 to vector<8x32xf32>
    %463 = arith.subf %461, %462 : vector<8x32xf32>
    %464 = arith.mulf %455, %463 : vector<8x32xf32>
    %465 = arith.addf %459, %464 : vector<8x32xf32>
    %466 = math.tanh %465 : vector<8x32xf32>
    %467 = arith.mulf %457, %466 : vector<8x32xf32>
    %468 = vector.extract_strided_slice %360 {offsets = [40, 0], sizes = [8, 128], strides = [1, 1]} : vector<64x128xf32> to vector<8x128xf32>
    %cst_113 = arith.constant dense<0.000000e+00> : vector<8x128xf32>
    %469 = tpu.matmul %467, %356, %cst_113 {dimension_numbers = #tpu.dot_dimension_numbers<[1], [0], [0], [1], [0, 0, 1, 1], [], []>} : vector<8x32xf32>, vector<32x128xf32>, vector<8x128xf32> -> vector<8x128xf32>
    %470 = arith.addf %468, %469 : vector<8x128xf32>
    %471 = arith.negf %470 : vector<8x128xf32>
    %472 = math.exp %471 : vector<8x128xf32>
    %cst_114 = arith.constant 1.000000e+00 : f32
    %473 = vector.broadcast %cst_114 : f32 to vector<8x128xf32>
    %474 = arith.addf %473, %472 : vector<8x128xf32>
    %475 = arith.divf %473, %474 : vector<8x128xf32>
    %476 = vector.extract_strided_slice %475 {offsets = [0, 0], sizes = [8, 32], strides = [1, 1]} : vector<8x128xf32> to vector<8x32xf32>
    %477 = vector.extract_strided_slice %475 {offsets = [0, 32], sizes = [8, 32], strides = [1, 1]} : vector<8x128xf32> to vector<8x32xf32>
    %478 = vector.extract_strided_slice %475 {offsets = [0, 64], sizes = [8, 32], strides = [1, 1]} : vector<8x128xf32> to vector<8x32xf32>
    %479 = vector.extract_strided_slice %475 {offsets = [0, 96], sizes = [8, 32], strides = [1, 1]} : vector<8x128xf32> to vector<8x32xf32>
    %480 = arith.mulf %477, %465 : vector<8x32xf32>
    %cst_115 = arith.constant 2.000000e+00 : f32
    %481 = vector.broadcast %cst_115 : f32 to vector<8x32xf32>
    %482 = arith.mulf %481, %479 : vector<8x32xf32>
    %cst_116 = arith.constant 1.000000e+00 : f32
    %483 = vector.broadcast %cst_116 : f32 to vector<8x32xf32>
    %484 = arith.subf %482, %483 : vector<8x32xf32>
    %485 = arith.mulf %476, %484 : vector<8x32xf32>
    %486 = arith.addf %480, %485 : vector<8x32xf32>
    %487 = math.tanh %486 : vector<8x32xf32>
    %488 = arith.mulf %478, %487 : vector<8x32xf32>
    %489 = vector.extract_strided_slice %360 {offsets = [48, 0], sizes = [8, 128], strides = [1, 1]} : vector<64x128xf32> to vector<8x128xf32>
    %cst_117 = arith.constant dense<0.000000e+00> : vector<8x128xf32>
    %490 = tpu.matmul %488, %356, %cst_117 {dimension_numbers = #tpu.dot_dimension_numbers<[1], [0], [0], [1], [0, 0, 1, 1], [], []>} : vector<8x32xf32>, vector<32x128xf32>, vector<8x128xf32> -> vector<8x128xf32>
    %491 = arith.addf %489, %490 : vector<8x128xf32>
    %492 = arith.negf %491 : vector<8x128xf32>
    %493 = math.exp %492 : vector<8x128xf32>
    %cst_118 = arith.constant 1.000000e+00 : f32
    %494 = vector.broadcast %cst_118 : f32 to vector<8x128xf32>
    %495 = arith.addf %494, %493 : vector<8x128xf32>
    %496 = arith.divf %494, %495 : vector<8x128xf32>
    %497 = vector.extract_strided_slice %496 {offsets = [0, 0], sizes = [8, 32], strides = [1, 1]} : vector<8x128xf32> to vector<8x32xf32>
    %498 = vector.extract_strided_slice %496 {offsets = [0, 32], sizes = [8, 32], strides = [1, 1]} : vector<8x128xf32> to vector<8x32xf32>
    %499 = vector.extract_strided_slice %496 {offsets = [0, 64], sizes = [8, 32], strides = [1, 1]} : vector<8x128xf32> to vector<8x32xf32>
    %500 = vector.extract_strided_slice %496 {offsets = [0, 96], sizes = [8, 32], strides = [1, 1]} : vector<8x128xf32> to vector<8x32xf32>
    %501 = arith.mulf %498, %486 : vector<8x32xf32>
    %cst_119 = arith.constant 2.000000e+00 : f32
    %502 = vector.broadcast %cst_119 : f32 to vector<8x32xf32>
    %503 = arith.mulf %502, %500 : vector<8x32xf32>
    %cst_120 = arith.constant 1.000000e+00 : f32
    %504 = vector.broadcast %cst_120 : f32 to vector<8x32xf32>
    %505 = arith.subf %503, %504 : vector<8x32xf32>
    %506 = arith.mulf %497, %505 : vector<8x32xf32>
    %507 = arith.addf %501, %506 : vector<8x32xf32>
    %508 = math.tanh %507 : vector<8x32xf32>
    %509 = arith.mulf %499, %508 : vector<8x32xf32>
    %510 = vector.extract_strided_slice %360 {offsets = [56, 0], sizes = [8, 128], strides = [1, 1]} : vector<64x128xf32> to vector<8x128xf32>
    %cst_121 = arith.constant dense<0.000000e+00> : vector<8x128xf32>
    %511 = tpu.matmul %509, %356, %cst_121 {dimension_numbers = #tpu.dot_dimension_numbers<[1], [0], [0], [1], [0, 0, 1, 1], [], []>} : vector<8x32xf32>, vector<32x128xf32>, vector<8x128xf32> -> vector<8x128xf32>
    %512 = arith.addf %510, %511 : vector<8x128xf32>
    %513 = arith.negf %512 : vector<8x128xf32>
    %514 = math.exp %513 : vector<8x128xf32>
    %cst_122 = arith.constant 1.000000e+00 : f32
    %515 = vector.broadcast %cst_122 : f32 to vector<8x128xf32>
    %516 = arith.addf %515, %514 : vector<8x128xf32>
    %517 = arith.divf %515, %516 : vector<8x128xf32>
    %518 = vector.extract_strided_slice %517 {offsets = [0, 0], sizes = [8, 32], strides = [1, 1]} : vector<8x128xf32> to vector<8x32xf32>
    %519 = vector.extract_strided_slice %517 {offsets = [0, 32], sizes = [8, 32], strides = [1, 1]} : vector<8x128xf32> to vector<8x32xf32>
    %520 = vector.extract_strided_slice %517 {offsets = [0, 64], sizes = [8, 32], strides = [1, 1]} : vector<8x128xf32> to vector<8x32xf32>
    %521 = vector.extract_strided_slice %517 {offsets = [0, 96], sizes = [8, 32], strides = [1, 1]} : vector<8x128xf32> to vector<8x32xf32>
    %522 = arith.mulf %519, %507 : vector<8x32xf32>
    %cst_123 = arith.constant 2.000000e+00 : f32
    %523 = vector.broadcast %cst_123 : f32 to vector<8x32xf32>
    %524 = arith.mulf %523, %521 : vector<8x32xf32>
    %cst_124 = arith.constant 1.000000e+00 : f32
    %525 = vector.broadcast %cst_124 : f32 to vector<8x32xf32>
    %526 = arith.subf %524, %525 : vector<8x32xf32>
    %527 = arith.mulf %518, %526 : vector<8x32xf32>
    %528 = arith.addf %522, %527 : vector<8x32xf32>
    %529 = math.tanh %528 : vector<8x32xf32>
    %530 = arith.mulf %520, %529 : vector<8x32xf32>
    %531 = tpu.concatenate %383, %404, %425, %446, %467, %488, %509, %530 in 0 : vector<8x32xf32>, vector<8x32xf32>, vector<8x32xf32>, vector<8x32xf32>, vector<8x32xf32>, vector<8x32xf32>, vector<8x32xf32>, vector<8x32xf32> -> vector<64x32xf32>
    %c0_125 = arith.constant 0 : index
    %c0_126 = arith.constant 0 : index
    %532 = vector.load %arg12[%c0_125, %c0_126] : memref<32x128xf32, #tpu.memory_space<vmem>>, vector<32x128xf32>
    %c0_127 = arith.constant 0 : index
    %c0_128 = arith.constant 0 : index
    %533 = vector.load %arg13[%c0_127, %c0_128] : memref<32x128xf32, #tpu.memory_space<vmem>>, vector<32x128xf32>
    %c0_129 = arith.constant 0 : index
    %c0_130 = arith.constant 0 : index
    %534 = vector.load %arg14[%c0_129, %c0_130] : memref<1x128xf32, #tpu.memory_space<vmem>>, vector<1x128xf32>
    %cst_131 = arith.constant dense<0.000000e+00> : vector<64x128xf32>
    %535 = tpu.matmul %531, %532, %cst_131 {dimension_numbers = #tpu.dot_dimension_numbers<[1], [0], [0], [1], [0, 0, 1, 1], [], []>} : vector<64x32xf32>, vector<32x128xf32>, vector<64x128xf32> -> vector<64x128xf32>
    %536 = vector.broadcast %534 : vector<1x128xf32> to vector<64x128xf32>
    %537 = arith.addf %535, %536 : vector<64x128xf32>
    %cst_132 = arith.constant 0.000000e+00 : f32
    %538 = vector.broadcast %cst_132 : f32 to vector<8x32xf32>
    %cst_133 = arith.constant 0.000000e+00 : f32
    %539 = vector.broadcast %cst_133 : f32 to vector<8x32xf32>
    %540 = vector.extract_strided_slice %537 {offsets = [0, 0], sizes = [8, 128], strides = [1, 1]} : vector<64x128xf32> to vector<8x128xf32>
    %cst_134 = arith.constant dense<0.000000e+00> : vector<8x128xf32>
    %541 = tpu.matmul %538, %533, %cst_134 {dimension_numbers = #tpu.dot_dimension_numbers<[1], [0], [0], [1], [0, 0, 1, 1], [], []>} : vector<8x32xf32>, vector<32x128xf32>, vector<8x128xf32> -> vector<8x128xf32>
    %542 = arith.addf %540, %541 : vector<8x128xf32>
    %543 = arith.negf %542 : vector<8x128xf32>
    %544 = math.exp %543 : vector<8x128xf32>
    %cst_135 = arith.constant 1.000000e+00 : f32
    %545 = vector.broadcast %cst_135 : f32 to vector<8x128xf32>
    %546 = arith.addf %545, %544 : vector<8x128xf32>
    %547 = arith.divf %545, %546 : vector<8x128xf32>
    %548 = vector.extract_strided_slice %547 {offsets = [0, 0], sizes = [8, 32], strides = [1, 1]} : vector<8x128xf32> to vector<8x32xf32>
    %549 = vector.extract_strided_slice %547 {offsets = [0, 32], sizes = [8, 32], strides = [1, 1]} : vector<8x128xf32> to vector<8x32xf32>
    %550 = vector.extract_strided_slice %547 {offsets = [0, 64], sizes = [8, 32], strides = [1, 1]} : vector<8x128xf32> to vector<8x32xf32>
    %551 = vector.extract_strided_slice %547 {offsets = [0, 96], sizes = [8, 32], strides = [1, 1]} : vector<8x128xf32> to vector<8x32xf32>
    %552 = arith.mulf %549, %539 : vector<8x32xf32>
    %cst_136 = arith.constant 2.000000e+00 : f32
    %553 = vector.broadcast %cst_136 : f32 to vector<8x32xf32>
    %554 = arith.mulf %553, %551 : vector<8x32xf32>
    %cst_137 = arith.constant 1.000000e+00 : f32
    %555 = vector.broadcast %cst_137 : f32 to vector<8x32xf32>
    %556 = arith.subf %554, %555 : vector<8x32xf32>
    %557 = arith.mulf %548, %556 : vector<8x32xf32>
    %558 = arith.addf %552, %557 : vector<8x32xf32>
    %559 = math.tanh %558 : vector<8x32xf32>
    %560 = arith.mulf %550, %559 : vector<8x32xf32>
    %561 = vector.extract_strided_slice %537 {offsets = [8, 0], sizes = [8, 128], strides = [1, 1]} : vector<64x128xf32> to vector<8x128xf32>
    %cst_138 = arith.constant dense<0.000000e+00> : vector<8x128xf32>
    %562 = tpu.matmul %560, %533, %cst_138 {dimension_numbers = #tpu.dot_dimension_numbers<[1], [0], [0], [1], [0, 0, 1, 1], [], []>} : vector<8x32xf32>, vector<32x128xf32>, vector<8x128xf32> -> vector<8x128xf32>
    %563 = arith.addf %561, %562 : vector<8x128xf32>
    %564 = arith.negf %563 : vector<8x128xf32>
    %565 = math.exp %564 : vector<8x128xf32>
    %cst_139 = arith.constant 1.000000e+00 : f32
    %566 = vector.broadcast %cst_139 : f32 to vector<8x128xf32>
    %567 = arith.addf %566, %565 : vector<8x128xf32>
    %568 = arith.divf %566, %567 : vector<8x128xf32>
    %569 = vector.extract_strided_slice %568 {offsets = [0, 0], sizes = [8, 32], strides = [1, 1]} : vector<8x128xf32> to vector<8x32xf32>
    %570 = vector.extract_strided_slice %568 {offsets = [0, 32], sizes = [8, 32], strides = [1, 1]} : vector<8x128xf32> to vector<8x32xf32>
    %571 = vector.extract_strided_slice %568 {offsets = [0, 64], sizes = [8, 32], strides = [1, 1]} : vector<8x128xf32> to vector<8x32xf32>
    %572 = vector.extract_strided_slice %568 {offsets = [0, 96], sizes = [8, 32], strides = [1, 1]} : vector<8x128xf32> to vector<8x32xf32>
    %573 = arith.mulf %570, %558 : vector<8x32xf32>
    %cst_140 = arith.constant 2.000000e+00 : f32
    %574 = vector.broadcast %cst_140 : f32 to vector<8x32xf32>
    %575 = arith.mulf %574, %572 : vector<8x32xf32>
    %cst_141 = arith.constant 1.000000e+00 : f32
    %576 = vector.broadcast %cst_141 : f32 to vector<8x32xf32>
    %577 = arith.subf %575, %576 : vector<8x32xf32>
    %578 = arith.mulf %569, %577 : vector<8x32xf32>
    %579 = arith.addf %573, %578 : vector<8x32xf32>
    %580 = math.tanh %579 : vector<8x32xf32>
    %581 = arith.mulf %571, %580 : vector<8x32xf32>
    %582 = vector.extract_strided_slice %537 {offsets = [16, 0], sizes = [8, 128], strides = [1, 1]} : vector<64x128xf32> to vector<8x128xf32>
    %cst_142 = arith.constant dense<0.000000e+00> : vector<8x128xf32>
    %583 = tpu.matmul %581, %533, %cst_142 {dimension_numbers = #tpu.dot_dimension_numbers<[1], [0], [0], [1], [0, 0, 1, 1], [], []>} : vector<8x32xf32>, vector<32x128xf32>, vector<8x128xf32> -> vector<8x128xf32>
    %584 = arith.addf %582, %583 : vector<8x128xf32>
    %585 = arith.negf %584 : vector<8x128xf32>
    %586 = math.exp %585 : vector<8x128xf32>
    %cst_143 = arith.constant 1.000000e+00 : f32
    %587 = vector.broadcast %cst_143 : f32 to vector<8x128xf32>
    %588 = arith.addf %587, %586 : vector<8x128xf32>
    %589 = arith.divf %587, %588 : vector<8x128xf32>
    %590 = vector.extract_strided_slice %589 {offsets = [0, 0], sizes = [8, 32], strides = [1, 1]} : vector<8x128xf32> to vector<8x32xf32>
    %591 = vector.extract_strided_slice %589 {offsets = [0, 32], sizes = [8, 32], strides = [1, 1]} : vector<8x128xf32> to vector<8x32xf32>
    %592 = vector.extract_strided_slice %589 {offsets = [0, 64], sizes = [8, 32], strides = [1, 1]} : vector<8x128xf32> to vector<8x32xf32>
    %593 = vector.extract_strided_slice %589 {offsets = [0, 96], sizes = [8, 32], strides = [1, 1]} : vector<8x128xf32> to vector<8x32xf32>
    %594 = arith.mulf %591, %579 : vector<8x32xf32>
    %cst_144 = arith.constant 2.000000e+00 : f32
    %595 = vector.broadcast %cst_144 : f32 to vector<8x32xf32>
    %596 = arith.mulf %595, %593 : vector<8x32xf32>
    %cst_145 = arith.constant 1.000000e+00 : f32
    %597 = vector.broadcast %cst_145 : f32 to vector<8x32xf32>
    %598 = arith.subf %596, %597 : vector<8x32xf32>
    %599 = arith.mulf %590, %598 : vector<8x32xf32>
    %600 = arith.addf %594, %599 : vector<8x32xf32>
    %601 = math.tanh %600 : vector<8x32xf32>
    %602 = arith.mulf %592, %601 : vector<8x32xf32>
    %603 = vector.extract_strided_slice %537 {offsets = [24, 0], sizes = [8, 128], strides = [1, 1]} : vector<64x128xf32> to vector<8x128xf32>
    %cst_146 = arith.constant dense<0.000000e+00> : vector<8x128xf32>
    %604 = tpu.matmul %602, %533, %cst_146 {dimension_numbers = #tpu.dot_dimension_numbers<[1], [0], [0], [1], [0, 0, 1, 1], [], []>} : vector<8x32xf32>, vector<32x128xf32>, vector<8x128xf32> -> vector<8x128xf32>
    %605 = arith.addf %603, %604 : vector<8x128xf32>
    %606 = arith.negf %605 : vector<8x128xf32>
    %607 = math.exp %606 : vector<8x128xf32>
    %cst_147 = arith.constant 1.000000e+00 : f32
    %608 = vector.broadcast %cst_147 : f32 to vector<8x128xf32>
    %609 = arith.addf %608, %607 : vector<8x128xf32>
    %610 = arith.divf %608, %609 : vector<8x128xf32>
    %611 = vector.extract_strided_slice %610 {offsets = [0, 0], sizes = [8, 32], strides = [1, 1]} : vector<8x128xf32> to vector<8x32xf32>
    %612 = vector.extract_strided_slice %610 {offsets = [0, 32], sizes = [8, 32], strides = [1, 1]} : vector<8x128xf32> to vector<8x32xf32>
    %613 = vector.extract_strided_slice %610 {offsets = [0, 64], sizes = [8, 32], strides = [1, 1]} : vector<8x128xf32> to vector<8x32xf32>
    %614 = vector.extract_strided_slice %610 {offsets = [0, 96], sizes = [8, 32], strides = [1, 1]} : vector<8x128xf32> to vector<8x32xf32>
    %615 = arith.mulf %612, %600 : vector<8x32xf32>
    %cst_148 = arith.constant 2.000000e+00 : f32
    %616 = vector.broadcast %cst_148 : f32 to vector<8x32xf32>
    %617 = arith.mulf %616, %614 : vector<8x32xf32>
    %cst_149 = arith.constant 1.000000e+00 : f32
    %618 = vector.broadcast %cst_149 : f32 to vector<8x32xf32>
    %619 = arith.subf %617, %618 : vector<8x32xf32>
    %620 = arith.mulf %611, %619 : vector<8x32xf32>
    %621 = arith.addf %615, %620 : vector<8x32xf32>
    %622 = math.tanh %621 : vector<8x32xf32>
    %623 = arith.mulf %613, %622 : vector<8x32xf32>
    %624 = vector.extract_strided_slice %537 {offsets = [32, 0], sizes = [8, 128], strides = [1, 1]} : vector<64x128xf32> to vector<8x128xf32>
    %cst_150 = arith.constant dense<0.000000e+00> : vector<8x128xf32>
    %625 = tpu.matmul %623, %533, %cst_150 {dimension_numbers = #tpu.dot_dimension_numbers<[1], [0], [0], [1], [0, 0, 1, 1], [], []>} : vector<8x32xf32>, vector<32x128xf32>, vector<8x128xf32> -> vector<8x128xf32>
    %626 = arith.addf %624, %625 : vector<8x128xf32>
    %627 = arith.negf %626 : vector<8x128xf32>
    %628 = math.exp %627 : vector<8x128xf32>
    %cst_151 = arith.constant 1.000000e+00 : f32
    %629 = vector.broadcast %cst_151 : f32 to vector<8x128xf32>
    %630 = arith.addf %629, %628 : vector<8x128xf32>
    %631 = arith.divf %629, %630 : vector<8x128xf32>
    %632 = vector.extract_strided_slice %631 {offsets = [0, 0], sizes = [8, 32], strides = [1, 1]} : vector<8x128xf32> to vector<8x32xf32>
    %633 = vector.extract_strided_slice %631 {offsets = [0, 32], sizes = [8, 32], strides = [1, 1]} : vector<8x128xf32> to vector<8x32xf32>
    %634 = vector.extract_strided_slice %631 {offsets = [0, 64], sizes = [8, 32], strides = [1, 1]} : vector<8x128xf32> to vector<8x32xf32>
    %635 = vector.extract_strided_slice %631 {offsets = [0, 96], sizes = [8, 32], strides = [1, 1]} : vector<8x128xf32> to vector<8x32xf32>
    %636 = arith.mulf %633, %621 : vector<8x32xf32>
    %cst_152 = arith.constant 2.000000e+00 : f32
    %637 = vector.broadcast %cst_152 : f32 to vector<8x32xf32>
    %638 = arith.mulf %637, %635 : vector<8x32xf32>
    %cst_153 = arith.constant 1.000000e+00 : f32
    %639 = vector.broadcast %cst_153 : f32 to vector<8x32xf32>
    %640 = arith.subf %638, %639 : vector<8x32xf32>
    %641 = arith.mulf %632, %640 : vector<8x32xf32>
    %642 = arith.addf %636, %641 : vector<8x32xf32>
    %643 = math.tanh %642 : vector<8x32xf32>
    %644 = arith.mulf %634, %643 : vector<8x32xf32>
    %645 = vector.extract_strided_slice %537 {offsets = [40, 0], sizes = [8, 128], strides = [1, 1]} : vector<64x128xf32> to vector<8x128xf32>
    %cst_154 = arith.constant dense<0.000000e+00> : vector<8x128xf32>
    %646 = tpu.matmul %644, %533, %cst_154 {dimension_numbers = #tpu.dot_dimension_numbers<[1], [0], [0], [1], [0, 0, 1, 1], [], []>} : vector<8x32xf32>, vector<32x128xf32>, vector<8x128xf32> -> vector<8x128xf32>
    %647 = arith.addf %645, %646 : vector<8x128xf32>
    %648 = arith.negf %647 : vector<8x128xf32>
    %649 = math.exp %648 : vector<8x128xf32>
    %cst_155 = arith.constant 1.000000e+00 : f32
    %650 = vector.broadcast %cst_155 : f32 to vector<8x128xf32>
    %651 = arith.addf %650, %649 : vector<8x128xf32>
    %652 = arith.divf %650, %651 : vector<8x128xf32>
    %653 = vector.extract_strided_slice %652 {offsets = [0, 0], sizes = [8, 32], strides = [1, 1]} : vector<8x128xf32> to vector<8x32xf32>
    %654 = vector.extract_strided_slice %652 {offsets = [0, 32], sizes = [8, 32], strides = [1, 1]} : vector<8x128xf32> to vector<8x32xf32>
    %655 = vector.extract_strided_slice %652 {offsets = [0, 64], sizes = [8, 32], strides = [1, 1]} : vector<8x128xf32> to vector<8x32xf32>
    %656 = vector.extract_strided_slice %652 {offsets = [0, 96], sizes = [8, 32], strides = [1, 1]} : vector<8x128xf32> to vector<8x32xf32>
    %657 = arith.mulf %654, %642 : vector<8x32xf32>
    %cst_156 = arith.constant 2.000000e+00 : f32
    %658 = vector.broadcast %cst_156 : f32 to vector<8x32xf32>
    %659 = arith.mulf %658, %656 : vector<8x32xf32>
    %cst_157 = arith.constant 1.000000e+00 : f32
    %660 = vector.broadcast %cst_157 : f32 to vector<8x32xf32>
    %661 = arith.subf %659, %660 : vector<8x32xf32>
    %662 = arith.mulf %653, %661 : vector<8x32xf32>
    %663 = arith.addf %657, %662 : vector<8x32xf32>
    %664 = math.tanh %663 : vector<8x32xf32>
    %665 = arith.mulf %655, %664 : vector<8x32xf32>
    %666 = vector.extract_strided_slice %537 {offsets = [48, 0], sizes = [8, 128], strides = [1, 1]} : vector<64x128xf32> to vector<8x128xf32>
    %cst_158 = arith.constant dense<0.000000e+00> : vector<8x128xf32>
    %667 = tpu.matmul %665, %533, %cst_158 {dimension_numbers = #tpu.dot_dimension_numbers<[1], [0], [0], [1], [0, 0, 1, 1], [], []>} : vector<8x32xf32>, vector<32x128xf32>, vector<8x128xf32> -> vector<8x128xf32>
    %668 = arith.addf %666, %667 : vector<8x128xf32>
    %669 = arith.negf %668 : vector<8x128xf32>
    %670 = math.exp %669 : vector<8x128xf32>
    %cst_159 = arith.constant 1.000000e+00 : f32
    %671 = vector.broadcast %cst_159 : f32 to vector<8x128xf32>
    %672 = arith.addf %671, %670 : vector<8x128xf32>
    %673 = arith.divf %671, %672 : vector<8x128xf32>
    %674 = vector.extract_strided_slice %673 {offsets = [0, 0], sizes = [8, 32], strides = [1, 1]} : vector<8x128xf32> to vector<8x32xf32>
    %675 = vector.extract_strided_slice %673 {offsets = [0, 32], sizes = [8, 32], strides = [1, 1]} : vector<8x128xf32> to vector<8x32xf32>
    %676 = vector.extract_strided_slice %673 {offsets = [0, 64], sizes = [8, 32], strides = [1, 1]} : vector<8x128xf32> to vector<8x32xf32>
    %677 = vector.extract_strided_slice %673 {offsets = [0, 96], sizes = [8, 32], strides = [1, 1]} : vector<8x128xf32> to vector<8x32xf32>
    %678 = arith.mulf %675, %663 : vector<8x32xf32>
    %cst_160 = arith.constant 2.000000e+00 : f32
    %679 = vector.broadcast %cst_160 : f32 to vector<8x32xf32>
    %680 = arith.mulf %679, %677 : vector<8x32xf32>
    %cst_161 = arith.constant 1.000000e+00 : f32
    %681 = vector.broadcast %cst_161 : f32 to vector<8x32xf32>
    %682 = arith.subf %680, %681 : vector<8x32xf32>
    %683 = arith.mulf %674, %682 : vector<8x32xf32>
    %684 = arith.addf %678, %683 : vector<8x32xf32>
    %685 = math.tanh %684 : vector<8x32xf32>
    %686 = arith.mulf %676, %685 : vector<8x32xf32>
    %687 = vector.extract_strided_slice %537 {offsets = [56, 0], sizes = [8, 128], strides = [1, 1]} : vector<64x128xf32> to vector<8x128xf32>
    %cst_162 = arith.constant dense<0.000000e+00> : vector<8x128xf32>
    %688 = tpu.matmul %686, %533, %cst_162 {dimension_numbers = #tpu.dot_dimension_numbers<[1], [0], [0], [1], [0, 0, 1, 1], [], []>} : vector<8x32xf32>, vector<32x128xf32>, vector<8x128xf32> -> vector<8x128xf32>
    %689 = arith.addf %687, %688 : vector<8x128xf32>
    %690 = arith.negf %689 : vector<8x128xf32>
    %691 = math.exp %690 : vector<8x128xf32>
    %cst_163 = arith.constant 1.000000e+00 : f32
    %692 = vector.broadcast %cst_163 : f32 to vector<8x128xf32>
    %693 = arith.addf %692, %691 : vector<8x128xf32>
    %694 = arith.divf %692, %693 : vector<8x128xf32>
    %695 = vector.extract_strided_slice %694 {offsets = [0, 0], sizes = [8, 32], strides = [1, 1]} : vector<8x128xf32> to vector<8x32xf32>
    %696 = vector.extract_strided_slice %694 {offsets = [0, 32], sizes = [8, 32], strides = [1, 1]} : vector<8x128xf32> to vector<8x32xf32>
    %697 = vector.extract_strided_slice %694 {offsets = [0, 64], sizes = [8, 32], strides = [1, 1]} : vector<8x128xf32> to vector<8x32xf32>
    %698 = vector.extract_strided_slice %694 {offsets = [0, 96], sizes = [8, 32], strides = [1, 1]} : vector<8x128xf32> to vector<8x32xf32>
    %699 = arith.mulf %696, %684 : vector<8x32xf32>
    %cst_164 = arith.constant 2.000000e+00 : f32
    %700 = vector.broadcast %cst_164 : f32 to vector<8x32xf32>
    %701 = arith.mulf %700, %698 : vector<8x32xf32>
    %cst_165 = arith.constant 1.000000e+00 : f32
    %702 = vector.broadcast %cst_165 : f32 to vector<8x32xf32>
    %703 = arith.subf %701, %702 : vector<8x32xf32>
    %704 = arith.mulf %695, %703 : vector<8x32xf32>
    %705 = arith.addf %699, %704 : vector<8x32xf32>
    %706 = math.tanh %705 : vector<8x32xf32>
    %707 = arith.mulf %697, %706 : vector<8x32xf32>
    %c0_166 = arith.constant 0 : index
    %c0_167 = arith.constant 0 : index
    %708 = vector.load %arg15[%c0_166, %c0_167] : memref<32x16xf32, #tpu.memory_space<vmem>>, vector<32x16xf32>
    %cst_168 = arith.constant dense<0.000000e+00> : vector<8x16xf32>
    %709 = tpu.matmul %353, %708, %cst_168 {dimension_numbers = #tpu.dot_dimension_numbers<[1], [0], [0], [1], [0, 0, 1, 1], [], []>} : vector<8x32xf32>, vector<32x16xf32>, vector<8x16xf32> -> vector<8x16xf32>
    %c0_169 = arith.constant 0 : index
    %c0_170 = arith.constant 0 : index
    %710 = vector.load %arg16[%c0_169, %c0_170] : memref<32x16xf32, #tpu.memory_space<vmem>>, vector<32x16xf32>
    %cst_171 = arith.constant dense<0.000000e+00> : vector<8x16xf32>
    %711 = tpu.matmul %707, %710, %cst_171 {dimension_numbers = #tpu.dot_dimension_numbers<[1], [0], [0], [1], [0, 0, 1, 1], [], []>} : vector<8x32xf32>, vector<32x16xf32>, vector<8x16xf32> -> vector<8x16xf32>
    %712 = arith.addf %709, %711 : vector<8x16xf32>
    %c0_172 = arith.constant 0 : index
    %c0_173 = arith.constant 0 : index
    %713 = vector.load %arg17[%c0_172, %c0_173] : memref<1x16xf32, #tpu.memory_space<vmem>>, vector<1x16xf32>
    %714 = vector.broadcast %713 : vector<1x16xf32> to vector<8x16xf32>
    %715 = arith.addf %712, %714 : vector<8x16xf32>
    %716 = arith.negf %715 : vector<8x16xf32>
    %717 = math.exp %716 : vector<8x16xf32>
    %cst_174 = arith.constant 1.000000e+00 : f32
    %718 = vector.broadcast %cst_174 : f32 to vector<8x16xf32>
    %719 = arith.addf %718, %717 : vector<8x16xf32>
    %720 = arith.divf %718, %719 : vector<8x16xf32>
    %c0_175 = arith.constant 0 : index
    %c0_176 = arith.constant 0 : index
    %721 = vector.load %arg18[%c0_175, %c0_176] : memref<8x16xf32, #tpu.memory_space<vmem>>, vector<8x16xf32>
    tpu.vector_store %arg18[%c0_175, %c0_176], %720 {strides = array<i32>} : memref<8x16xf32, #tpu.memory_space<vmem>>, vector<8x16xf32>,
    return
  }
  func.func @transform_0(%arg0: i32) -> (i32, i32) {
    %c0_i32 = arith.constant 0 : i32
    %c0_i32_0 = arith.constant 0 : i32
    %c0_i32_1 = arith.constant 0 : i32
    return %c0_i32, %c0_i32_0 : i32, i32
  }
  func.func @transform_1(%arg0: i32) -> (i32, i32) {
    %c0_i32 = arith.constant 0 : i32
    %c0_i32_0 = arith.constant 0 : i32
    %c0_i32_1 = arith.constant 0 : i32
    return %c0_i32, %c0_i32_0 : i32, i32
  }
  func.func @transform_2(%arg0: i32) -> (i32, i32) {
    %c0_i32 = arith.constant 0 : i32
    %c0_i32_0 = arith.constant 0 : i32
    %c0_i32_1 = arith.constant 0 : i32
    return %c0_i32, %c0_i32_0 : i32, i32
  }
  func.func @transform_3(%arg0: i32) -> (i32, i32) {
    %c0_i32 = arith.constant 0 : i32
    %c0_i32_0 = arith.constant 0 : i32
    %c0_i32_1 = arith.constant 0 : i32
    return %c0_i32, %c0_i32_0 : i32, i32
  }
  func.func @transform_4(%arg0: i32) -> (i32, i32) {
    %c0_i32 = arith.constant 0 : i32
    %c0_i32_0 = arith.constant 0 : i32
    %c0_i32_1 = arith.constant 0 : i32
    return %c0_i32, %c0_i32_0 : i32, i32
  }
  func.func @transform_5(%arg0: i32) -> (i32, i32) {
    %c0_i32 = arith.constant 0 : i32
    %c0_i32_0 = arith.constant 0 : i32
    %c0_i32_1 = arith.constant 0 : i32
    return %c0_i32, %c0_i32_0 : i32, i32
  }
  func.func @transform_6(%arg0: i32) -> (i32, i32) {
    %c0_i32 = arith.constant 0 : i32
    %c0_i32_0 = arith.constant 0 : i32
    %c0_i32_1 = arith.constant 0 : i32
    return %c0_i32, %c0_i32_0 : i32, i32
  }
  func.func @transform_7(%arg0: i32) -> (i32, i32) {
    %c0_i32 = arith.constant 0 : i32
    %c0_i32_0 = arith.constant 0 : i32
    %c0_i32_1 = arith.constant 0 : i32
    return %c0_i32, %c0_i32_0 : i32, i32
  }
  func.func @transform_8(%arg0: i32) -> (i32, i32) {
    %c0_i32 = arith.constant 0 : i32
    %c0_i32_0 = arith.constant 0 : i32
    %c0_i32_1 = arith.constant 0 : i32
    return %c0_i32, %c0_i32_0 : i32, i32
  }
  func.func @transform_9(%arg0: i32) -> (i32, i32) {
    %c0_i32 = arith.constant 0 : i32
    %c0_i32_0 = arith.constant 0 : i32
    %c0_i32_1 = arith.constant 0 : i32
    return %c0_i32, %c0_i32_0 : i32, i32
  }
  func.func @transform_10(%arg0: i32) -> (i32, i32) {
    %c0_i32 = arith.constant 0 : i32
    %c0_i32_0 = arith.constant 0 : i32
    %c0_i32_1 = arith.constant 0 : i32
    return %c0_i32, %c0_i32_0 : i32, i32
  }
  func.func @transform_11(%arg0: i32) -> (i32, i32) {
    %c0_i32 = arith.constant 0 : i32
    %c0_i32_0 = arith.constant 0 : i32
    %c0_i32_1 = arith.constant 0 : i32
    return %c0_i32, %c0_i32_0 : i32, i32
  }
  func.func @transform_12(%arg0: i32) -> (i32, i32) {
    %c0_i32 = arith.constant 0 : i32
    %c0_i32_0 = arith.constant 0 : i32
    %c0_i32_1 = arith.constant 0 : i32
    return %c0_i32, %c0_i32_0 : i32, i32
  }
  func.func @transform_13(%arg0: i32) -> (i32, i32) {
    %c0_i32 = arith.constant 0 : i32
    %c0_i32_0 = arith.constant 0 : i32
    %c0_i32_1 = arith.constant 0 : i32
    return %c0_i32, %c0_i32_0 : i32, i32
  }
  func.func @transform_14(%arg0: i32) -> (i32, i32) {
    %c0_i32 = arith.constant 0 : i32
    %c0_i32_0 = arith.constant 0 : i32
    %c0_i32_1 = arith.constant 0 : i32
    return %c0_i32, %c0_i32_0 : i32, i32
  }
  func.func @transform_15(%arg0: i32) -> (i32, i32) {
    %c0_i32 = arith.constant 0 : i32
    %c0_i32_0 = arith.constant 0 : i32
    %c0_i32_1 = arith.constant 0 : i32
    return %c0_i32, %c0_i32_0 : i32, i32
  }
  func.func @transform_16(%arg0: i32) -> (i32, i32) {
    %c0_i32 = arith.constant 0 : i32
    %c0_i32_0 = arith.constant 0 : i32
    %c0_i32_1 = arith.constant 0 : i32
    return %c0_i32, %c0_i32_0 : i32, i32
  }
  func.func @transform_17(%arg0: i32) -> (i32, i32) {
    %c0_i32 = arith.constant 0 : i32
    %c0_i32_0 = arith.constant 0 : i32
    %c0_i32_1 = arith.constant 0 : i32
    return %c0_i32, %c0_i32_0 : i32, i32
  }
}

</mosaic_0001>

<llo_original>
// kernel: rnn_forward.1
$region0: #{rnn_forward.1}
  #allocation0 [shape = 'u32[]', space=smem, size = 0x4, offset = 0x4, fixed_abs, tag = 'smem constant byte address 0x4 - core index']
  #allocation1 [shape = 'u32[72,128]{1,0:T(1,128)}', space=vmem, size = 0x9000, scoped, tag = 'internal scratch']
  %s0 = inlined_call_operand.vmem [shape: f32[64,16], index: 0, kind: input, shape index: {}]
  %s1 = inlined_call_operand.vmem [shape: f32[64,88], index: 1, kind: input, shape index: {}]
  %s2 = inlined_call_operand.vmem [shape: f32[16,128], index: 2, kind: input, shape index: {}]
  %s3 = inlined_call_operand.vmem [shape: f32[32,128], index: 3, kind: input, shape index: {}]
  %s4 = inlined_call_operand.vmem [shape: f32[1,128], index: 4, kind: input, shape index: {}]
  %s5 = inlined_call_operand.vmem [shape: f32[32,128], index: 5, kind: input, shape index: {}]
  %s6 = inlined_call_operand.vmem [shape: f32[32,128], index: 6, kind: input, shape index: {}]
  %s7 = inlined_call_operand.vmem [shape: f32[1,128], index: 7, kind: input, shape index: {}]
  %s8 = inlined_call_operand.vmem [shape: f32[88,128], index: 8, kind: input, shape index: {}]
  %s9 = inlined_call_operand.vmem [shape: f32[32,128], index: 9, kind: input, shape index: {}]
  %s10 = inlined_call_operand.vmem [shape: f32[1,128], index: 10, kind: input, shape index: {}]
  %s11 = inlined_call_operand.vmem [shape: f32[32,128], index: 11, kind: input, shape index: {}]
  %s12 = inlined_call_operand.vmem [shape: f32[32,128], index: 12, kind: input, shape index: {}]
  %s13 = inlined_call_operand.vmem [shape: f32[1,128], index: 13, kind: input, shape index: {}]
  %s14 = inlined_call_operand.vmem [shape: f32[32,16], index: 14, kind: input, shape index: {}]
  %s15 = inlined_call_operand.vmem [shape: f32[32,16], index: 15, kind: input, shape index: {}]
  %s16 = inlined_call_operand.vmem [shape: f32[1,16], index: 16, kind: input, shape index: {}]
  %s17 = inlined_call_operand.vmem [shape: f32[8,16], index: 17, kind: output, shape index: {}]
  %s18 = sld [smem:[#allocation0]]
  $region78: #{rnn_forward.1} parent=0
    _
  %s20 = ssub.s32 1, %s18
  %s21 = scalar_select 0, %s20, %s18
  // Predicated region
  $region2: #{rnn_forward.1} parent=0 // pred_check
    _
  $region3: #{rnn_forward.1} parent=0 // pred_check_branch
    %23 = sbr.rel (0) target = $region5
  $region4: #{rnn_forward.1} parent=0 // pred_region
    _
  $region5: #{rnn_forward.1} parent=0 // pred_fallthru
    _
  // Predicated region
  $region6: #{rnn_forward.1} parent=0 // pred_check
    _
  $region7: #{rnn_forward.1} parent=0 // pred_check_branch
    %25 = sbr.rel (0) target = $region9
  $region8: #{rnn_forward.1} parent=0 // pred_region
    _
  $region9: #{rnn_forward.1} parent=0 // pred_fallthru
    _
  // Predicated region
  $region10: #{rnn_forward.1} parent=0 // pred_check
    _
  $region11: #{rnn_forward.1} parent=0 // pred_check_branch
    %27 = sbr.rel (0) target = $region13
  $region12: #{rnn_forward.1} parent=0 // pred_region
    _
  $region13: #{rnn_forward.1} parent=0 // pred_fallthru
    _
  // Predicated region
  $region14: #{rnn_forward.1} parent=0 // pred_check
    _
  $region15: #{rnn_forward.1} parent=0 // pred_check_branch
    %29 = sbr.rel (0) target = $region17
  $region16: #{rnn_forward.1} parent=0 // pred_region
    _
  $region17: #{rnn_forward.1} parent=0 // pred_fallthru
    _
  // Predicated region
  $region18: #{rnn_forward.1} parent=0 // pred_check
    _
  $region19: #{rnn_forward.1} parent=0 // pred_check_branch
    %31 = sbr.rel (0) target = $region21
  $region20: #{rnn_forward.1} parent=0 // pred_region
    _
  $region21: #{rnn_forward.1} parent=0 // pred_fallthru
    _
  // Predicated region
  $region22: #{rnn_forward.1} parent=0 // pred_check
    _
  $region23: #{rnn_forward.1} parent=0 // pred_check_branch
    %33 = sbr.rel (0) target = $region25
  $region24: #{rnn_forward.1} parent=0 // pred_region
    _
  $region25: #{rnn_forward.1} parent=0 // pred_fallthru
    _
  // Predicated region
  $region26: #{rnn_forward.1} parent=0 // pred_check
    _
  $region27: #{rnn_forward.1} parent=0 // pred_check_branch
    %35 = sbr.rel (0) target = $region29
  $region28: #{rnn_forward.1} parent=0 // pred_region
    _
  $region29: #{rnn_forward.1} parent=0 // pred_fallthru
    _
  // Predicated region
  $region30: #{rnn_forward.1} parent=0 // pred_check
    _
  $region31: #{rnn_forward.1} parent=0 // pred_check_branch
    %37 = sbr.rel (0) target = $region33
  $region32: #{rnn_forward.1} parent=0 // pred_region
    _
  $region33: #{rnn_forward.1} parent=0 // pred_fallthru
    _
  // Predicated region
  $region34: #{rnn_forward.1} parent=0 // pred_check
    _
  $region35: #{rnn_forward.1} parent=0 // pred_check_branch
    %39 = sbr.rel (0) target = $region37
  $region36: #{rnn_forward.1} parent=0 // pred_region
    _
  $region37: #{rnn_forward.1} parent=0 // pred_fallthru
    _
  // Predicated region
  $region38: #{rnn_forward.1} parent=0 // pred_check
    _
  $region39: #{rnn_forward.1} parent=0 // pred_check_branch
    %41 = sbr.rel (0) target = $region41
  $region40: #{rnn_forward.1} parent=0 // pred_region
    _
  $region41: #{rnn_forward.1} parent=0 // pred_fallthru
    _
  // Predicated region
  $region42: #{rnn_forward.1} parent=0 // pred_check
    _
  $region43: #{rnn_forward.1} parent=0 // pred_check_branch
    %43 = sbr.rel (0) target = $region45
  $region44: #{rnn_forward.1} parent=0 // pred_region
    _
  $region45: #{rnn_forward.1} parent=0 // pred_fallthru
    _
  // Predicated region
  $region46: #{rnn_forward.1} parent=0 // pred_check
    _
  $region47: #{rnn_forward.1} parent=0 // pred_check_branch
    %45 = sbr.rel (0) target = $region49
  $region48: #{rnn_forward.1} parent=0 // pred_region
    _
  $region49: #{rnn_forward.1} parent=0 // pred_fallthru
    _
  // Predicated region
  $region50: #{rnn_forward.1} parent=0 // pred_check
    _
  $region51: #{rnn_forward.1} parent=0 // pred_check_branch
    %47 = sbr.rel (0) target = $region53
  $region52: #{rnn_forward.1} parent=0 // pred_region
    _
  $region53: #{rnn_forward.1} parent=0 // pred_fallthru
    _
  // Predicated region
  $region54: #{rnn_forward.1} parent=0 // pred_check
    _
  $region55: #{rnn_forward.1} parent=0 // pred_check_branch
    %49 = sbr.rel (0) target = $region57
  $region56: #{rnn_forward.1} parent=0 // pred_region
    _
  $region57: #{rnn_forward.1} parent=0 // pred_fallthru
    _
  // Predicated region
  $region58: #{rnn_forward.1} parent=0 // pred_check
    _
  $region59: #{rnn_forward.1} parent=0 // pred_check_branch
    %51 = sbr.rel (0) target = $region61
  $region60: #{rnn_forward.1} parent=0 // pred_region
    _
  $region61: #{rnn_forward.1} parent=0 // pred_fallthru
    _
  // Predicated region
  $region62: #{rnn_forward.1} parent=0 // pred_check
    _
  $region63: #{rnn_forward.1} parent=0 // pred_check_branch
    %53 = sbr.rel (0) target = $region65
  $region64: #{rnn_forward.1} parent=0 // pred_region
    _
  $region65: #{rnn_forward.1} parent=0 // pred_fallthru
    _
  // Predicated region
  $region66: #{rnn_forward.1} parent=0 // pred_check
    _
  $region67: #{rnn_forward.1} parent=0 // pred_check_branch
    %55 = sbr.rel (0) target = $region69
  $region68: #{rnn_forward.1} parent=0 // pred_region
    _
  $region69: #{rnn_forward.1} parent=0 // pred_fallthru
    _
  %v56 = vld [vmem:[%s0] sm:$0xff]
  %v57 = vld [vmem:[%s0 + $0x8] sm:$0xff]
  %v58 = vld [vmem:[%s0 + $0x10] sm:$0xff]
  %v59 = vld [vmem:[%s0 + $0x18] sm:$0xff]
  %v60 = vld [vmem:[%s0 + $0x20] sm:$0xff]
  %v61 = vld [vmem:[%s0 + $0x28] sm:$0xff]
  %v62 = vld [vmem:[%s0 + $0x30] sm:$0xff]
  %v63 = vld [vmem:[%s0 + $0x38] sm:$0xff]
  %v64 = vld [vmem:[%s2] sm:$0xff]
  %v65 = vld [vmem:[%s2 + $0x8] sm:$0xff]
  %v66 = vld [vmem:[%s3] sm:$0xff]
  %v67 = vld [vmem:[%s3 + $0x8] sm:$0xff]
  %v68 = vld [vmem:[%s3 + $0x10] sm:$0xff]
  %v69 = vld [vmem:[%s3 + $0x18] sm:$0xff]
  %v70 = vld [vmem:[%s4] sm:$0x1]
  %v72 = vperm.slane %v70, 0
  %vm74 = vcmask 130048
  %v76 = vsel %vm74, %v56, 0
  %v79 = vsel %vm74, %v57, 0
  %v82 = vsel %vm74, %v58, 0
  %v85 = vsel %vm74, %v59, 0
  %v88 = vsel %vm74, %v60, 0
  %v91 = vsel %vm74, %v61, 0
  %v94 = vsel %vm74, %v62, 0
  %v97 = vsel %vm74, %v63, 0
  %99 = vmatpush.msra.mxu0 0.0
  %100 = vmatpush.msra.mxu0 0.0
  %101 = vmatpush.msra.mxu0 0.0
  %102 = vmatpush.msra.mxu0 0.0
  %103 = vmatpush.msra.mxu0 0.0
  %104 = vmatpush.msra.mxu0 0.0
  %105 = vmatpush.msra.mxu0 0.0
  %106 = vmatpush.msra.mxu0 0.0
  %107 = vmatpush.msra.mxu0 0.0
  %108 = vmatpush.msra.mxu0 0.0
  %109 = vmatpush.msra.mxu0 0.0
  %110 = vmatpush.msra.mxu0 0.0
  %111 = vmatpush.msra.mxu0 0.0
  %112 = vmatpush.msra.mxu0 0.0
  %113 = vmatpush.msra.mxu0 %v65
  %114 = vmatpush.msra.mxu0 %v64
  %115 = vmatmul.f32.gmra.mxu0 %v76
  %v116 = vpop.f32.mrf.mxu0
  %v117 = vadd.f32 %v72, %v116
  %118 = vmatmul.f32.gmra.mxu0 %v79
  %v119 = vpop.f32.mrf.mxu0
  %v120 = vadd.f32 %v72, %v119
  %121 = vmatmul.f32.gmra.mxu0 %v82
  %v122 = vpop.f32.mrf.mxu0
  %v123 = vadd.f32 %v72, %v122
  %124 = vmatmul.f32.gmra.mxu0 %v85
  %v125 = vpop.f32.mrf.mxu0
  %v126 = vadd.f32 %v72, %v125
  %127 = vmatmul.f32.gmra.mxu0 %v88
  %v128 = vpop.f32.mrf.mxu0
  %v129 = vadd.f32 %v72, %v128
  %130 = vmatmul.f32.gmra.mxu0 %v91
  %v131 = vpop.f32.mrf.mxu0
  %v132 = vadd.f32 %v72, %v131
  %133 = vmatmul.f32.gmra.mxu0 %v94
  %v134 = vpop.f32.mrf.mxu0
  %v135 = vadd.f32 %v72, %v134
  %136 = vmatmul.f32.gmra.mxu0 %v97
  %v137 = vpop.f32.mrf.mxu0
  %v138 = vadd.f32 %v72, %v137
  %139 = vdwg.mxu0
  %vm140 = vcmask 261120
  %v142 = vsel %vm140, 0.0, 0
  %144 = vmatpush.msra.mxu0 0.0
  %145 = vmatpush.msra.mxu0 0.0
  %146 = vmatpush.msra.mxu0 0.0
  %147 = vmatpush.msra.mxu0 0.0
  %148 = vmatpush.msra.mxu0 0.0
  %149 = vmatpush.msra.mxu0 0.0
  %150 = vmatpush.msra.mxu0 0.0
  %151 = vmatpush.msra.mxu0 0.0
  %152 = vmatpush.msra.mxu0 0.0
  %153 = vmatpush.msra.mxu0 0.0
  %154 = vmatpush.msra.mxu0 0.0
  %155 = vmatpush.msra.mxu0 0.0
  %156 = vmatpush.msra.mxu0 %v69
  %157 = vmatpush.msra.mxu0 %v68
  %158 = vmatpush.msra.mxu0 %v67
  %159 = vmatpush.msra.mxu0 %v66
  %160 = vmatmul.f32.gmra.mxu0 %v142
  %v161 = vpop.f32.mrf.mxu0
  %v162 = vadd.f32 0.0, %v161
  %163 = vdwg.mxu0
  %v164 = vadd.f32 %v117, %v162
  %v165 = vxor.u32 %v164, 2147483648
  %v166 = vmul.f32 %v165, 1.442695
  %v167 = vpow.pop %v166
  %v168 = vadd.f32 %v167, 1.0
  %v169 = vrcp.pop %v168
  %v170 = vmul.f32 %v168, %v169
  %v171 = vsub.f32 1.0, %v170
  %v172 = vmul.f32 %v169, %v171
  %v173 = vadd.f32 %v169, %v172
  %vm174 = vweird.f32 %v168
  %vm175 = vweird.f32 %v169
  %vm176 = vmor %vm174, %vm175
  %v177 = vsel %vm176, %v169, %v173
  %v178 = vand.u32 2147483647, %v168
  %vm179 = vcmp.eq.f32.partialorder %v178, 8.507059e+37
  %v180 = vand.u32 %v168, 2147483648
  %v181 = vor.u32 1.1754944e-38, %v180
  %v182 = vsel %vm179, %v181, %v177
  %v183 = vmul.f32 1.0, %v182
  %v184 = vmul.f32 %v183, 0.0
  %v185 = vmul.f32 %v183, 2.0
  %v186 = vsub.f32 %v185, 1.0
  %188 = vrot.lane.b32.xlu0 %v186, 32
  %v189 = vpop.permute.xlu0 %188
  %v191 = vmul.f32 %v183, %v189
  %193 = vrot.lane.b32.xlu0 %v191, 32
  %v194 = vpop.permute.xlu0 %193
  %v196 = vadd.f32 %v184, %v194
  %v197 = vtanh.pop %v196
  %199 = vrot.lane.b32.xlu0 %v197, 32
  %v200 = vpop.permute.xlu0 %199
  %v202 = vmul.f32 %v183, %v200
  %204 = vrot.lane.b32.xlu0 %v202, 64
  %v205 = vpop.permute.xlu0 %204
  %v206 = vsel %vm140, %v205, 0
  %208 = vmatpush.msra.mxu0 0.0
  %209 = vmatpush.msra.mxu0 0.0
  %210 = vmatpush.msra.mxu0 0.0
  %211 = vmatpush.msra.mxu0 0.0
  %212 = vmatpush.msra.mxu0 0.0
  %213 = vmatpush.msra.mxu0 0.0
  %214 = vmatpush.msra.mxu0 0.0
  %215 = vmatpush.msra.mxu0 0.0
  %216 = vmatpush.msra.mxu0 0.0
  %217 = vmatpush.msra.mxu0 0.0
  %218 = vmatpush.msra.mxu0 0.0
  %219 = vmatpush.msra.mxu0 0.0
  %220 = vmatpush.msra.mxu0 %v69
  %221 = vmatpush.msra.mxu0 %v68
  %222 = vmatpush.msra.mxu0 %v67
  %223 = vmatpush.msra.mxu0 %v66
  %224 = vmatmul.f32.gmra.mxu0 %v206
  %v225 = vpop.f32.mrf.mxu0
  %v226 = vadd.f32 0.0, %v225
  %227 = vdwg.mxu0
  %v228 = vadd.f32 %v120, %v226
  %v229 = vxor.u32 %v228, 2147483648
  %v230 = vmul.f32 %v229, 1.442695
  %v231 = vpow.pop %v230
  %v232 = vadd.f32 %v231, 1.0
  %v233 = vrcp.pop %v232
  %v234 = vmul.f32 %v232, %v233
  %v235 = vsub.f32 1.0, %v234
  %v236 = vmul.f32 %v233, %v235
  %v237 = vadd.f32 %v233, %v236
  %vm238 = vweird.f32 %v232
  %vm239 = vweird.f32 %v233
  %vm240 = vmor %vm238, %vm239
  %v241 = vsel %vm240, %v233, %v237
  %v242 = vand.u32 2147483647, %v232
  %vm243 = vcmp.eq.f32.partialorder %v242, 8.507059e+37
  %v244 = vand.u32 %v232, 2147483648
  %v245 = vor.u32 1.1754944e-38, %v244
  %v246 = vsel %vm243, %v245, %v241
  %v247 = vmul.f32 1.0, %v246
  %v248 = vmul.f32 %v247, %v196
  %v249 = vmul.f32 %v247, 2.0
  %v250 = vsub.f32 %v249, 1.0
  %252 = vrot.lane.b32.xlu0 %v250, 32
  %v253 = vpop.permute.xlu0 %252
  %v255 = vmul.f32 %v247, %v253
  %257 = vrot.lane.b32.xlu0 %v255, 32
  %v258 = vpop.permute.xlu0 %257
  %v260 = vadd.f32 %v248, %v258
  %v261 = vtanh.pop %v260
  %263 = vrot.lane.b32.xlu0 %v261, 32
  %v264 = vpop.permute.xlu0 %263
  %v266 = vmul.f32 %v247, %v264
  %268 = vrot.lane.b32.xlu0 %v266, 64
  %v269 = vpop.permute.xlu0 %268
  %v270 = vsel %vm140, %v269, 0
  %272 = vmatpush.msra.mxu0 0.0
  %273 = vmatpush.msra.mxu0 0.0
  %274 = vmatpush.msra.mxu0 0.0
  %275 = vmatpush.msra.mxu0 0.0
  %276 = vmatpush.msra.mxu0 0.0
  %277 = vmatpush.msra.mxu0 0.0
  %278 = vmatpush.msra.mxu0 0.0
  %279 = vmatpush.msra.mxu0 0.0
  %280 = vmatpush.msra.mxu0 0.0
  %281 = vmatpush.msra.mxu0 0.0
  %282 = vmatpush.msra.mxu0 0.0
  %283 = vmatpush.msra.mxu0 0.0
  %284 = vmatpush.msra.mxu0 %v69
  %285 = vmatpush.msra.mxu0 %v68
  %286 = vmatpush.msra.mxu0 %v67
  %287 = vmatpush.msra.mxu0 %v66
  %288 = vmatmul.f32.gmra.mxu0 %v270
  %v289 = vpop.f32.mrf.mxu0
  %v290 = vadd.f32 0.0, %v289
  %291 = vdwg.mxu0
  %v292 = vadd.f32 %v123, %v290
  %v293 = vxor.u32 %v292, 2147483648
  %v294 = vmul.f32 %v293, 1.442695
  %v295 = vpow.pop %v294
  %v296 = vadd.f32 %v295, 1.0
  %v297 = vrcp.pop %v296
  %v298 = vmul.f32 %v296, %v297
  %v299 = vsub.f32 1.0, %v298
  %v300 = vmul.f32 %v297, %v299
  %v301 = vadd.f32 %v297, %v300
  %vm302 = vweird.f32 %v296
  %vm303 = vweird.f32 %v297
  %vm304 = vmor %vm302, %vm303
  %v305 = vsel %vm304, %v297, %v301
  %v306 = vand.u32 2147483647, %v296
  %vm307 = vcmp.eq.f32.partialorder %v306, 8.507059e+37
  %v308 = vand.u32 %v296, 2147483648
  %v309 = vor.u32 1.1754944e-38, %v308
  %v310 = vsel %vm307, %v309, %v305
  %v311 = vmul.f32 1.0, %v310
  %v312 = vmul.f32 %v311, %v260
  %v313 = vmul.f32 %v311, 2.0
  %v314 = vsub.f32 %v313, 1.0
  %316 = vrot.lane.b32.xlu0 %v314, 32
  %v317 = vpop.permute.xlu0 %316
  %v319 = vmul.f32 %v311, %v317
  %321 = vrot.lane.b32.xlu0 %v319, 32
  %v322 = vpop.permute.xlu0 %321
  %v324 = vadd.f32 %v312, %v322
  %v325 = vtanh.pop %v324
  %327 = vrot.lane.b32.xlu0 %v325, 32
  %v328 = vpop.permute.xlu0 %327
  %v330 = vmul.f32 %v311, %v328
  %332 = vrot.lane.b32.xlu0 %v330, 64
  %v333 = vpop.permute.xlu0 %332
  %v334 = vsel %vm140, %v333, 0
  %336 = vmatpush.msra.mxu0 0.0
  %337 = vmatpush.msra.mxu0 0.0
  %338 = vmatpush.msra.mxu0 0.0
  %339 = vmatpush.msra.mxu0 0.0
  %340 = vmatpush.msra.mxu0 0.0
  %341 = vmatpush.msra.mxu0 0.0
  %342 = vmatpush.msra.mxu0 0.0
  %343 = vmatpush.msra.mxu0 0.0
  %344 = vmatpush.msra.mxu0 0.0
  %345 = vmatpush.msra.mxu0 0.0
  %346 = vmatpush.msra.mxu0 0.0
  %347 = vmatpush.msra.mxu0 0.0
  %348 = vmatpush.msra.mxu0 %v69
  %349 = vmatpush.msra.mxu0 %v68
  %350 = vmatpush.msra.mxu0 %v67
  %351 = vmatpush.msra.mxu0 %v66
  %352 = vmatmul.f32.gmra.mxu0 %v334
  %v353 = vpop.f32.mrf.mxu0
  %v354 = vadd.f32 0.0, %v353
  %355 = vdwg.mxu0
  %v356 = vadd.f32 %v126, %v354
  %v357 = vxor.u32 %v356, 2147483648
  %v358 = vmul.f32 %v357, 1.442695
  %v359 = vpow.pop %v358
  %v360 = vadd.f32 %v359, 1.0
  %v361 = vrcp.pop %v360
  %v362 = vmul.f32 %v360, %v361
  %v363 = vsub.f32 1.0, %v362
  %v364 = vmul.f32 %v361, %v363
  %v365 = vadd.f32 %v361, %v364
  %vm366 = vweird.f32 %v360
  %vm367 = vweird.f32 %v361
  %vm368 = vmor %vm366, %vm367
  %v369 = vsel %vm368, %v361, %v365
  %v370 = vand.u32 2147483647, %v360
  %vm371 = vcmp.eq.f32.partialorder %v370, 8.507059e+37
  %v372 = vand.u32 %v360, 2147483648
  %v373 = vor.u32 1.1754944e-38, %v372
  %v374 = vsel %vm371, %v373, %v369
  %v375 = vmul.f32 1.0, %v374
  %v376 = vmul.f32 %v375, %v324
  %v377 = vmul.f32 %v375, 2.0
  %v378 = vsub.f32 %v377, 1.0
  %380 = vrot.lane.b32.xlu0 %v378, 32
  %v381 = vpop.permute.xlu0 %380
  %v383 = vmul.f32 %v375, %v381
  %385 = vrot.lane.b32.xlu0 %v383, 32
  %v386 = vpop.permute.xlu0 %385
  %v388 = vadd.f32 %v376, %v386
  %v389 = vtanh.pop %v388
  %391 = vrot.lane.b32.xlu0 %v389, 32
  %v392 = vpop.permute.xlu0 %391
  %v394 = vmul.f32 %v375, %v392
  %396 = vrot.lane.b32.xlu0 %v394, 64
  %v397 = vpop.permute.xlu0 %396
  %v398 = vsel %vm140, %v397, 0
  %400 = vmatpush.msra.mxu0 0.0
  %401 = vmatpush.msra.mxu0 0.0
  %402 = vmatpush.msra.mxu0 0.0
  %403 = vmatpush.msra.mxu0 0.0
  %404 = vmatpush.msra.mxu0 0.0
  %405 = vmatpush.msra.mxu0 0.0
  %406 = vmatpush.msra.mxu0 0.0
  %407 = vmatpush.msra.mxu0 0.0
  %408 = vmatpush.msra.mxu0 0.0
  %409 = vmatpush.msra.mxu0 0.0
  %410 = vmatpush.msra.mxu0 0.0
  %411 = vmatpush.msra.mxu0 0.0
  %412 = vmatpush.msra.mxu0 %v69
  %413 = vmatpush.msra.mxu0 %v68
  %414 = vmatpush.msra.mxu0 %v67
  %415 = vmatpush.msra.mxu0 %v66
  %416 = vmatmul.f32.gmra.mxu0 %v398
  %v417 = vpop.f32.mrf.mxu0
  %v418 = vadd.f32 0.0, %v417
  %419 = vdwg.mxu0
  %v420 = vadd.f32 %v129, %v418
  %v421 = vxor.u32 %v420, 2147483648
  %v422 = vmul.f32 %v421, 1.442695
  %v423 = vpow.pop %v422
  %v424 = vadd.f32 %v423, 1.0
  %v425 = vrcp.pop %v424
  %v426 = vmul.f32 %v424, %v425
  %v427 = vsub.f32 1.0, %v426
  %v428 = vmul.f32 %v425, %v427
  %v429 = vadd.f32 %v425, %v428
  %vm430 = vweird.f32 %v424
  %vm431 = vweird.f32 %v425
  %vm432 = vmor %vm430, %vm431
  %v433 = vsel %vm432, %v425, %v429
  %v434 = vand.u32 2147483647, %v424
  %vm435 = vcmp.eq.f32.partialorder %v434, 8.507059e+37
  %v436 = vand.u32 %v424, 2147483648
  %v437 = vor.u32 1.1754944e-38, %v436
  %v438 = vsel %vm435, %v437, %v433
  %v439 = vmul.f32 1.0, %v438
  %v440 = vmul.f32 %v439, %v388
  %v441 = vmul.f32 %v439, 2.0
  %v442 = vsub.f32 %v441, 1.0
  %444 = vrot.lane.b32.xlu0 %v442, 32
  %v445 = vpop.permute.xlu0 %444
  %v447 = vmul.f32 %v439, %v445
  %449 = vrot.lane.b32.xlu0 %v447, 32
  %v450 = vpop.permute.xlu0 %449
  %v452 = vadd.f32 %v440, %v450
  %v453 = vtanh.pop %v452
  %455 = vrot.lane.b32.xlu0 %v453, 32
  %v456 = vpop.permute.xlu0 %455
  %v458 = vmul.f32 %v439, %v456
  %460 = vrot.lane.b32.xlu0 %v458, 64
  %v461 = vpop.permute.xlu0 %460
  %v462 = vsel %vm140, %v461, 0
  %464 = vmatpush.msra.mxu0 0.0
  %465 = vmatpush.msra.mxu0 0.0
  %466 = vmatpush.msra.mxu0 0.0
  %467 = vmatpush.msra.mxu0 0.0
  %468 = vmatpush.msra.mxu0 0.0
  %469 = vmatpush.msra.mxu0 0.0
  %470 = vmatpush.msra.mxu0 0.0
  %471 = vmatpush.msra.mxu0 0.0
  %472 = vmatpush.msra.mxu0 0.0
  %473 = vmatpush.msra.mxu0 0.0
  %474 = vmatpush.msra.mxu0 0.0
  %475 = vmatpush.msra.mxu0 0.0
  %476 = vmatpush.msra.mxu0 %v69
  %477 = vmatpush.msra.mxu0 %v68
  %478 = vmatpush.msra.mxu0 %v67
  %479 = vmatpush.msra.mxu0 %v66
  %480 = vmatmul.f32.gmra.mxu0 %v462
  %v481 = vpop.f32.mrf.mxu0
  %v482 = vadd.f32 0.0, %v481
  %483 = vdwg.mxu0
  %v484 = vadd.f32 %v132, %v482
  %v485 = vxor.u32 %v484, 2147483648
  %v486 = vmul.f32 %v485, 1.442695
  %v487 = vpow.pop %v486
  %v488 = vadd.f32 %v487, 1.0
  %v489 = vrcp.pop %v488
  %v490 = vmul.f32 %v488, %v489
  %v491 = vsub.f32 1.0, %v490
  %v492 = vmul.f32 %v489, %v491
  %v493 = vadd.f32 %v489, %v492
  %vm494 = vweird.f32 %v488
  %vm495 = vweird.f32 %v489
  %vm496 = vmor %vm494, %vm495
  %v497 = vsel %vm496, %v489, %v493
  %v498 = vand.u32 2147483647, %v488
  %vm499 = vcmp.eq.f32.partialorder %v498, 8.507059e+37
  %v500 = vand.u32 %v488, 2147483648
  %v501 = vor.u32 1.1754944e-38, %v500
  %v502 = vsel %vm499, %v501, %v497
  %v503 = vmul.f32 1.0, %v502
  %v504 = vmul.f32 %v503, %v452
  %v505 = vmul.f32 %v503, 2.0
  %v506 = vsub.f32 %v505, 1.0
  %508 = vrot.lane.b32.xlu0 %v506, 32
  %v509 = vpop.permute.xlu0 %508
  %v511 = vmul.f32 %v503, %v509
  %513 = vrot.lane.b32.xlu0 %v511, 32
  %v514 = vpop.permute.xlu0 %513
  %v516 = vadd.f32 %v504, %v514
  %v517 = vtanh.pop %v516
  %519 = vrot.lane.b32.xlu0 %v517, 32
  %v520 = vpop.permute.xlu0 %519
  %v522 = vmul.f32 %v503, %v520
  %524 = vrot.lane.b32.xlu0 %v522, 64
  %v525 = vpop.permute.xlu0 %524
  %v526 = vsel %vm140, %v525, 0
  %528 = vmatpush.msra.mxu0 0.0
  %529 = vmatpush.msra.mxu0 0.0
  %530 = vmatpush.msra.mxu0 0.0
  %531 = vmatpush.msra.mxu0 0.0
  %532 = vmatpush.msra.mxu0 0.0
  %533 = vmatpush.msra.mxu0 0.0
  %534 = vmatpush.msra.mxu0 0.0
  %535 = vmatpush.msra.mxu0 0.0
  %536 = vmatpush.msra.mxu0 0.0
  %537 = vmatpush.msra.mxu0 0.0
  %538 = vmatpush.msra.mxu0 0.0
  %539 = vmatpush.msra.mxu0 0.0
  %540 = vmatpush.msra.mxu0 %v69
  %541 = vmatpush.msra.mxu0 %v68
  %542 = vmatpush.msra.mxu0 %v67
  %543 = vmatpush.msra.mxu0 %v66
  %544 = vmatmul.f32.gmra.mxu0 %v526
  %v545 = vpop.f32.mrf.mxu0
  %v546 = vadd.f32 0.0, %v545
  %547 = vdwg.mxu0
  %v548 = vadd.f32 %v135, %v546
  %v549 = vxor.u32 %v548, 2147483648
  %v550 = vmul.f32 %v549, 1.442695
  %v551 = vpow.pop %v550
  %v552 = vadd.f32 %v551, 1.0
  %v553 = vrcp.pop %v552
  %v554 = vmul.f32 %v552, %v553
  %v555 = vsub.f32 1.0, %v554
  %v556 = vmul.f32 %v553, %v555
  %v557 = vadd.f32 %v553, %v556
  %vm558 = vweird.f32 %v552
  %vm559 = vweird.f32 %v553
  %vm560 = vmor %vm558, %vm559
  %v561 = vsel %vm560, %v553, %v557
  %v562 = vand.u32 2147483647, %v552
  %vm563 = vcmp.eq.f32.partialorder %v562, 8.507059e+37
  %v564 = vand.u32 %v552, 2147483648
  %v565 = vor.u32 1.1754944e-38, %v564
  %v566 = vsel %vm563, %v565, %v561
  %v567 = vmul.f32 1.0, %v566
  %v568 = vmul.f32 %v567, %v516
  %v569 = vmul.f32 %v567, 2.0
  %v570 = vsub.f32 %v569, 1.0
  %572 = vrot.lane.b32.xlu0 %v570, 32
  %v573 = vpop.permute.xlu0 %572
  %v575 = vmul.f32 %v567, %v573
  %577 = vrot.lane.b32.xlu0 %v575, 32
  %v578 = vpop.permute.xlu0 %577
  %v580 = vadd.f32 %v568, %v578
  %v581 = vtanh.pop %v580
  %583 = vrot.lane.b32.xlu0 %v581, 32
  %v584 = vpop.permute.xlu0 %583
  %v586 = vmul.f32 %v567, %v584
  %588 = vrot.lane.b32.xlu0 %v586, 64
  %v589 = vpop.permute.xlu0 %588
  %v590 = vsel %vm140, %v589, 0
  %592 = vmatpush.msra.mxu0 0.0
  %593 = vmatpush.msra.mxu0 0.0
  %594 = vmatpush.msra.mxu0 0.0
  %595 = vmatpush.msra.mxu0 0.0
  %596 = vmatpush.msra.mxu0 0.0
  %597 = vmatpush.msra.mxu0 0.0
  %598 = vmatpush.msra.mxu0 0.0
  %599 = vmatpush.msra.mxu0 0.0
  %600 = vmatpush.msra.mxu0 0.0
  %601 = vmatpush.msra.mxu0 0.0
  %602 = vmatpush.msra.mxu0 0.0
  %603 = vmatpush.msra.mxu0 0.0
  %604 = vmatpush.msra.mxu0 %v69
  %605 = vmatpush.msra.mxu0 %v68
  %606 = vmatpush.msra.mxu0 %v67
  %607 = vmatpush.msra.mxu0 %v66
  %608 = vmatmul.f32.gmra.mxu0 %v590
  %v609 = vpop.f32.mrf.mxu0
  %v610 = vadd.f32 0.0, %v609
  %611 = vdwg.mxu0
  %v612 = vadd.f32 %v138, %v610
  %v613 = vxor.u32 %v612, 2147483648
  %v614 = vmul.f32 %v613, 1.442695
  %v615 = vpow.pop %v614
  %v616 = vadd.f32 %v615, 1.0
  %v617 = vrcp.pop %v616
  %v618 = vmul.f32 %v616, %v617
  %v619 = vsub.f32 1.0, %v618
  %v620 = vmul.f32 %v617, %v619
  %v621 = vadd.f32 %v617, %v620
  %vm622 = vweird.f32 %v616
  %vm623 = vweird.f32 %v617
  %vm624 = vmor %vm622, %vm623
  %v625 = vsel %vm624, %v617, %v621
  %v626 = vand.u32 2147483647, %v616
  %vm627 = vcmp.eq.f32.partialorder %v626, 8.507059e+37
  %v628 = vand.u32 %v616, 2147483648
  %v629 = vor.u32 1.1754944e-38, %v628
  %v630 = vsel %vm627, %v629, %v625
  %v631 = vmul.f32 1.0, %v630
  %v632 = vmul.f32 %v631, %v580
  %v633 = vmul.f32 %v631, 2.0
  %v634 = vsub.f32 %v633, 1.0
  %636 = vrot.lane.b32.xlu0 %v634, 32
  %v637 = vpop.permute.xlu0 %636
  %v639 = vmul.f32 %v631, %v637
  %641 = vrot.lane.b32.xlu0 %v639, 32
  %v642 = vpop.permute.xlu0 %641
  %v644 = vadd.f32 %v632, %v642
  %v645 = vtanh.pop %v644
  %647 = vrot.lane.b32.xlu0 %v645, 32
  %v648 = vpop.permute.xlu0 %647
  %v650 = vmul.f32 %v631, %v648
  %v651 = vld [vmem:[%s5] sm:$0xff]
  %v652 = vld [vmem:[%s5 + $0x8] sm:$0xff]
  %v653 = vld [vmem:[%s5 + $0x10] sm:$0xff]
  %v654 = vld [vmem:[%s5 + $0x18] sm:$0xff]
  %v655 = vld [vmem:[%s6] sm:$0xff]
  %v656 = vld [vmem:[%s6 + $0x8] sm:$0xff]
  %v657 = vld [vmem:[%s6 + $0x10] sm:$0xff]
  %v658 = vld [vmem:[%s6 + $0x18] sm:$0xff]
  %v659 = vld [vmem:[%s7] sm:$0x1]
  %v661 = vperm.slane %v659, 0
  %664 = vrot.lane.b32.xlu0 %v650, 64
  %v665 = vpop.permute.xlu0 %664
  %v666 = vsel %vm140, %v665, 0
  %668 = vmatpush.msra.mxu0 0.0
  %669 = vmatpush.msra.mxu0 0.0
  %670 = vmatpush.msra.mxu0 0.0
  %671 = vmatpush.msra.mxu0 0.0
  %672 = vmatpush.msra.mxu0 0.0
  %673 = vmatpush.msra.mxu0 0.0
  %674 = vmatpush.msra.mxu0 0.0
  %675 = vmatpush.msra.mxu0 0.0
  %676 = vmatpush.msra.mxu0 0.0
  %677 = vmatpush.msra.mxu0 0.0
  %678 = vmatpush.msra.mxu0 0.0
  %679 = vmatpush.msra.mxu0 0.0
  %680 = vmatpush.msra.mxu0 %v654
  %681 = vmatpush.msra.mxu0 %v653
  %682 = vmatpush.msra.mxu0 %v652
  %683 = vmatpush.msra.mxu0 %v651
  %684 = vmatmul.f32.gmra.mxu0 %v206
  %v685 = vpop.f32.mrf.mxu0
  %v686 = vadd.f32 %v661, %v685
  %687 = vmatmul.f32.gmra.mxu0 %v270
  %v688 = vpop.f32.mrf.mxu0
  %v689 = vadd.f32 %v661, %v688
  %690 = vmatmul.f32.gmra.mxu0 %v334
  %v691 = vpop.f32.mrf.mxu0
  %v692 = vadd.f32 %v661, %v691
  %693 = vmatmul.f32.gmra.mxu0 %v398
  %v694 = vpop.f32.mrf.mxu0
  %v695 = vadd.f32 %v661, %v694
  %696 = vmatmul.f32.gmra.mxu0 %v462
  %v697 = vpop.f32.mrf.mxu0
  %v698 = vadd.f32 %v661, %v697
  %699 = vmatmul.f32.gmra.mxu0 %v526
  %v700 = vpop.f32.mrf.mxu0
  %v701 = vadd.f32 %v661, %v700
  %702 = vmatmul.f32.gmra.mxu0 %v590
  %v703 = vpop.f32.mrf.mxu0
  %v704 = vadd.f32 %v661, %v703
  %705 = vmatmul.f32.gmra.mxu0 %v666
  %v706 = vpop.f32.mrf.mxu0
  %v707 = vadd.f32 %v661, %v706
  %708 = vdwg.mxu0
  %709 = vmatpush.msra.mxu0 0.0
  %710 = vmatpush.msra.mxu0 0.0
  %711 = vmatpush.msra.mxu0 0.0
  %712 = vmatpush.msra.mxu0 0.0
  %713 = vmatpush.msra.mxu0 0.0
  %714 = vmatpush.msra.mxu0 0.0
  %715 = vmatpush.msra.mxu0 0.0
  %716 = vmatpush.msra.mxu0 0.0
  %717 = vmatpush.msra.mxu0 0.0
  %718 = vmatpush.msra.mxu0 0.0
  %719 = vmatpush.msra.mxu0 0.0
  %720 = vmatpush.msra.mxu0 0.0
  %721 = vmatpush.msra.mxu0 %v658
  %722 = vmatpush.msra.mxu0 %v657
  %723 = vmatpush.msra.mxu0 %v656
  %724 = vmatpush.msra.mxu0 %v655
  %725 = vmatmul.f32.gmra.mxu0 %v142
  %v726 = vpop.f32.mrf.mxu0
  %v727 = vadd.f32 0.0, %v726
  %728 = vdwg.mxu0
  %v729 = vadd.f32 %v686, %v727
  %v730 = vxor.u32 %v729, 2147483648
  %v731 = vmul.f32 %v730, 1.442695
  %v732 = vpow.pop %v731
  %v733 = vadd.f32 %v732, 1.0
  %v734 = vrcp.pop %v733
  %v735 = vmul.f32 %v733, %v734
  %v736 = vsub.f32 1.0, %v735
  %v737 = vmul.f32 %v734, %v736
  %v738 = vadd.f32 %v734, %v737
  %vm739 = vweird.f32 %v733
  %vm740 = vweird.f32 %v734
  %vm741 = vmor %vm739, %vm740
  %v742 = vsel %vm741, %v734, %v738
  %v743 = vand.u32 2147483647, %v733
  %vm744 = vcmp.eq.f32.partialorder %v743, 8.507059e+37
  %v745 = vand.u32 %v733, 2147483648
  %v746 = vor.u32 1.1754944e-38, %v745
  %v747 = vsel %vm744, %v746, %v742
  %v748 = vmul.f32 1.0, %v747
  %v749 = vmul.f32 %v748, 0.0
  %v750 = vmul.f32 %v748, 2.0
  %v751 = vsub.f32 %v750, 1.0
  %753 = vrot.lane.b32.xlu0 %v751, 32
  %v754 = vpop.permute.xlu0 %753
  %v756 = vmul.f32 %v748, %v754
  %758 = vrot.lane.b32.xlu0 %v756, 32
  %v759 = vpop.permute.xlu0 %758
  %v761 = vadd.f32 %v749, %v759
  %v762 = vtanh.pop %v761
  %764 = vrot.lane.b32.xlu0 %v762, 32
  %v765 = vpop.permute.xlu0 %764
  %v767 = vmul.f32 %v748, %v765
  %769 = vrot.lane.b32.xlu0 %v767, 64
  %v770 = vpop.permute.xlu0 %769
  %v771 = vsel %vm140, %v770, 0
  %773 = vmatpush.msra.mxu0 0.0
  %774 = vmatpush.msra.mxu0 0.0
  %775 = vmatpush.msra.mxu0 0.0
  %776 = vmatpush.msra.mxu0 0.0
  %777 = vmatpush.msra.mxu0 0.0
  %778 = vmatpush.msra.mxu0 0.0
  %779 = vmatpush.msra.mxu0 0.0
  %780 = vmatpush.msra.mxu0 0.0
  %781 = vmatpush.msra.mxu0 0.0
  %782 = vmatpush.msra.mxu0 0.0
  %783 = vmatpush.msra.mxu0 0.0
  %784 = vmatpush.msra.mxu0 0.0
  %785 = vmatpush.msra.mxu0 %v658
  %786 = vmatpush.msra.mxu0 %v657
  %787 = vmatpush.msra.mxu0 %v656
  %788 = vmatpush.msra.mxu0 %v655
  %789 = vmatmul.f32.gmra.mxu0 %v771
  %v790 = vpop.f32.mrf.mxu0
  %v791 = vadd.f32 0.0, %v790
  %792 = vdwg.mxu0
  %v793 = vadd.f32 %v689, %v791
  %v794 = vxor.u32 %v793, 2147483648
  %v795 = vmul.f32 %v794, 1.442695
  %v796 = vpow.pop %v795
  %v797 = vadd.f32 %v796, 1.0
  %v798 = vrcp.pop %v797
  %v799 = vmul.f32 %v797, %v798
  %v800 = vsub.f32 1.0, %v799
  %v801 = vmul.f32 %v798, %v800
  %v802 = vadd.f32 %v798, %v801
  %vm803 = vweird.f32 %v797
  %vm804 = vweird.f32 %v798
  %vm805 = vmor %vm803, %vm804
  %v806 = vsel %vm805, %v798, %v802
  %v807 = vand.u32 2147483647, %v797
  %vm808 = vcmp.eq.f32.partialorder %v807, 8.507059e+37
  %v809 = vand.u32 %v797, 2147483648
  %v810 = vor.u32 1.1754944e-38, %v809
  %v811 = vsel %vm808, %v810, %v806
  %v812 = vmul.f32 1.0, %v811
  %v813 = vmul.f32 %v812, %v761
  %v814 = vmul.f32 %v812, 2.0
  %v815 = vsub.f32 %v814, 1.0
  %817 = vrot.lane.b32.xlu0 %v815, 32
  %v818 = vpop.permute.xlu0 %817
  %v820 = vmul.f32 %v812, %v818
  %822 = vrot.lane.b32.xlu0 %v820, 32
  %v823 = vpop.permute.xlu0 %822
  %v825 = vadd.f32 %v813, %v823
  %v826 = vtanh.pop %v825
  %828 = vrot.lane.b32.xlu0 %v826, 32
  %v829 = vpop.permute.xlu0 %828
  %v831 = vmul.f32 %v812, %v829
  %833 = vrot.lane.b32.xlu0 %v831, 64
  %v834 = vpop.permute.xlu0 %833
  %v835 = vsel %vm140, %v834, 0
  %837 = vmatpush.msra.mxu0 0.0
  %838 = vmatpush.msra.mxu0 0.0
  %839 = vmatpush.msra.mxu0 0.0
  %840 = vmatpush.msra.mxu0 0.0
  %841 = vmatpush.msra.mxu0 0.0
  %842 = vmatpush.msra.mxu0 0.0
  %843 = vmatpush.msra.mxu0 0.0
  %844 = vmatpush.msra.mxu0 0.0
  %845 = vmatpush.msra.mxu0 0.0
  %846 = vmatpush.msra.mxu0 0.0
  %847 = vmatpush.msra.mxu0 0.0
  %848 = vmatpush.msra.mxu0 0.0
  %849 = vmatpush.msra.mxu0 %v658
  %850 = vmatpush.msra.mxu0 %v657
  %851 = vmatpush.msra.mxu0 %v656
  %852 = vmatpush.msra.mxu0 %v655
  %853 = vmatmul.f32.gmra.mxu0 %v835
  %v854 = vpop.f32.mrf.mxu0
  %v855 = vadd.f32 0.0, %v854
  %856 = vdwg.mxu0
  %v857 = vadd.f32 %v692, %v855
  %v858 = vxor.u32 %v857, 2147483648
  %v859 = vmul.f32 %v858, 1.442695
  %v860 = vpow.pop %v859
  %v861 = vadd.f32 %v860, 1.0
  %v862 = vrcp.pop %v861
  %v863 = vmul.f32 %v861, %v862
  %v864 = vsub.f32 1.0, %v863
  %v865 = vmul.f32 %v862, %v864
  %v866 = vadd.f32 %v862, %v865
  %vm867 = vweird.f32 %v861
  %vm868 = vweird.f32 %v862
  %vm869 = vmor %vm867, %vm868
  %v870 = vsel %vm869, %v862, %v866
  %v871 = vand.u32 2147483647, %v861
  %vm872 = vcmp.eq.f32.partialorder %v871, 8.507059e+37
  %v873 = vand.u32 %v861, 2147483648
  %v874 = vor.u32 1.1754944e-38, %v873
  %v875 = vsel %vm872, %v874, %v870
  %v876 = vmul.f32 1.0, %v875
  %v877 = vmul.f32 %v876, %v825
  %v878 = vmul.f32 %v876, 2.0
  %v879 = vsub.f32 %v878, 1.0
  %881 = vrot.lane.b32.xlu0 %v879, 32
  %v882 = vpop.permute.xlu0 %881
  %v884 = vmul.f32 %v876, %v882
  %886 = vrot.lane.b32.xlu0 %v884, 32
  %v887 = vpop.permute.xlu0 %886
  %v889 = vadd.f32 %v877, %v887
  %v890 = vtanh.pop %v889
  %892 = vrot.lane.b32.xlu0 %v890, 32
  %v893 = vpop.permute.xlu0 %892
  %v895 = vmul.f32 %v876, %v893
  %897 = vrot.lane.b32.xlu0 %v895, 64
  %v898 = vpop.permute.xlu0 %897
  %v899 = vsel %vm140, %v898, 0
  %901 = vmatpush.msra.mxu0 0.0
  %902 = vmatpush.msra.mxu0 0.0
  %903 = vmatpush.msra.mxu0 0.0
  %904 = vmatpush.msra.mxu0 0.0
  %905 = vmatpush.msra.mxu0 0.0
  %906 = vmatpush.msra.mxu0 0.0
  %907 = vmatpush.msra.mxu0 0.0
  %908 = vmatpush.msra.mxu0 0.0
  %909 = vmatpush.msra.mxu0 0.0
  %910 = vmatpush.msra.mxu0 0.0
  %911 = vmatpush.msra.mxu0 0.0
  %912 = vmatpush.msra.mxu0 0.0
  %913 = vmatpush.msra.mxu0 %v658
  %914 = vmatpush.msra.mxu0 %v657
  %915 = vmatpush.msra.mxu0 %v656
  %916 = vmatpush.msra.mxu0 %v655
  %917 = vmatmul.f32.gmra.mxu0 %v899
  %v918 = vpop.f32.mrf.mxu0
  %v919 = vadd.f32 0.0, %v918
  %920 = vdwg.mxu0
  %v921 = vadd.f32 %v695, %v919
  %v922 = vxor.u32 %v921, 2147483648
  %v923 = vmul.f32 %v922, 1.442695
  %v924 = vpow.pop %v923
  %v925 = vadd.f32 %v924, 1.0
  %v926 = vrcp.pop %v925
  %v927 = vmul.f32 %v925, %v926
  %v928 = vsub.f32 1.0, %v927
  %v929 = vmul.f32 %v926, %v928
  %v930 = vadd.f32 %v926, %v929
  %vm931 = vweird.f32 %v925
  %vm932 = vweird.f32 %v926
  %vm933 = vmor %vm931, %vm932
  %v934 = vsel %vm933, %v926, %v930
  %v935 = vand.u32 2147483647, %v925
  %vm936 = vcmp.eq.f32.partialorder %v935, 8.507059e+37
  %v937 = vand.u32 %v925, 2147483648
  %v938 = vor.u32 1.1754944e-38, %v937
  %v939 = vsel %vm936, %v938, %v934
  %v940 = vmul.f32 1.0, %v939
  %v941 = vmul.f32 %v940, %v889
  %v942 = vmul.f32 %v940, 2.0
  %v943 = vsub.f32 %v942, 1.0
  %945 = vrot.lane.b32.xlu0 %v943, 32
  %v946 = vpop.permute.xlu0 %945
  %v948 = vmul.f32 %v940, %v946
  %950 = vrot.lane.b32.xlu0 %v948, 32
  %v951 = vpop.permute.xlu0 %950
  %v953 = vadd.f32 %v941, %v951
  %v954 = vtanh.pop %v953
  %956 = vrot.lane.b32.xlu0 %v954, 32
  %v957 = vpop.permute.xlu0 %956
  %v959 = vmul.f32 %v940, %v957
  %961 = vrot.lane.b32.xlu0 %v959, 64
  %v962 = vpop.permute.xlu0 %961
  %v963 = vsel %vm140, %v962, 0
  %965 = vmatpush.msra.mxu0 0.0
  %966 = vmatpush.msra.mxu0 0.0
  %967 = vmatpush.msra.mxu0 0.0
  %968 = vmatpush.msra.mxu0 0.0
  %969 = vmatpush.msra.mxu0 0.0
  %970 = vmatpush.msra.mxu0 0.0
  %971 = vmatpush.msra.mxu0 0.0
  %972 = vmatpush.msra.mxu0 0.0
  %973 = vmatpush.msra.mxu0 0.0
  %974 = vmatpush.msra.mxu0 0.0
  %975 = vmatpush.msra.mxu0 0.0
  %976 = vmatpush.msra.mxu0 0.0
  %977 = vmatpush.msra.mxu0 %v658
  %978 = vmatpush.msra.mxu0 %v657
  %979 = vmatpush.msra.mxu0 %v656
  %980 = vmatpush.msra.mxu0 %v655
  %981 = vmatmul.f32.gmra.mxu0 %v963
  %v982 = vpop.f32.mrf.mxu0
  %v983 = vadd.f32 0.0, %v982
  %984 = vdwg.mxu0
  %v985 = vadd.f32 %v698, %v983
  %v986 = vxor.u32 %v985, 2147483648
  %v987 = vmul.f32 %v986, 1.442695
  %v988 = vpow.pop %v987
  %v989 = vadd.f32 %v988, 1.0
  %v990 = vrcp.pop %v989
  %v991 = vmul.f32 %v989, %v990
  %v992 = vsub.f32 1.0, %v991
  %v993 = vmul.f32 %v990, %v992
  %v994 = vadd.f32 %v990, %v993
  %vm995 = vweird.f32 %v989
  %vm996 = vweird.f32 %v990
  %vm997 = vmor %vm995, %vm996
  %v998 = vsel %vm997, %v990, %v994
  %v999 = vand.u32 2147483647, %v989
  %vm1000 = vcmp.eq.f32.partialorder %v999, 8.507059e+37
  %v1001 = vand.u32 %v989, 2147483648
  %v1002 = vor.u32 1.1754944e-38, %v1001
  %v1003 = vsel %vm1000, %v1002, %v998
  %v1004 = vmul.f32 1.0, %v1003
  %v1005 = vmul.f32 %v1004, %v953
  %v1006 = vmul.f32 %v1004, 2.0
  %v1007 = vsub.f32 %v1006, 1.0
  %1009 = vrot.lane.b32.xlu0 %v1007, 32
  %v1010 = vpop.permute.xlu0 %1009
  %v1012 = vmul.f32 %v1004, %v1010
  %1014 = vrot.lane.b32.xlu0 %v1012, 32
  %v1015 = vpop.permute.xlu0 %1014
  %v1017 = vadd.f32 %v1005, %v1015
  %v1018 = vtanh.pop %v1017
  %1020 = vrot.lane.b32.xlu0 %v1018, 32
  %v1021 = vpop.permute.xlu0 %1020
  %v1023 = vmul.f32 %v1004, %v1021
  %1025 = vrot.lane.b32.xlu0 %v1023, 64
  %v1026 = vpop.permute.xlu0 %1025
  %v1027 = vsel %vm140, %v1026, 0
  %1029 = vmatpush.msra.mxu0 0.0
  %1030 = vmatpush.msra.mxu0 0.0
  %1031 = vmatpush.msra.mxu0 0.0
  %1032 = vmatpush.msra.mxu0 0.0
  %1033 = vmatpush.msra.mxu0 0.0
  %1034 = vmatpush.msra.mxu0 0.0
  %1035 = vmatpush.msra.mxu0 0.0
  %1036 = vmatpush.msra.mxu0 0.0
  %1037 = vmatpush.msra.mxu0 0.0
  %1038 = vmatpush.msra.mxu0 0.0
  %1039 = vmatpush.msra.mxu0 0.0
  %1040 = vmatpush.msra.mxu0 0.0
  %1041 = vmatpush.msra.mxu0 %v658
  %1042 = vmatpush.msra.mxu0 %v657
  %1043 = vmatpush.msra.mxu0 %v656
  %1044 = vmatpush.msra.mxu0 %v655
  %1045 = vmatmul.f32.gmra.mxu0 %v1027
  %v1046 = vpop.f32.mrf.mxu0
  %v1047 = vadd.f32 0.0, %v1046
  %1048 = vdwg.mxu0
  %v1049 = vadd.f32 %v701, %v1047
  %v1050 = vxor.u32 %v1049, 2147483648
  %v1051 = vmul.f32 %v1050, 1.442695
  %v1052 = vpow.pop %v1051
  %v1053 = vadd.f32 %v1052, 1.0
  %v1054 = vrcp.pop %v1053
  %v1055 = vmul.f32 %v1053, %v1054
  %v1056 = vsub.f32 1.0, %v1055
  %v1057 = vmul.f32 %v1054, %v1056
  %v1058 = vadd.f32 %v1054, %v1057
  %vm1059 = vweird.f32 %v1053
  %vm1060 = vweird.f32 %v1054
  %vm1061 = vmor %vm1059, %vm1060
  %v1062 = vsel %vm1061, %v1054, %v1058
  %v1063 = vand.u32 2147483647, %v1053
  %vm1064 = vcmp.eq.f32.partialorder %v1063, 8.507059e+37
  %v1065 = vand.u32 %v1053, 2147483648
  %v1066 = vor.u32 1.1754944e-38, %v1065
  %v1067 = vsel %vm1064, %v1066, %v1062
  %v1068 = vmul.f32 1.0, %v1067
  %v1069 = vmul.f32 %v1068, %v1017
  %v1070 = vmul.f32 %v1068, 2.0
  %v1071 = vsub.f32 %v1070, 1.0
  %1073 = vrot.lane.b32.xlu0 %v1071, 32
  %v1074 = vpop.permute.xlu0 %1073
  %v1076 = vmul.f32 %v1068, %v1074
  %1078 = vrot.lane.b32.xlu0 %v1076, 32
  %v1079 = vpop.permute.xlu0 %1078
  %v1081 = vadd.f32 %v1069, %v1079
  %v1082 = vtanh.pop %v1081
  %1084 = vrot.lane.b32.xlu0 %v1082, 32
  %v1085 = vpop.permute.xlu0 %1084
  %v1087 = vmul.f32 %v1068, %v1085
  %1089 = vrot.lane.b32.xlu0 %v1087, 64
  %v1090 = vpop.permute.xlu0 %1089
  %v1091 = vsel %vm140, %v1090, 0
  %1093 = vmatpush.msra.mxu0 0.0
  %1094 = vmatpush.msra.mxu0 0.0
  %1095 = vmatpush.msra.mxu0 0.0
  %1096 = vmatpush.msra.mxu0 0.0
  %1097 = vmatpush.msra.mxu0 0.0
  %1098 = vmatpush.msra.mxu0 0.0
  %1099 = vmatpush.msra.mxu0 0.0
  %1100 = vmatpush.msra.mxu0 0.0
  %1101 = vmatpush.msra.mxu0 0.0
  %1102 = vmatpush.msra.mxu0 0.0
  %1103 = vmatpush.msra.mxu0 0.0
  %1104 = vmatpush.msra.mxu0 0.0
  %1105 = vmatpush.msra.mxu0 %v658
  %1106 = vmatpush.msra.mxu0 %v657
  %1107 = vmatpush.msra.mxu0 %v656
  %1108 = vmatpush.msra.mxu0 %v655
  %1109 = vmatmul.f32.gmra.mxu0 %v1091
  %v1110 = vpop.f32.mrf.mxu0
  %v1111 = vadd.f32 0.0, %v1110
  %1112 = vdwg.mxu0
  %v1113 = vadd.f32 %v704, %v1111
  %v1114 = vxor.u32 %v1113, 2147483648
  %v1115 = vmul.f32 %v1114, 1.442695
  %v1116 = vpow.pop %v1115
  %v1117 = vadd.f32 %v1116, 1.0
  %v1118 = vrcp.pop %v1117
  %v1119 = vmul.f32 %v1117, %v1118
  %v1120 = vsub.f32 1.0, %v1119
  %v1121 = vmul.f32 %v1118, %v1120
  %v1122 = vadd.f32 %v1118, %v1121
  %vm1123 = vweird.f32 %v1117
  %vm1124 = vweird.f32 %v1118
  %vm1125 = vmor %vm1123, %vm1124
  %v1126 = vsel %vm1125, %v1118, %v1122
  %v1127 = vand.u32 2147483647, %v1117
  %vm1128 = vcmp.eq.f32.partialorder %v1127, 8.507059e+37
  %v1129 = vand.u32 %v1117, 2147483648
  %v1130 = vor.u32 1.1754944e-38, %v1129
  %v1131 = vsel %vm1128, %v1130, %v1126
  %v1132 = vmul.f32 1.0, %v1131
  %v1133 = vmul.f32 %v1132, %v1081
  %v1134 = vmul.f32 %v1132, 2.0
  %v1135 = vsub.f32 %v1134, 1.0
  %1137 = vrot.lane.b32.xlu0 %v1135, 32
  %v1138 = vpop.permute.xlu0 %1137
  %v1140 = vmul.f32 %v1132, %v1138
  %1142 = vrot.lane.b32.xlu0 %v1140, 32
  %v1143 = vpop.permute.xlu0 %1142
  %v1145 = vadd.f32 %v1133, %v1143
  %v1146 = vtanh.pop %v1145
  %1148 = vrot.lane.b32.xlu0 %v1146, 32
  %v1149 = vpop.permute.xlu0 %1148
  %v1151 = vmul.f32 %v1132, %v1149
  %1153 = vrot.lane.b32.xlu0 %v1151, 64
  %v1154 = vpop.permute.xlu0 %1153
  %v1155 = vsel %vm140, %v1154, 0
  %1157 = vmatpush.msra.mxu0 0.0
  %1158 = vmatpush.msra.mxu0 0.0
  %1159 = vmatpush.msra.mxu0 0.0
  %1160 = vmatpush.msra.mxu0 0.0
  %1161 = vmatpush.msra.mxu0 0.0
  %1162 = vmatpush.msra.mxu0 0.0
  %1163 = vmatpush.msra.mxu0 0.0
  %1164 = vmatpush.msra.mxu0 0.0
  %1165 = vmatpush.msra.mxu0 0.0
  %1166 = vmatpush.msra.mxu0 0.0
  %1167 = vmatpush.msra.mxu0 0.0
  %1168 = vmatpush.msra.mxu0 0.0
  %1169 = vmatpush.msra.mxu0 %v658
  %1170 = vmatpush.msra.mxu0 %v657
  %1171 = vmatpush.msra.mxu0 %v656
  %1172 = vmatpush.msra.mxu0 %v655
  %1173 = vmatmul.f32.gmra.mxu0 %v1155
  %v1174 = vpop.f32.mrf.mxu0
  %v1175 = vadd.f32 0.0, %v1174
  %1176 = vdwg.mxu0
  %v1177 = vadd.f32 %v707, %v1175
  %v1178 = vxor.u32 %v1177, 2147483648
  %v1179 = vmul.f32 %v1178, 1.442695
  %v1180 = vpow.pop %v1179
  %v1181 = vadd.f32 %v1180, 1.0
  %v1182 = vrcp.pop %v1181
  %v1183 = vmul.f32 %v1181, %v1182
  %v1184 = vsub.f32 1.0, %v1183
  %v1185 = vmul.f32 %v1182, %v1184
  %v1186 = vadd.f32 %v1182, %v1185
  %vm1187 = vweird.f32 %v1181
  %vm1188 = vweird.f32 %v1182
  %vm1189 = vmor %vm1187, %vm1188
  %v1190 = vsel %vm1189, %v1182, %v1186
  %v1191 = vand.u32 2147483647, %v1181
  %vm1192 = vcmp.eq.f32.partialorder %v1191, 8.507059e+37
  %v1193 = vand.u32 %v1181, 2147483648
  %v1194 = vor.u32 1.1754944e-38, %v1193
  %v1195 = vsel %vm1192, %v1194, %v1190
  %v1196 = vmul.f32 1.0, %v1195
  %v1197 = vmul.f32 %v1196, %v1145
  %v1198 = vmul.f32 %v1196, 2.0
  %v1199 = vsub.f32 %v1198, 1.0
  %1201 = vrot.lane.b32.xlu0 %v1199, 32
  %v1202 = vpop.permute.xlu0 %1201
  %v1204 = vmul.f32 %v1196, %v1202
  %1206 = vrot.lane.b32.xlu0 %v1204, 32
  %v1207 = vpop.permute.xlu0 %1206
  %v1209 = vadd.f32 %v1197, %v1207
  %v1210 = vtanh.pop %v1209
  %1212 = vrot.lane.b32.xlu0 %v1210, 32
  %v1213 = vpop.permute.xlu0 %1212
  %v1215 = vmul.f32 %v1196, %v1213
  %v1216 = vld [vmem:[%s1] sm:$0xff]
  %v1217 = vld [vmem:[%s1 + $0x8] sm:$0xff]
  %v1218 = vld [vmem:[%s1 + $0x10] sm:$0xff]
  %v1219 = vld [vmem:[%s1 + $0x18] sm:$0xff]
  %v1220 = vld [vmem:[%s1 + $0x20] sm:$0xff]
  %v1221 = vld [vmem:[%s1 + $0x28] sm:$0xff]
  %v1222 = vld [vmem:[%s1 + $0x30] sm:$0xff]
  %v1223 = vld [vmem:[%s1 + $0x38] sm:$0xff]
  %v1224 = vld [vmem:[%s8] sm:$0xff]
  %v1225 = vld [vmem:[%s8 + $0x8] sm:$0xff]
  %v1226 = vld [vmem:[%s8 + $0x10] sm:$0xff]
  %v1227 = vld [vmem:[%s8 + $0x18] sm:$0xff]
  %v1228 = vld [vmem:[%s8 + $0x20] sm:$0xff]
  %v1229 = vld [vmem:[%s8 + $0x28] sm:$0xff]
  %v1230 = vld [vmem:[%s8 + $0x30] sm:$0xff]
  %v1231 = vld [vmem:[%s8 + $0x38] sm:$0xff]
  %v1232 = vld [vmem:[%s8 + $0x40] sm:$0xff]
  %v1233 = vld [vmem:[%s8 + $0x48] sm:$0xff]
  %v1234 = vld [vmem:[%s8 + $0x50] sm:$0xff]
  %v1235 = vld [vmem:[%s9] sm:$0xff]
  %v1236 = vld [vmem:[%s9 + $0x8] sm:$0xff]
  %v1237 = vld [vmem:[%s9 + $0x10] sm:$0xff]
  %v1238 = vld [vmem:[%s9 + $0x18] sm:$0xff]
  %v1239 = vld [vmem:[%s10] sm:$0x1]
  %v1241 = vperm.slane %v1239, 0
  %vm1243 = vcmask 719872
  %v1245 = vsel %vm1243, %v1216, 0
  %v1248 = vsel %vm1243, %v1217, 0
  %v1251 = vsel %vm1243, %v1218, 0
  %v1254 = vsel %vm1243, %v1219, 0
  %v1257 = vsel %vm1243, %v1220, 0
  %v1260 = vsel %vm1243, %v1221, 0
  %v1263 = vsel %vm1243, %v1222, 0
  %v1266 = vsel %vm1243, %v1223, 0
  %1268 = vmatpush.msra.mxu0 0.0
  %1269 = vmatpush.msra.mxu0 0.0
  %1270 = vmatpush.msra.mxu0 0.0
  %1271 = vmatpush.msra.mxu0 0.0
  %1272 = vmatpush.msra.mxu0 0.0
  %1273 = vmatpush.msra.mxu0 %v1234
  %1274 = vmatpush.msra.mxu0 %v1233
  %1275 = vmatpush.msra.mxu0 %v1232
  %1276 = vmatpush.msra.mxu0 %v1231
  %1277 = vmatpush.msra.mxu0 %v1230
  %1278 = vmatpush.msra.mxu0 %v1229
  %1279 = vmatpush.msra.mxu0 %v1228
  %1280 = vmatpush.msra.mxu0 %v1227
  %1281 = vmatpush.msra.mxu0 %v1226
  %1282 = vmatpush.msra.mxu0 %v1225
  %1283 = vmatpush.msra.mxu0 %v1224
  %1284 = vmatmul.f32.gmra.mxu0 %v1245
  %v1285 = vpop.f32.mrf.mxu0
  %v1286 = vadd.f32 %v1241, %v1285
  %1287 = vmatmul.f32.gmra.mxu0 %v1248
  %v1288 = vpop.f32.mrf.mxu0
  %v1289 = vadd.f32 %v1241, %v1288
  %1290 = vmatmul.f32.gmra.mxu0 %v1251
  %v1291 = vpop.f32.mrf.mxu0
  %v1292 = vadd.f32 %v1241, %v1291
  %1293 = vmatmul.f32.gmra.mxu0 %v1254
  %v1294 = vpop.f32.mrf.mxu0
  %v1295 = vadd.f32 %v1241, %v1294
  %1296 = vmatmul.f32.gmra.mxu0 %v1257
  %v1297 = vpop.f32.mrf.mxu0
  %v1298 = vadd.f32 %v1241, %v1297
  %1299 = vmatmul.f32.gmra.mxu0 %v1260
  %v1300 = vpop.f32.mrf.mxu0
  %v1301 = vadd.f32 %v1241, %v1300
  %1302 = vmatmul.f32.gmra.mxu0 %v1263
  %v1303 = vpop.f32.mrf.mxu0
  %v1304 = vadd.f32 %v1241, %v1303
  %1305 = vmatmul.f32.gmra.mxu0 %v1266
  %v1306 = vpop.f32.mrf.mxu0
  %v1307 = vadd.f32 %v1241, %v1306
  %1308 = vdwg.mxu0
  %1309 = vmatpush.msra.mxu0 0.0
  %1310 = vmatpush.msra.mxu0 0.0
  %1311 = vmatpush.msra.mxu0 0.0
  %1312 = vmatpush.msra.mxu0 0.0
  %1313 = vmatpush.msra.mxu0 0.0
  %1314 = vmatpush.msra.mxu0 0.0
  %1315 = vmatpush.msra.mxu0 0.0
  %1316 = vmatpush.msra.mxu0 0.0
  %1317 = vmatpush.msra.mxu0 0.0
  %1318 = vmatpush.msra.mxu0 0.0
  %1319 = vmatpush.msra.mxu0 0.0
  %1320 = vmatpush.msra.mxu0 0.0
  %1321 = vmatpush.msra.mxu0 %v1238
  %1322 = vmatpush.msra.mxu0 %v1237
  %1323 = vmatpush.msra.mxu0 %v1236
  %1324 = vmatpush.msra.mxu0 %v1235
  %1325 = vmatmul.f32.gmra.mxu0 %v142
  %v1326 = vpop.f32.mrf.mxu0
  %v1327 = vadd.f32 0.0, %v1326
  %1328 = vdwg.mxu0
  %v1329 = vadd.f32 %v1286, %v1327
  %v1330 = vxor.u32 %v1329, 2147483648
  %v1331 = vmul.f32 %v1330, 1.442695
  %v1332 = vpow.pop %v1331
  %v1333 = vadd.f32 %v1332, 1.0
  %v1334 = vrcp.pop %v1333
  %v1335 = vmul.f32 %v1333, %v1334
  %v1336 = vsub.f32 1.0, %v1335
  %v1337 = vmul.f32 %v1334, %v1336
  %v1338 = vadd.f32 %v1334, %v1337
  %vm1339 = vweird.f32 %v1333
  %vm1340 = vweird.f32 %v1334
  %vm1341 = vmor %vm1339, %vm1340
  %v1342 = vsel %vm1341, %v1334, %v1338
  %v1343 = vand.u32 2147483647, %v1333
  %vm1344 = vcmp.eq.f32.partialorder %v1343, 8.507059e+37
  %v1345 = vand.u32 %v1333, 2147483648
  %v1346 = vor.u32 1.1754944e-38, %v1345
  %v1347 = vsel %vm1344, %v1346, %v1342
  %v1348 = vmul.f32 1.0, %v1347
  %v1349 = vmul.f32 %v1348, 0.0
  %v1350 = vmul.f32 %v1348, 2.0
  %v1351 = vsub.f32 %v1350, 1.0
  %1353 = vrot.lane.b32.xlu0 %v1351, 32
  %v1354 = vpop.permute.xlu0 %1353
  %v1356 = vmul.f32 %v1348, %v1354
  %1358 = vrot.lane.b32.xlu0 %v1356, 32
  %v1359 = vpop.permute.xlu0 %1358
  %v1361 = vadd.f32 %v1349, %v1359
  %v1362 = vtanh.pop %v1361
  %1364 = vrot.lane.b32.xlu0 %v1362, 32
  %v1365 = vpop.permute.xlu0 %1364
  %v1367 = vmul.f32 %v1348, %v1365
  %1369 = vrot.lane.b32.xlu0 %v1367, 64
  %v1370 = vpop.permute.xlu0 %1369
  %v1371 = vsel %vm140, %v1370, 0
  %1373 = vmatpush.msra.mxu0 0.0
  %1374 = vmatpush.msra.mxu0 0.0
  %1375 = vmatpush.msra.mxu0 0.0
  %1376 = vmatpush.msra.mxu0 0.0
  %1377 = vmatpush.msra.mxu0 0.0
  %1378 = vmatpush.msra.mxu0 0.0
  %1379 = vmatpush.msra.mxu0 0.0
  %1380 = vmatpush.msra.mxu0 0.0
  %1381 = vmatpush.msra.mxu0 0.0
  %1382 = vmatpush.msra.mxu0 0.0
  %1383 = vmatpush.msra.mxu0 0.0
  %1384 = vmatpush.msra.mxu0 0.0
  %1385 = vmatpush.msra.mxu0 %v1238
  %1386 = vmatpush.msra.mxu0 %v1237
  %1387 = vmatpush.msra.mxu0 %v1236
  %1388 = vmatpush.msra.mxu0 %v1235
  %1389 = vmatmul.f32.gmra.mxu0 %v1371
  %v1390 = vpop.f32.mrf.mxu0
  %v1391 = vadd.f32 0.0, %v1390
  %1392 = vdwg.mxu0
  %v1393 = vadd.f32 %v1289, %v1391
  %v1394 = vxor.u32 %v1393, 2147483648
  %v1395 = vmul.f32 %v1394, 1.442695
  %v1396 = vpow.pop %v1395
  %v1397 = vadd.f32 %v1396, 1.0
  %v1398 = vrcp.pop %v1397
  %v1399 = vmul.f32 %v1397, %v1398
  %v1400 = vsub.f32 1.0, %v1399
  %v1401 = vmul.f32 %v1398, %v1400
  %v1402 = vadd.f32 %v1398, %v1401
  %vm1403 = vweird.f32 %v1397
  %vm1404 = vweird.f32 %v1398
  %vm1405 = vmor %vm1403, %vm1404
  %v1406 = vsel %vm1405, %v1398, %v1402
  %v1407 = vand.u32 2147483647, %v1397
  %vm1408 = vcmp.eq.f32.partialorder %v1407, 8.507059e+37
  %v1409 = vand.u32 %v1397, 2147483648
  %v1410 = vor.u32 1.1754944e-38, %v1409
  %v1411 = vsel %vm1408, %v1410, %v1406
  %v1412 = vmul.f32 1.0, %v1411
  %v1413 = vmul.f32 %v1412, %v1361
  %v1414 = vmul.f32 %v1412, 2.0
  %v1415 = vsub.f32 %v1414, 1.0
  %1417 = vrot.lane.b32.xlu0 %v1415, 32
  %v1418 = vpop.permute.xlu0 %1417
  %v1420 = vmul.f32 %v1412, %v1418
  %1422 = vrot.lane.b32.xlu0 %v1420, 32
  %v1423 = vpop.permute.xlu0 %1422
  %v1425 = vadd.f32 %v1413, %v1423
  %v1426 = vtanh.pop %v1425
  %1428 = vrot.lane.b32.xlu0 %v1426, 32
  %v1429 = vpop.permute.xlu0 %1428
  %v1431 = vmul.f32 %v1412, %v1429
  %1433 = vrot.lane.b32.xlu0 %v1431, 64
  %v1434 = vpop.permute.xlu0 %1433
  %v1435 = vsel %vm140, %v1434, 0
  %1437 = vmatpush.msra.mxu0 0.0
  %1438 = vmatpush.msra.mxu0 0.0
  %1439 = vmatpush.msra.mxu0 0.0
  %1440 = vmatpush.msra.mxu0 0.0
  %1441 = vmatpush.msra.mxu0 0.0
  %1442 = vmatpush.msra.mxu0 0.0
  %1443 = vmatpush.msra.mxu0 0.0
  %1444 = vmatpush.msra.mxu0 0.0
  %1445 = vmatpush.msra.mxu0 0.0
  %1446 = vmatpush.msra.mxu0 0.0
  %1447 = vmatpush.msra.mxu0 0.0
  %1448 = vmatpush.msra.mxu0 0.0
  %1449 = vmatpush.msra.mxu0 %v1238
  %1450 = vmatpush.msra.mxu0 %v1237
  %1451 = vmatpush.msra.mxu0 %v1236
  %1452 = vmatpush.msra.mxu0 %v1235
  %1453 = vmatmul.f32.gmra.mxu0 %v1435
  %v1454 = vpop.f32.mrf.mxu0
  %v1455 = vadd.f32 0.0, %v1454
  %1456 = vdwg.mxu0
  %v1457 = vadd.f32 %v1292, %v1455
  %v1458 = vxor.u32 %v1457, 2147483648
  %v1459 = vmul.f32 %v1458, 1.442695
  %v1460 = vpow.pop %v1459
  %v1461 = vadd.f32 %v1460, 1.0
  %v1462 = vrcp.pop %v1461
  %v1463 = vmul.f32 %v1461, %v1462
  %v1464 = vsub.f32 1.0, %v1463
  %v1465 = vmul.f32 %v1462, %v1464
  %v1466 = vadd.f32 %v1462, %v1465
  %vm1467 = vweird.f32 %v1461
  %vm1468 = vweird.f32 %v1462
  %vm1469 = vmor %vm1467, %vm1468
  %v1470 = vsel %vm1469, %v1462, %v1466
  %v1471 = vand.u32 2147483647, %v1461
  %vm1472 = vcmp.eq.f32.partialorder %v1471, 8.507059e+37
  %v1473 = vand.u32 %v1461, 2147483648
  %v1474 = vor.u32 1.1754944e-38, %v1473
  %v1475 = vsel %vm1472, %v1474, %v1470
  %v1476 = vmul.f32 1.0, %v1475
  %v1477 = vmul.f32 %v1476, %v1425
  %v1478 = vmul.f32 %v1476, 2.0
  %v1479 = vsub.f32 %v1478, 1.0
  %1481 = vrot.lane.b32.xlu0 %v1479, 32
  %v1482 = vpop.permute.xlu0 %1481
  %v1484 = vmul.f32 %v1476, %v1482
  %1486 = vrot.lane.b32.xlu0 %v1484, 32
  %v1487 = vpop.permute.xlu0 %1486
  %v1489 = vadd.f32 %v1477, %v1487
  %v1490 = vtanh.pop %v1489
  %1492 = vrot.lane.b32.xlu0 %v1490, 32
  %v1493 = vpop.permute.xlu0 %1492
  %v1495 = vmul.f32 %v1476, %v1493
  %1497 = vrot.lane.b32.xlu0 %v1495, 64
  %v1498 = vpop.permute.xlu0 %1497
  %v1499 = vsel %vm140, %v1498, 0
  %1501 = vmatpush.msra.mxu0 0.0
  %1502 = vmatpush.msra.mxu0 0.0
  %1503 = vmatpush.msra.mxu0 0.0
  %1504 = vmatpush.msra.mxu0 0.0
  %1505 = vmatpush.msra.mxu0 0.0
  %1506 = vmatpush.msra.mxu0 0.0
  %1507 = vmatpush.msra.mxu0 0.0
  %1508 = vmatpush.msra.mxu0 0.0
  %1509 = vmatpush.msra.mxu0 0.0
  %1510 = vmatpush.msra.mxu0 0.0
  %1511 = vmatpush.msra.mxu0 0.0
  %1512 = vmatpush.msra.mxu0 0.0
  %1513 = vmatpush.msra.mxu0 %v1238
  %1514 = vmatpush.msra.mxu0 %v1237
  %1515 = vmatpush.msra.mxu0 %v1236
  %1516 = vmatpush.msra.mxu0 %v1235
  %1517 = vmatmul.f32.gmra.mxu0 %v1499
  %v1518 = vpop.f32.mrf.mxu0
  %v1519 = vadd.f32 0.0, %v1518
  %1520 = vdwg.mxu0
  %v1521 = vadd.f32 %v1295, %v1519
  %v1522 = vxor.u32 %v1521, 2147483648
  %v1523 = vmul.f32 %v1522, 1.442695
  %v1524 = vpow.pop %v1523
  %v1525 = vadd.f32 %v1524, 1.0
  %v1526 = vrcp.pop %v1525
  %v1527 = vmul.f32 %v1525, %v1526
  %v1528 = vsub.f32 1.0, %v1527
  %v1529 = vmul.f32 %v1526, %v1528
  %v1530 = vadd.f32 %v1526, %v1529
  %vm1531 = vweird.f32 %v1525
  %vm1532 = vweird.f32 %v1526
  %vm1533 = vmor %vm1531, %vm1532
  %v1534 = vsel %vm1533, %v1526, %v1530
  %v1535 = vand.u32 2147483647, %v1525
  %vm1536 = vcmp.eq.f32.partialorder %v1535, 8.507059e+37
  %v1537 = vand.u32 %v1525, 2147483648
  %v1538 = vor.u32 1.1754944e-38, %v1537
  %v1539 = vsel %vm1536, %v1538, %v1534
  %v1540 = vmul.f32 1.0, %v1539
  %v1541 = vmul.f32 %v1540, %v1489
  %v1542 = vmul.f32 %v1540, 2.0
  %v1543 = vsub.f32 %v1542, 1.0
  %1545 = vrot.lane.b32.xlu0 %v1543, 32
  %v1546 = vpop.permute.xlu0 %1545
  %v1548 = vmul.f32 %v1540, %v1546
  %1550 = vrot.lane.b32.xlu0 %v1548, 32
  %v1551 = vpop.permute.xlu0 %1550
  %v1553 = vadd.f32 %v1541, %v1551
  %v1554 = vtanh.pop %v1553
  %1556 = vrot.lane.b32.xlu0 %v1554, 32
  %v1557 = vpop.permute.xlu0 %1556
  %v1559 = vmul.f32 %v1540, %v1557
  %1561 = vrot.lane.b32.xlu0 %v1559, 64
  %v1562 = vpop.permute.xlu0 %1561
  %v1563 = vsel %vm140, %v1562, 0
  %1565 = vmatpush.msra.mxu0 0.0
  %1566 = vmatpush.msra.mxu0 0.0
  %1567 = vmatpush.msra.mxu0 0.0
  %1568 = vmatpush.msra.mxu0 0.0
  %1569 = vmatpush.msra.mxu0 0.0
  %1570 = vmatpush.msra.mxu0 0.0
  %1571 = vmatpush.msra.mxu0 0.0
  %1572 = vmatpush.msra.mxu0 0.0
  %1573 = vmatpush.msra.mxu0 0.0
  %1574 = vmatpush.msra.mxu0 0.0
  %1575 = vmatpush.msra.mxu0 0.0
  %1576 = vmatpush.msra.mxu0 0.0
  %1577 = vmatpush.msra.mxu0 %v1238
  %1578 = vmatpush.msra.mxu0 %v1237
  %1579 = vmatpush.msra.mxu0 %v1236
  %1580 = vmatpush.msra.mxu0 %v1235
  %1581 = vmatmul.f32.gmra.mxu0 %v1563
  %v1582 = vpop.f32.mrf.mxu0
  %v1583 = vadd.f32 0.0, %v1582
  %1584 = vdwg.mxu0
  %v1585 = vadd.f32 %v1298, %v1583
  %v1586 = vxor.u32 %v1585, 2147483648
  %v1587 = vmul.f32 %v1586, 1.442695
  %v1588 = vpow.pop %v1587
  %v1589 = vadd.f32 %v1588, 1.0
  %v1590 = vrcp.pop %v1589
  %v1591 = vmul.f32 %v1589, %v1590
  %v1592 = vsub.f32 1.0, %v1591
  %v1593 = vmul.f32 %v1590, %v1592
  %v1594 = vadd.f32 %v1590, %v1593
  %vm1595 = vweird.f32 %v1589
  %vm1596 = vweird.f32 %v1590
  %vm1597 = vmor %vm1595, %vm1596
  %v1598 = vsel %vm1597, %v1590, %v1594
  %v1599 = vand.u32 2147483647, %v1589
  %vm1600 = vcmp.eq.f32.partialorder %v1599, 8.507059e+37
  %v1601 = vand.u32 %v1589, 2147483648
  %v1602 = vor.u32 1.1754944e-38, %v1601
  %v1603 = vsel %vm1600, %v1602, %v1598
  %v1604 = vmul.f32 1.0, %v1603
  %v1605 = vmul.f32 %v1604, %v1553
  %v1606 = vmul.f32 %v1604, 2.0
  %v1607 = vsub.f32 %v1606, 1.0
  %1609 = vrot.lane.b32.xlu0 %v1607, 32
  %v1610 = vpop.permute.xlu0 %1609
  %v1612 = vmul.f32 %v1604, %v1610
  %1614 = vrot.lane.b32.xlu0 %v1612, 32
  %v1615 = vpop.permute.xlu0 %1614
  %v1617 = vadd.f32 %v1605, %v1615
  %v1618 = vtanh.pop %v1617
  %1620 = vrot.lane.b32.xlu0 %v1618, 32
  %v1621 = vpop.permute.xlu0 %1620
  %v1623 = vmul.f32 %v1604, %v1621
  %1625 = vrot.lane.b32.xlu0 %v1623, 64
  %v1626 = vpop.permute.xlu0 %1625
  %v1627 = vsel %vm140, %v1626, 0
  %1629 = vmatpush.msra.mxu0 0.0
  %1630 = vmatpush.msra.mxu0 0.0
  %1631 = vmatpush.msra.mxu0 0.0
  %1632 = vmatpush.msra.mxu0 0.0
  %1633 = vmatpush.msra.mxu0 0.0
  %1634 = vmatpush.msra.mxu0 0.0
  %1635 = vmatpush.msra.mxu0 0.0
  %1636 = vmatpush.msra.mxu0 0.0
  %1637 = vmatpush.msra.mxu0 0.0
  %1638 = vmatpush.msra.mxu0 0.0
  %1639 = vmatpush.msra.mxu0 0.0
  %1640 = vmatpush.msra.mxu0 0.0
  %1641 = vmatpush.msra.mxu0 %v1238
  %1642 = vmatpush.msra.mxu0 %v1237
  %1643 = vmatpush.msra.mxu0 %v1236
  %1644 = vmatpush.msra.mxu0 %v1235
  %1645 = vmatmul.f32.gmra.mxu0 %v1627
  %v1646 = vpop.f32.mrf.mxu0
  %v1647 = vadd.f32 0.0, %v1646
  %1648 = vdwg.mxu0
  %v1649 = vadd.f32 %v1301, %v1647
  %v1650 = vxor.u32 %v1649, 2147483648
  %v1651 = vmul.f32 %v1650, 1.442695
  %v1652 = vpow.pop %v1651
  %v1653 = vadd.f32 %v1652, 1.0
  %v1654 = vrcp.pop %v1653
  %v1655 = vmul.f32 %v1653, %v1654
  %v1656 = vsub.f32 1.0, %v1655
  %v1657 = vmul.f32 %v1654, %v1656
  %v1658 = vadd.f32 %v1654, %v1657
  %vm1659 = vweird.f32 %v1653
  %vm1660 = vweird.f32 %v1654
  %vm1661 = vmor %vm1659, %vm1660
  %v1662 = vsel %vm1661, %v1654, %v1658
  %v1663 = vand.u32 2147483647, %v1653
  %vm1664 = vcmp.eq.f32.partialorder %v1663, 8.507059e+37
  %v1665 = vand.u32 %v1653, 2147483648
  %v1666 = vor.u32 1.1754944e-38, %v1665
  %v1667 = vsel %vm1664, %v1666, %v1662
  %v1668 = vmul.f32 1.0, %v1667
  %v1669 = vmul.f32 %v1668, %v1617
  %v1670 = vmul.f32 %v1668, 2.0
  %v1671 = vsub.f32 %v1670, 1.0
  %1673 = vrot.lane.b32.xlu0 %v1671, 32
  %v1674 = vpop.permute.xlu0 %1673
  %v1676 = vmul.f32 %v1668, %v1674
  %1678 = vrot.lane.b32.xlu0 %v1676, 32
  %v1679 = vpop.permute.xlu0 %1678
  %v1681 = vadd.f32 %v1669, %v1679
  %v1682 = vtanh.pop %v1681
  %1684 = vrot.lane.b32.xlu0 %v1682, 32
  %v1685 = vpop.permute.xlu0 %1684
  %v1687 = vmul.f32 %v1668, %v1685
  %1689 = vrot.lane.b32.xlu0 %v1687, 64
  %v1690 = vpop.permute.xlu0 %1689
  %v1691 = vsel %vm140, %v1690, 0
  %1693 = vmatpush.msra.mxu0 0.0
  %1694 = vmatpush.msra.mxu0 0.0
  %1695 = vmatpush.msra.mxu0 0.0
  %1696 = vmatpush.msra.mxu0 0.0
  %1697 = vmatpush.msra.mxu0 0.0
  %1698 = vmatpush.msra.mxu0 0.0
  %1699 = vmatpush.msra.mxu0 0.0
  %1700 = vmatpush.msra.mxu0 0.0
  %1701 = vmatpush.msra.mxu0 0.0
  %1702 = vmatpush.msra.mxu0 0.0
  %1703 = vmatpush.msra.mxu0 0.0
  %1704 = vmatpush.msra.mxu0 0.0
  %1705 = vmatpush.msra.mxu0 %v1238
  %1706 = vmatpush.msra.mxu0 %v1237
  %1707 = vmatpush.msra.mxu0 %v1236
  %1708 = vmatpush.msra.mxu0 %v1235
  %1709 = vmatmul.f32.gmra.mxu0 %v1691
  %v1710 = vpop.f32.mrf.mxu0
  %v1711 = vadd.f32 0.0, %v1710
  %1712 = vdwg.mxu0
  %v1713 = vadd.f32 %v1304, %v1711
  %v1714 = vxor.u32 %v1713, 2147483648
  %v1715 = vmul.f32 %v1714, 1.442695
  %v1716 = vpow.pop %v1715
  %v1717 = vadd.f32 %v1716, 1.0
  %v1718 = vrcp.pop %v1717
  %v1719 = vmul.f32 %v1717, %v1718
  %v1720 = vsub.f32 1.0, %v1719
  %v1721 = vmul.f32 %v1718, %v1720
  %v1722 = vadd.f32 %v1718, %v1721
  %vm1723 = vweird.f32 %v1717
  %vm1724 = vweird.f32 %v1718
  %vm1725 = vmor %vm1723, %vm1724
  %v1726 = vsel %vm1725, %v1718, %v1722
  %v1727 = vand.u32 2147483647, %v1717
  %vm1728 = vcmp.eq.f32.partialorder %v1727, 8.507059e+37
  %v1729 = vand.u32 %v1717, 2147483648
  %v1730 = vor.u32 1.1754944e-38, %v1729
  %v1731 = vsel %vm1728, %v1730, %v1726
  %v1732 = vmul.f32 1.0, %v1731
  %v1733 = vmul.f32 %v1732, %v1681
  %v1734 = vmul.f32 %v1732, 2.0
  %v1735 = vsub.f32 %v1734, 1.0
  %1737 = vrot.lane.b32.xlu0 %v1735, 32
  %v1738 = vpop.permute.xlu0 %1737
  %v1740 = vmul.f32 %v1732, %v1738
  %1742 = vrot.lane.b32.xlu0 %v1740, 32
  %v1743 = vpop.permute.xlu0 %1742
  %v1745 = vadd.f32 %v1733, %v1743
  %v1746 = vtanh.pop %v1745
  %1748 = vrot.lane.b32.xlu0 %v1746, 32
  %v1749 = vpop.permute.xlu0 %1748
  %v1751 = vmul.f32 %v1732, %v1749
  %1753 = vrot.lane.b32.xlu0 %v1751, 64
  %v1754 = vpop.permute.xlu0 %1753
  %v1755 = vsel %vm140, %v1754, 0
  %1757 = vmatpush.msra.mxu0 0.0
  %1758 = vmatpush.msra.mxu0 0.0
  %1759 = vmatpush.msra.mxu0 0.0
  %1760 = vmatpush.msra.mxu0 0.0
  %1761 = vmatpush.msra.mxu0 0.0
  %1762 = vmatpush.msra.mxu0 0.0
  %1763 = vmatpush.msra.mxu0 0.0
  %1764 = vmatpush.msra.mxu0 0.0
  %1765 = vmatpush.msra.mxu0 0.0
  %1766 = vmatpush.msra.mxu0 0.0
  %1767 = vmatpush.msra.mxu0 0.0
  %1768 = vmatpush.msra.mxu0 0.0
  %1769 = vmatpush.msra.mxu0 %v1238
  %1770 = vmatpush.msra.mxu0 %v1237
  %1771 = vmatpush.msra.mxu0 %v1236
  %1772 = vmatpush.msra.mxu0 %v1235
  %1773 = vmatmul.f32.gmra.mxu0 %v1755
  %v1774 = vpop.f32.mrf.mxu0
  %v1775 = vadd.f32 0.0, %v1774
  %1776 = vdwg.mxu0
  %v1777 = vadd.f32 %v1307, %v1775
  %v1778 = vxor.u32 %v1777, 2147483648
  %v1779 = vmul.f32 %v1778, 1.442695
  %v1780 = vpow.pop %v1779
  %v1781 = vadd.f32 %v1780, 1.0
  %v1782 = vrcp.pop %v1781
  %v1783 = vmul.f32 %v1781, %v1782
  %v1784 = vsub.f32 1.0, %v1783
  %v1785 = vmul.f32 %v1782, %v1784
  %v1786 = vadd.f32 %v1782, %v1785
  %vm1787 = vweird.f32 %v1781
  %vm1788 = vweird.f32 %v1782
  %vm1789 = vmor %vm1787, %vm1788
  %v1790 = vsel %vm1789, %v1782, %v1786
  %v1791 = vand.u32 2147483647, %v1781
  %vm1792 = vcmp.eq.f32.partialorder %v1791, 8.507059e+37
  %v1793 = vand.u32 %v1781, 2147483648
  %v1794 = vor.u32 1.1754944e-38, %v1793
  %v1795 = vsel %vm1792, %v1794, %v1790
  %v1796 = vmul.f32 1.0, %v1795
  %v1797 = vmul.f32 %v1796, %v1745
  %v1798 = vmul.f32 %v1796, 2.0
  %v1799 = vsub.f32 %v1798, 1.0
  %1801 = vrot.lane.b32.xlu0 %v1799, 32
  %v1802 = vpop.permute.xlu0 %1801
  %v1804 = vmul.f32 %v1796, %v1802
  %1806 = vrot.lane.b32.xlu0 %v1804, 32
  %v1807 = vpop.permute.xlu0 %1806
  %v1809 = vadd.f32 %v1797, %v1807
  %v1810 = vtanh.pop %v1809
  %1812 = vrot.lane.b32.xlu0 %v1810, 32
  %v1813 = vpop.permute.xlu0 %1812
  %v1815 = vmul.f32 %v1796, %v1813
  %v1816 = vld [vmem:[%s11] sm:$0xff]
  %v1817 = vld [vmem:[%s11 + $0x8] sm:$0xff]
  %v1818 = vld [vmem:[%s11 + $0x10] sm:$0xff]
  %v1819 = vld [vmem:[%s11 + $0x18] sm:$0xff]
  %v1820 = vld [vmem:[%s12] sm:$0xff]
  %v1821 = vld [vmem:[%s12 + $0x8] sm:$0xff]
  %v1822 = vld [vmem:[%s12 + $0x10] sm:$0xff]
  %v1823 = vld [vmem:[%s12 + $0x18] sm:$0xff]
  %v1824 = vld [vmem:[%s13] sm:$0x1]
  %v1826 = vperm.slane %v1824, 0
  %1829 = vrot.lane.b32.xlu0 %v1815, 64
  %v1830 = vpop.permute.xlu0 %1829
  %v1831 = vsel %vm140, %v1830, 0
  %1833 = vmatpush.msra.mxu0 0.0
  %1834 = vmatpush.msra.mxu0 0.0
  %1835 = vmatpush.msra.mxu0 0.0
  %1836 = vmatpush.msra.mxu0 0.0
  %1837 = vmatpush.msra.mxu0 0.0
  %1838 = vmatpush.msra.mxu0 0.0
  %1839 = vmatpush.msra.mxu0 0.0
  %1840 = vmatpush.msra.mxu0 0.0
  %1841 = vmatpush.msra.mxu0 0.0
  %1842 = vmatpush.msra.mxu0 0.0
  %1843 = vmatpush.msra.mxu0 0.0
  %1844 = vmatpush.msra.mxu0 0.0
  %1845 = vmatpush.msra.mxu0 %v1819
  %1846 = vmatpush.msra.mxu0 %v1818
  %1847 = vmatpush.msra.mxu0 %v1817
  %1848 = vmatpush.msra.mxu0 %v1816
  %1849 = vmatmul.f32.gmra.mxu0 %v1371
  %v1850 = vpop.f32.mrf.mxu0
  %v1851 = vadd.f32 %v1826, %v1850
  %1852 = vmatmul.f32.gmra.mxu0 %v1435
  %v1853 = vpop.f32.mrf.mxu0
  %v1854 = vadd.f32 %v1826, %v1853
  %1855 = vmatmul.f32.gmra.mxu0 %v1499
  %v1856 = vpop.f32.mrf.mxu0
  %v1857 = vadd.f32 %v1826, %v1856
  %1858 = vmatmul.f32.gmra.mxu0 %v1563
  %v1859 = vpop.f32.mrf.mxu0
  %v1860 = vadd.f32 %v1826, %v1859
  %1861 = vmatmul.f32.gmra.mxu0 %v1627
  %v1862 = vpop.f32.mrf.mxu0
  %v1863 = vadd.f32 %v1826, %v1862
  %1864 = vmatmul.f32.gmra.mxu0 %v1691
  %v1865 = vpop.f32.mrf.mxu0
  %v1866 = vadd.f32 %v1826, %v1865
  %1867 = vmatmul.f32.gmra.mxu0 %v1755
  %v1868 = vpop.f32.mrf.mxu0
  %v1869 = vadd.f32 %v1826, %v1868
  %1870 = vmatmul.f32.gmra.mxu0 %v1831
  %v1871 = vpop.f32.mrf.mxu0
  %v1872 = vadd.f32 %v1826, %v1871
  %1873 = vdwg.mxu0
  %1874 = vmatpush.msra.mxu0 0.0
  %1875 = vmatpush.msra.mxu0 0.0
  %1876 = vmatpush.msra.mxu0 0.0
  %1877 = vmatpush.msra.mxu0 0.0
  %1878 = vmatpush.msra.mxu0 0.0
  %1879 = vmatpush.msra.mxu0 0.0
  %1880 = vmatpush.msra.mxu0 0.0
  %1881 = vmatpush.msra.mxu0 0.0
  %1882 = vmatpush.msra.mxu0 0.0
  %1883 = vmatpush.msra.mxu0 0.0
  %1884 = vmatpush.msra.mxu0 0.0
  %1885 = vmatpush.msra.mxu0 0.0
  %1886 = vmatpush.msra.mxu0 %v1823
  %1887 = vmatpush.msra.mxu0 %v1822
  %1888 = vmatpush.msra.mxu0 %v1821
  %1889 = vmatpush.msra.mxu0 %v1820
  %1890 = vmatmul.f32.gmra.mxu0 %v142
  %v1891 = vpop.f32.mrf.mxu0
  %v1892 = vadd.f32 0.0, %v1891
  %1893 = vdwg.mxu0
  %v1894 = vadd.f32 %v1851, %v1892
  %v1895 = vxor.u32 %v1894, 2147483648
  %v1896 = vmul.f32 %v1895, 1.442695
  %v1897 = vpow.pop %v1896
  %v1898 = vadd.f32 %v1897, 1.0
  %v1899 = vrcp.pop %v1898
  %v1900 = vmul.f32 %v1898, %v1899
  %v1901 = vsub.f32 1.0, %v1900
  %v1902 = vmul.f32 %v1899, %v1901
  %v1903 = vadd.f32 %v1899, %v1902
  %vm1904 = vweird.f32 %v1898
  %vm1905 = vweird.f32 %v1899
  %vm1906 = vmor %vm1904, %vm1905
  %v1907 = vsel %vm1906, %v1899, %v1903
  %v1908 = vand.u32 2147483647, %v1898
  %vm1909 = vcmp.eq.f32.partialorder %v1908, 8.507059e+37
  %v1910 = vand.u32 %v1898, 2147483648
  %v1911 = vor.u32 1.1754944e-38, %v1910
  %v1912 = vsel %vm1909, %v1911, %v1907
  %v1913 = vmul.f32 1.0, %v1912
  %v1914 = vmul.f32 %v1913, 0.0
  %v1915 = vmul.f32 %v1913, 2.0
  %v1916 = vsub.f32 %v1915, 1.0
  %1918 = vrot.lane.b32.xlu0 %v1916, 32
  %v1919 = vpop.permute.xlu0 %1918
  %v1921 = vmul.f32 %v1913, %v1919
  %1923 = vrot.lane.b32.xlu0 %v1921, 32
  %v1924 = vpop.permute.xlu0 %1923
  %v1926 = vadd.f32 %v1914, %v1924
  %v1927 = vtanh.pop %v1926
  %1929 = vrot.lane.b32.xlu0 %v1927, 32
  %v1930 = vpop.permute.xlu0 %1929
  %v1932 = vmul.f32 %v1913, %v1930
  %1934 = vrot.lane.b32.xlu0 %v1932, 64
  %v1935 = vpop.permute.xlu0 %1934
  %v1936 = vsel %vm140, %v1935, 0
  %1938 = vmatpush.msra.mxu0 0.0
  %1939 = vmatpush.msra.mxu0 0.0
  %1940 = vmatpush.msra.mxu0 0.0
  %1941 = vmatpush.msra.mxu0 0.0
  %1942 = vmatpush.msra.mxu0 0.0
  %1943 = vmatpush.msra.mxu0 0.0
  %1944 = vmatpush.msra.mxu0 0.0
  %1945 = vmatpush.msra.mxu0 0.0
  %1946 = vmatpush.msra.mxu0 0.0
  %1947 = vmatpush.msra.mxu0 0.0
  %1948 = vmatpush.msra.mxu0 0.0
  %1949 = vmatpush.msra.mxu0 0.0
  %1950 = vmatpush.msra.mxu0 %v1823
  %1951 = vmatpush.msra.mxu0 %v1822
  %1952 = vmatpush.msra.mxu0 %v1821
  %1953 = vmatpush.msra.mxu0 %v1820
  %1954 = vmatmul.f32.gmra.mxu0 %v1936
  %v1955 = vpop.f32.mrf.mxu0
  %v1956 = vadd.f32 0.0, %v1955
  %1957 = vdwg.mxu0
  %v1958 = vadd.f32 %v1854, %v1956
  %v1959 = vxor.u32 %v1958, 2147483648
  %v1960 = vmul.f32 %v1959, 1.442695
  %v1961 = vpow.pop %v1960
  %v1962 = vadd.f32 %v1961, 1.0
  %v1963 = vrcp.pop %v1962
  %v1964 = vmul.f32 %v1962, %v1963
  %v1965 = vsub.f32 1.0, %v1964
  %v1966 = vmul.f32 %v1963, %v1965
  %v1967 = vadd.f32 %v1963, %v1966
  %vm1968 = vweird.f32 %v1962
  %vm1969 = vweird.f32 %v1963
  %vm1970 = vmor %vm1968, %vm1969
  %v1971 = vsel %vm1970, %v1963, %v1967
  %v1972 = vand.u32 2147483647, %v1962
  %vm1973 = vcmp.eq.f32.partialorder %v1972, 8.507059e+37
  %v1974 = vand.u32 %v1962, 2147483648
  %v1975 = vor.u32 1.1754944e-38, %v1974
  %v1976 = vsel %vm1973, %v1975, %v1971
  %v1977 = vmul.f32 1.0, %v1976
  %v1978 = vmul.f32 %v1977, %v1926
  %v1979 = vmul.f32 %v1977, 2.0
  %v1980 = vsub.f32 %v1979, 1.0
  %1982 = vrot.lane.b32.xlu0 %v1980, 32
  %v1983 = vpop.permute.xlu0 %1982
  %v1985 = vmul.f32 %v1977, %v1983
  %1987 = vrot.lane.b32.xlu0 %v1985, 32
  %v1988 = vpop.permute.xlu0 %1987
  %v1990 = vadd.f32 %v1978, %v1988
  %v1991 = vtanh.pop %v1990
  %1993 = vrot.lane.b32.xlu0 %v1991, 32
  %v1994 = vpop.permute.xlu0 %1993
  %v1996 = vmul.f32 %v1977, %v1994
  %1998 = vrot.lane.b32.xlu0 %v1996, 64
  %v1999 = vpop.permute.xlu0 %1998
  %v2000 = vsel %vm140, %v1999, 0
  %2002 = vmatpush.msra.mxu0 0.0
  %2003 = vmatpush.msra.mxu0 0.0
  %2004 = vmatpush.msra.mxu0 0.0
  %2005 = vmatpush.msra.mxu0 0.0
  %2006 = vmatpush.msra.mxu0 0.0
  %2007 = vmatpush.msra.mxu0 0.0
  %2008 = vmatpush.msra.mxu0 0.0
  %2009 = vmatpush.msra.mxu0 0.0
  %2010 = vmatpush.msra.mxu0 0.0
  %2011 = vmatpush.msra.mxu0 0.0
  %2012 = vmatpush.msra.mxu0 0.0
  %2013 = vmatpush.msra.mxu0 0.0
  %2014 = vmatpush.msra.mxu0 %v1823
  %2015 = vmatpush.msra.mxu0 %v1822
  %2016 = vmatpush.msra.mxu0 %v1821
  %2017 = vmatpush.msra.mxu0 %v1820
  %2018 = vmatmul.f32.gmra.mxu0 %v2000
  %v2019 = vpop.f32.mrf.mxu0
  %v2020 = vadd.f32 0.0, %v2019
  %2021 = vdwg.mxu0
  %v2022 = vadd.f32 %v1857, %v2020
  %v2023 = vxor.u32 %v2022, 2147483648
  %v2024 = vmul.f32 %v2023, 1.442695
  %v2025 = vpow.pop %v2024
  %v2026 = vadd.f32 %v2025, 1.0
  %v2027 = vrcp.pop %v2026
  %v2028 = vmul.f32 %v2026, %v2027
  %v2029 = vsub.f32 1.0, %v2028
  %v2030 = vmul.f32 %v2027, %v2029
  %v2031 = vadd.f32 %v2027, %v2030
  %vm2032 = vweird.f32 %v2026
  %vm2033 = vweird.f32 %v2027
  %vm2034 = vmor %vm2032, %vm2033
  %v2035 = vsel %vm2034, %v2027, %v2031
  %v2036 = vand.u32 2147483647, %v2026
  %vm2037 = vcmp.eq.f32.partialorder %v2036, 8.507059e+37
  %v2038 = vand.u32 %v2026, 2147483648
  %v2039 = vor.u32 1.1754944e-38, %v2038
  %v2040 = vsel %vm2037, %v2039, %v2035
  %v2041 = vmul.f32 1.0, %v2040
  %v2042 = vmul.f32 %v2041, %v1990
  %v2043 = vmul.f32 %v2041, 2.0
  %v2044 = vsub.f32 %v2043, 1.0
  %2046 = vrot.lane.b32.xlu0 %v2044, 32
  %v2047 = vpop.permute.xlu0 %2046
  %v2049 = vmul.f32 %v2041, %v2047
  %2051 = vrot.lane.b32.xlu0 %v2049, 32
  %v2052 = vpop.permute.xlu0 %2051
  %v2054 = vadd.f32 %v2042, %v2052
  %v2055 = vtanh.pop %v2054
  %2057 = vrot.lane.b32.xlu0 %v2055, 32
  %v2058 = vpop.permute.xlu0 %2057
  %v2060 = vmul.f32 %v2041, %v2058
  %2062 = vrot.lane.b32.xlu0 %v2060, 64
  %v2063 = vpop.permute.xlu0 %2062
  %v2064 = vsel %vm140, %v2063, 0
  %2066 = vmatpush.msra.mxu0 0.0
  %2067 = vmatpush.msra.mxu0 0.0
  %2068 = vmatpush.msra.mxu0 0.0
  %2069 = vmatpush.msra.mxu0 0.0
  %2070 = vmatpush.msra.mxu0 0.0
  %2071 = vmatpush.msra.mxu0 0.0
  %2072 = vmatpush.msra.mxu0 0.0
  %2073 = vmatpush.msra.mxu0 0.0
  %2074 = vmatpush.msra.mxu0 0.0
  %2075 = vmatpush.msra.mxu0 0.0
  %2076 = vmatpush.msra.mxu0 0.0
  %2077 = vmatpush.msra.mxu0 0.0
  %2078 = vmatpush.msra.mxu0 %v1823
  %2079 = vmatpush.msra.mxu0 %v1822
  %2080 = vmatpush.msra.mxu0 %v1821
  %2081 = vmatpush.msra.mxu0 %v1820
  %2082 = vmatmul.f32.gmra.mxu0 %v2064
  %v2083 = vpop.f32.mrf.mxu0
  %v2084 = vadd.f32 0.0, %v2083
  %2085 = vdwg.mxu0
  %v2086 = vadd.f32 %v1860, %v2084
  %v2087 = vxor.u32 %v2086, 2147483648
  %v2088 = vmul.f32 %v2087, 1.442695
  %v2089 = vpow.pop %v2088
  %v2090 = vadd.f32 %v2089, 1.0
  %v2091 = vrcp.pop %v2090
  %v2092 = vmul.f32 %v2090, %v2091
  %v2093 = vsub.f32 1.0, %v2092
  %v2094 = vmul.f32 %v2091, %v2093
  %v2095 = vadd.f32 %v2091, %v2094
  %vm2096 = vweird.f32 %v2090
  %vm2097 = vweird.f32 %v2091
  %vm2098 = vmor %vm2096, %vm2097
  %v2099 = vsel %vm2098, %v2091, %v2095
  %v2100 = vand.u32 2147483647, %v2090
  %vm2101 = vcmp.eq.f32.partialorder %v2100, 8.507059e+37
  %v2102 = vand.u32 %v2090, 2147483648
  %v2103 = vor.u32 1.1754944e-38, %v2102
  %v2104 = vsel %vm2101, %v2103, %v2099
  %v2105 = vmul.f32 1.0, %v2104
  %v2106 = vmul.f32 %v2105, %v2054
  %v2107 = vmul.f32 %v2105, 2.0
  %v2108 = vsub.f32 %v2107, 1.0
  %2110 = vrot.lane.b32.xlu0 %v2108, 32
  %v2111 = vpop.permute.xlu0 %2110
  %v2113 = vmul.f32 %v2105, %v2111
  %2115 = vrot.lane.b32.xlu0 %v2113, 32
  %v2116 = vpop.permute.xlu0 %2115
  %v2118 = vadd.f32 %v2106, %v2116
  %v2119 = vtanh.pop %v2118
  %2121 = vrot.lane.b32.xlu0 %v2119, 32
  %v2122 = vpop.permute.xlu0 %2121
  %v2124 = vmul.f32 %v2105, %v2122
  %2126 = vrot.lane.b32.xlu0 %v2124, 64
  %v2127 = vpop.permute.xlu0 %2126
  %v2128 = vsel %vm140, %v2127, 0
  %2130 = vmatpush.msra.mxu0 0.0
  %2131 = vmatpush.msra.mxu0 0.0
  %2132 = vmatpush.msra.mxu0 0.0
  %2133 = vmatpush.msra.mxu0 0.0
  %2134 = vmatpush.msra.mxu0 0.0
  %2135 = vmatpush.msra.mxu0 0.0
  %2136 = vmatpush.msra.mxu0 0.0
  %2137 = vmatpush.msra.mxu0 0.0
  %2138 = vmatpush.msra.mxu0 0.0
  %2139 = vmatpush.msra.mxu0 0.0
  %2140 = vmatpush.msra.mxu0 0.0
  %2141 = vmatpush.msra.mxu0 0.0
  %2142 = vmatpush.msra.mxu0 %v1823
  %2143 = vmatpush.msra.mxu0 %v1822
  %2144 = vmatpush.msra.mxu0 %v1821
  %2145 = vmatpush.msra.mxu0 %v1820
  %2146 = vmatmul.f32.gmra.mxu0 %v2128
  %v2147 = vpop.f32.mrf.mxu0
  %v2148 = vadd.f32 0.0, %v2147
  %2149 = vdwg.mxu0
  %v2150 = vadd.f32 %v1863, %v2148
  %v2151 = vxor.u32 %v2150, 2147483648
  %v2152 = vmul.f32 %v2151, 1.442695
  %v2153 = vpow.pop %v2152
  %v2154 = vadd.f32 %v2153, 1.0
  %v2155 = vrcp.pop %v2154
  %v2156 = vmul.f32 %v2154, %v2155
  %v2157 = vsub.f32 1.0, %v2156
  %v2158 = vmul.f32 %v2155, %v2157
  %v2159 = vadd.f32 %v2155, %v2158
  %vm2160 = vweird.f32 %v2154
  %vm2161 = vweird.f32 %v2155
  %vm2162 = vmor %vm2160, %vm2161
  %v2163 = vsel %vm2162, %v2155, %v2159
  %v2164 = vand.u32 2147483647, %v2154
  %vm2165 = vcmp.eq.f32.partialorder %v2164, 8.507059e+37
  %v2166 = vand.u32 %v2154, 2147483648
  %v2167 = vor.u32 1.1754944e-38, %v2166
  %v2168 = vsel %vm2165, %v2167, %v2163
  %v2169 = vmul.f32 1.0, %v2168
  %v2170 = vmul.f32 %v2169, %v2118
  %v2171 = vmul.f32 %v2169, 2.0
  %v2172 = vsub.f32 %v2171, 1.0
  %2174 = vrot.lane.b32.xlu0 %v2172, 32
  %v2175 = vpop.permute.xlu0 %2174
  %v2177 = vmul.f32 %v2169, %v2175
  %2179 = vrot.lane.b32.xlu0 %v2177, 32
  %v2180 = vpop.permute.xlu0 %2179
  %v2182 = vadd.f32 %v2170, %v2180
  %v2183 = vtanh.pop %v2182
  %2185 = vrot.lane.b32.xlu0 %v2183, 32
  %v2186 = vpop.permute.xlu0 %2185
  %v2188 = vmul.f32 %v2169, %v2186
  %2190 = vrot.lane.b32.xlu0 %v2188, 64
  %v2191 = vpop.permute.xlu0 %2190
  %v2192 = vsel %vm140, %v2191, 0
  %2194 = vmatpush.msra.mxu0 0.0
  %2195 = vmatpush.msra.mxu0 0.0
  %2196 = vmatpush.msra.mxu0 0.0
  %2197 = vmatpush.msra.mxu0 0.0
  %2198 = vmatpush.msra.mxu0 0.0
  %2199 = vmatpush.msra.mxu0 0.0
  %2200 = vmatpush.msra.mxu0 0.0
  %2201 = vmatpush.msra.mxu0 0.0
  %2202 = vmatpush.msra.mxu0 0.0
  %2203 = vmatpush.msra.mxu0 0.0
  %2204 = vmatpush.msra.mxu0 0.0
  %2205 = vmatpush.msra.mxu0 0.0
  %2206 = vmatpush.msra.mxu0 %v1823
  %2207 = vmatpush.msra.mxu0 %v1822
  %2208 = vmatpush.msra.mxu0 %v1821
  %2209 = vmatpush.msra.mxu0 %v1820
  %2210 = vmatmul.f32.gmra.mxu0 %v2192
  %v2211 = vpop.f32.mrf.mxu0
  %v2212 = vadd.f32 0.0, %v2211
  %2213 = vdwg.mxu0
  %v2214 = vadd.f32 %v1866, %v2212
  %v2215 = vxor.u32 %v2214, 2147483648
  %v2216 = vmul.f32 %v2215, 1.442695
  %v2217 = vpow.pop %v2216
  %v2218 = vadd.f32 %v2217, 1.0
  %v2219 = vrcp.pop %v2218
  %v2220 = vmul.f32 %v2218, %v2219
  %v2221 = vsub.f32 1.0, %v2220
  %v2222 = vmul.f32 %v2219, %v2221
  %v2223 = vadd.f32 %v2219, %v2222
  %vm2224 = vweird.f32 %v2218
  %vm2225 = vweird.f32 %v2219
  %vm2226 = vmor %vm2224, %vm2225
  %v2227 = vsel %vm2226, %v2219, %v2223
  %v2228 = vand.u32 2147483647, %v2218
  %vm2229 = vcmp.eq.f32.partialorder %v2228, 8.507059e+37
  %v2230 = vand.u32 %v2218, 2147483648
  %v2231 = vor.u32 1.1754944e-38, %v2230
  %v2232 = vsel %vm2229, %v2231, %v2227
  %v2233 = vmul.f32 1.0, %v2232
  %v2234 = vmul.f32 %v2233, %v2182
  %v2235 = vmul.f32 %v2233, 2.0
  %v2236 = vsub.f32 %v2235, 1.0
  %2238 = vrot.lane.b32.xlu0 %v2236, 32
  %v2239 = vpop.permute.xlu0 %2238
  %v2241 = vmul.f32 %v2233, %v2239
  %2243 = vrot.lane.b32.xlu0 %v2241, 32
  %v2244 = vpop.permute.xlu0 %2243
  %v2246 = vadd.f32 %v2234, %v2244
  %v2247 = vtanh.pop %v2246
  %2249 = vrot.lane.b32.xlu0 %v2247, 32
  %v2250 = vpop.permute.xlu0 %2249
  %v2252 = vmul.f32 %v2233, %v2250
  %2254 = vrot.lane.b32.xlu0 %v2252, 64
  %v2255 = vpop.permute.xlu0 %2254
  %v2256 = vsel %vm140, %v2255, 0
  %2258 = vmatpush.msra.mxu0 0.0
  %2259 = vmatpush.msra.mxu0 0.0
  %2260 = vmatpush.msra.mxu0 0.0
  %2261 = vmatpush.msra.mxu0 0.0
  %2262 = vmatpush.msra.mxu0 0.0
  %2263 = vmatpush.msra.mxu0 0.0
  %2264 = vmatpush.msra.mxu0 0.0
  %2265 = vmatpush.msra.mxu0 0.0
  %2266 = vmatpush.msra.mxu0 0.0
  %2267 = vmatpush.msra.mxu0 0.0
  %2268 = vmatpush.msra.mxu0 0.0
  %2269 = vmatpush.msra.mxu0 0.0
  %2270 = vmatpush.msra.mxu0 %v1823
  %2271 = vmatpush.msra.mxu0 %v1822
  %2272 = vmatpush.msra.mxu0 %v1821
  %2273 = vmatpush.msra.mxu0 %v1820
  %2274 = vmatmul.f32.gmra.mxu0 %v2256
  %v2275 = vpop.f32.mrf.mxu0
  %v2276 = vadd.f32 0.0, %v2275
  %2277 = vdwg.mxu0
  %v2278 = vadd.f32 %v1869, %v2276
  %v2279 = vxor.u32 %v2278, 2147483648
  %v2280 = vmul.f32 %v2279, 1.442695
  %v2281 = vpow.pop %v2280
  %v2282 = vadd.f32 %v2281, 1.0
  %v2283 = vrcp.pop %v2282
  %v2284 = vmul.f32 %v2282, %v2283
  %v2285 = vsub.f32 1.0, %v2284
  %v2286 = vmul.f32 %v2283, %v2285
  %v2287 = vadd.f32 %v2283, %v2286
  %vm2288 = vweird.f32 %v2282
  %vm2289 = vweird.f32 %v2283
  %vm2290 = vmor %vm2288, %vm2289
  %v2291 = vsel %vm2290, %v2283, %v2287
  %v2292 = vand.u32 2147483647, %v2282
  %vm2293 = vcmp.eq.f32.partialorder %v2292, 8.507059e+37
  %v2294 = vand.u32 %v2282, 2147483648
  %v2295 = vor.u32 1.1754944e-38, %v2294
  %v2296 = vsel %vm2293, %v2295, %v2291
  %v2297 = vmul.f32 1.0, %v2296
  %v2298 = vmul.f32 %v2297, %v2246
  %v2299 = vmul.f32 %v2297, 2.0
  %v2300 = vsub.f32 %v2299, 1.0
  %2302 = vrot.lane.b32.xlu0 %v2300, 32
  %v2303 = vpop.permute.xlu0 %2302
  %v2305 = vmul.f32 %v2297, %v2303
  %2307 = vrot.lane.b32.xlu0 %v2305, 32
  %v2308 = vpop.permute.xlu0 %2307
  %v2310 = vadd.f32 %v2298, %v2308
  %v2311 = vtanh.pop %v2310
  %2313 = vrot.lane.b32.xlu0 %v2311, 32
  %v2314 = vpop.permute.xlu0 %2313
  %v2316 = vmul.f32 %v2297, %v2314
  %2318 = vrot.lane.b32.xlu0 %v2316, 64
  %v2319 = vpop.permute.xlu0 %2318
  %v2320 = vsel %vm140, %v2319, 0
  %2322 = vmatpush.msra.mxu0 0.0
  %2323 = vmatpush.msra.mxu0 0.0
  %2324 = vmatpush.msra.mxu0 0.0
  %2325 = vmatpush.msra.mxu0 0.0
  %2326 = vmatpush.msra.mxu0 0.0
  %2327 = vmatpush.msra.mxu0 0.0
  %2328 = vmatpush.msra.mxu0 0.0
  %2329 = vmatpush.msra.mxu0 0.0
  %2330 = vmatpush.msra.mxu0 0.0
  %2331 = vmatpush.msra.mxu0 0.0
  %2332 = vmatpush.msra.mxu0 0.0
  %2333 = vmatpush.msra.mxu0 0.0
  %2334 = vmatpush.msra.mxu0 %v1823
  %2335 = vmatpush.msra.mxu0 %v1822
  %2336 = vmatpush.msra.mxu0 %v1821
  %2337 = vmatpush.msra.mxu0 %v1820
  %2338 = vmatmul.f32.gmra.mxu0 %v2320
  %v2339 = vpop.f32.mrf.mxu0
  %v2340 = vadd.f32 0.0, %v2339
  %2341 = vdwg.mxu0
  %v2342 = vadd.f32 %v1872, %v2340
  %v2343 = vxor.u32 %v2342, 2147483648
  %v2344 = vmul.f32 %v2343, 1.442695
  %v2345 = vpow.pop %v2344
  %v2346 = vadd.f32 %v2345, 1.0
  %v2347 = vrcp.pop %v2346
  %v2348 = vmul.f32 %v2346, %v2347
  %v2349 = vsub.f32 1.0, %v2348
  %v2350 = vmul.f32 %v2347, %v2349
  %v2351 = vadd.f32 %v2347, %v2350
  %vm2352 = vweird.f32 %v2346
  %vm2353 = vweird.f32 %v2347
  %vm2354 = vmor %vm2352, %vm2353
  %v2355 = vsel %vm2354, %v2347, %v2351
  %v2356 = vand.u32 2147483647, %v2346
  %vm2357 = vcmp.eq.f32.partialorder %v2356, 8.507059e+37
  %v2358 = vand.u32 %v2346, 2147483648
  %v2359 = vor.u32 1.1754944e-38, %v2358
  %v2360 = vsel %vm2357, %v2359, %v2355
  %v2361 = vmul.f32 1.0, %v2360
  %v2362 = vmul.f32 %v2361, %v2310
  %v2363 = vmul.f32 %v2361, 2.0
  %v2364 = vsub.f32 %v2363, 1.0
  %2366 = vrot.lane.b32.xlu0 %v2364, 32
  %v2367 = vpop.permute.xlu0 %2366
  %v2369 = vmul.f32 %v2361, %v2367
  %2371 = vrot.lane.b32.xlu0 %v2369, 32
  %v2372 = vpop.permute.xlu0 %2371
  %v2374 = vadd.f32 %v2362, %v2372
  %v2375 = vtanh.pop %v2374
  %2377 = vrot.lane.b32.xlu0 %v2375, 32
  %v2378 = vpop.permute.xlu0 %2377
  %v2380 = vmul.f32 %v2361, %v2378
  %v2381 = vld [vmem:[%s14] sm:$0xff]
  %v2382 = vld [vmem:[%s14 + $0x8] sm:$0xff]
  %v2383 = vld [vmem:[%s14 + $0x10] sm:$0xff]
  %v2384 = vld [vmem:[%s14 + $0x18] sm:$0xff]
  %v2385 = vld [vmem:[%s15] sm:$0xff]
  %v2386 = vld [vmem:[%s15 + $0x8] sm:$0xff]
  %v2387 = vld [vmem:[%s15 + $0x10] sm:$0xff]
  %v2388 = vld [vmem:[%s15 + $0x18] sm:$0xff]
  %2390 = vrot.lane.b32.xlu0 %v2380, 64
  %v2391 = vpop.permute.xlu0 %2390
  %v2392 = vsel %vm140, %v2391, 0
  %2394 = vmatpush.msra.mxu0 0.0
  %2395 = vmatpush.msra.mxu0 0.0
  %2396 = vmatpush.msra.mxu0 0.0
  %2397 = vmatpush.msra.mxu0 0.0
  %2398 = vmatpush.msra.mxu0 0.0
  %2399 = vmatpush.msra.mxu0 0.0
  %2400 = vmatpush.msra.mxu0 0.0
  %2401 = vmatpush.msra.mxu0 0.0
  %2402 = vmatpush.msra.mxu0 0.0
  %2403 = vmatpush.msra.mxu0 0.0
  %2404 = vmatpush.msra.mxu0 0.0
  %2405 = vmatpush.msra.mxu0 0.0
  %2406 = vmatpush.msra.mxu0 %v2388
  %2407 = vmatpush.msra.mxu0 %v2387
  %2408 = vmatpush.msra.mxu0 %v2386
  %2409 = vmatpush.msra.mxu0 %v2385
  %2410 = vmatmul.f32.gmra.mxu0 %v2392
  %v2411 = vpop.f32.mrf.mxu0
  %v2412 = vadd.f32 0.0, %v2411
  %2413 = vdwg.mxu0
  %2415 = vrot.lane.b32.xlu0 %v1215, 64
  %v2416 = vpop.permute.xlu0 %2415
  %v2417 = vsel %vm140, %v2416, 0
  %2419 = vmatpush.msra.mxu0 0.0
  %2420 = vmatpush.msra.mxu0 0.0
  %2421 = vmatpush.msra.mxu0 0.0
  %2422 = vmatpush.msra.mxu0 0.0
  %2423 = vmatpush.msra.mxu0 0.0
  %2424 = vmatpush.msra.mxu0 0.0
  %2425 = vmatpush.msra.mxu0 0.0
  %2426 = vmatpush.msra.mxu0 0.0
  %2427 = vmatpush.msra.mxu0 0.0
  %2428 = vmatpush.msra.mxu0 0.0
  %2429 = vmatpush.msra.mxu0 0.0
  %2430 = vmatpush.msra.mxu0 0.0
  %2431 = vmatpush.msra.mxu0 %v2384
  %2432 = vmatpush.msra.mxu0 %v2383
  %2433 = vmatpush.msra.mxu0 %v2382
  %2434 = vmatpush.msra.mxu0 %v2381
  %2435 = vmatmul.f32.gmra.mxu0 %v2417
  %v2436 = vpop.f32.mrf.mxu0
  %v2437 = vadd.f32 %v2412, %v2436
  %2438 = vdwg.mxu0
  %v2439 = vld [vmem:[%s16] sm:$0x1]
  %v2441 = vperm.slane %v2439, 0
  %v2443 = vadd.f32 %v2437, %v2441
  %v2444 = vxor.u32 %v2443, 2147483648
  %v2445 = vmul.f32 %v2444, 1.442695
  %v2446 = vpow.pop %v2445
  %v2447 = vadd.f32 %v2446, 1.0
  %v2448 = vrcp.pop %v2447
  %v2449 = vmul.f32 %v2447, %v2448
  %v2450 = vsub.f32 1.0, %v2449
  %v2451 = vmul.f32 %v2448, %v2450
  %v2452 = vadd.f32 %v2448, %v2451
  %vm2453 = vweird.f32 %v2447
  %vm2454 = vweird.f32 %v2448
  %vm2455 = vmor %vm2453, %vm2454
  %v2456 = vsel %vm2455, %v2448, %v2452
  %v2457 = vand.u32 2147483647, %v2447
  %vm2458 = vcmp.eq.f32.partialorder %v2457, 8.507059e+37
  %v2459 = vand.u32 %v2447, 2147483648
  %v2460 = vor.u32 1.1754944e-38, %v2459
  %v2461 = vsel %vm2458, %v2460, %v2456
  %v2462 = vmul.f32 1.0, %v2461
  %2463 = vst.msk [vmem:[%s17] sm:$0xff] %vm74, %v2462
  // Predicated region
  $region70: #{rnn_forward.1} parent=0 // pred_check
    _
  $region71: #{rnn_forward.1} parent=0 // pred_check_branch
    %2465 = sbr.rel (0) target = $region73
  $region72: #{rnn_forward.1} parent=0 // pred_region
    _
  $region73: #{rnn_forward.1} parent=0 // pred_fallthru
    _
  // Predicated region
  $region74: #{rnn_forward.1} parent=0 // pred_check
    _
  $region75: #{rnn_forward.1} parent=0 // pred_check_branch
    %2467 = sbr.rel (0) target = $region77
  $region76: #{rnn_forward.1} parent=0 // pred_region
    _
  $region77: #{rnn_forward.1} parent=0 // pred_fallthru
    _

</llo_original>
